<compile_context>
chip_gen: v6e
topology: v6e:2x2x1
jax: 0.10.0
libtpu: 0.0.40
codegen_flags: <defaults>
</compile_context>

<pallas_src>
import functools

import jax
import jax.numpy as jnp
from jax import lax
from jax.experimental import pallas as pl
from jax.experimental.pallas import tpu as pltpu

HIDDEN = 32   # model1 hidden feature channels
UPSCALE = 2   # args.upscale


def _sr_group_kernel(w1_ref, b1_ref, w2_ref, b2_ref, x_ref, o_ref,
                     *, H, W, G, F, U, GPB, CH):
    """One grid step = GPB groups of G lane-interleaved slices (lane = w*G+s).

    w1_ref : SMEM (F*9,)     conv1 weights, flat index f*9 + (dy*3+dx)
    b1_ref : SMEM (F,)
    w2_ref : SMEM (F*9*U,)   conv2 weights, flat index f*9*U + (dy*3+dx)*U + u
    b2_ref : SMEM (U,)
    x_ref  : (GPB, H+4, (W+2)*G)  zero-padded, lane-interleaved input slices
    o_ref  : (GPB, U, H, W*G)     conv2 output planes (dense 128-lane stores)
    """
    WG = W * G
    Hh = H + 2                       # row-extended hidden extent (rows -1 .. H)

    # Row border mask for the hidden plane (conv2 sees zero-padded hidden).
    rid = lax.broadcasted_iota(jnp.int32, (Hh, WG), 0)
    row_interior = (rid >= 1) & (rid <= H)

    for gi in range(GPB):
        x = x_ref[gi]                # (H+4, (W+2)*G), loaded once per group

        def chunk(ci, accs):
            # Re-slice the 9 shifted input taps inside the loop body (keeps
            # ~27 slab vregs from being live across the whole channel loop).
            xs = [x[dy:dy + Hh, dx * G:dx * G + WG]
                  for dy in range(3) for dx in range(3)]
            for cf in range(CH):                    # CH channels unrolled
                f = ci * CH + cf
                # ---- conv1 (channel f): 9 scalar-broadcast MACs, bias folded.
                w1b = f * 9
                hf = w1_ref[w1b] * xs[0]
                for t in range(1, 9):
                    hf = hf + w1_ref[w1b + t] * xs[t]
                hf = hf + b1_ref[f]
                hf = jnp.where(row_interior, jnp.maximum(hf, 0.0), 0.0)
                # ---- conv2: accumulate into 3*U unshifted accumulators; the
                # width shifts + border masks are hoisted out of the F loop.
                w2b = f * 9 * U
                new = list(accs)
                for dy in range(3):
                    hs = hf[dy:dy + H, :]           # row tap: static slice
                    for dx in range(3):
                        wo = w2b + (dy * 3 + dx) * U
                        for u in range(U):
                            idx = dx * U + u
                            new[idx] = new[idx] + w2_ref[wo + u] * hs
                accs = tuple(new)
            return accs

        zeros = jnp.zeros((H, WG), jnp.float32)
        accs = lax.fori_loop(0, F // CH, chunk, (zeros,) * (3 * U))

        # Hoisted width shifts + border masks, applied once per output plane.
        cid = lax.broadcasted_iota(jnp.int32, (H, WG), 1)
        col_ok_m = cid >= G              # tap at w-1 valid
        col_ok_p = cid < WG - G          # tap at w+1 valid
        for u in range(U):
            left = jnp.where(col_ok_m,
                             pltpu.roll(accs[0 * U + u], G, axis=1), 0.0)
            cent = accs[1 * U + u]
            right = jnp.where(col_ok_p,
                              pltpu.roll(accs[2 * U + u], WG - G, axis=1), 0.0)
            o_ref[gi, u] = cent + left + right + b2_ref[u]   # dense (H,128) store


def model1_sr_pallas(x_slices, w1, b1, w2, b2):
    """Apply synthesized model1 to a stack of single-channel slices.

    x_slices : (N, H, W) float32
    returns  : (N, H, W*UPSCALE) float32
    """
    N, H, W = x_slices.shape
    F = w1.shape[2]
    U = w2.shape[3]
    G = max(1, (128 + W - 1) // W)     # slices per lane group (W*G >= 128)
    Np = ((N + G - 1) // G) * G
    NG = Np // G
    WG = W * G

    # 2 groups per grid step when possible: halves per-step overhead while
    # keeping >= 2 steps so both v7x TensorCores get work.
    GPB = 2 if (NG % 2 == 0 and NG >= 4) else 1
    steps = NG // GPB
    # Partial unroll of the hidden-channel loop (2-4 channels per iteration).
    CH = 4 if F % 4 == 0 else (2 if F % 2 == 0 else 1)

    xs = x_slices.astype(jnp.float32)
    if Np != N:
        xs = jnp.pad(xs, ((0, Np - N), (0, 0), (0, 0)))
    # Halo pad (rows by 2: conv1 is evaluated on the row-extended hidden
    # extent; width by 1) and interleave G slices along the lane dim.
    # TODO(synk): if xprof shows these wrapper transposes rivalling the kernel,
    # fold the lane (un)interleave into the kernel via pltpu.einshape.
    xp = jnp.pad(xs, ((0, 0), (2, 2), (1, 1)))                  # (Np, H+4, W+2)
    xp = xp.reshape(NG, G, H + 4, W + 2)
    xp = jnp.transpose(xp, (0, 2, 3, 1)).reshape(NG, H + 4, (W + 2) * G)

    # Channel-major flat weight layouts (contiguous per-channel scalar reads).
    w1f = jnp.transpose(w1, (2, 0, 1)).reshape(-1).astype(jnp.float32)
    w2f = jnp.transpose(w2, (2, 0, 1, 3)).reshape(-1).astype(jnp.float32)

    kernel = functools.partial(_sr_group_kernel, H=H, W=W, G=G, F=F, U=U,
                               GPB=GPB, CH=CH)
    out = pl.pallas_call(
        kernel,
        out_shape=jax.ShapeDtypeStruct((NG, U, H, WG), jnp.float32),
        grid=(steps,),
        in_specs=[
            pl.BlockSpec(memory_space=pltpu.MemorySpace.SMEM),    # w1 (flat)
            pl.BlockSpec(memory_space=pltpu.MemorySpace.SMEM),    # b1 (flat)
            pl.BlockSpec(memory_space=pltpu.MemorySpace.SMEM),    # w2 (flat)
            pl.BlockSpec(memory_space=pltpu.MemorySpace.SMEM),    # b2 (flat)
            pl.BlockSpec((GPB, H + 4, (W + 2) * G), lambda n: (n, 0, 0)),
        ],
        out_specs=pl.BlockSpec((GPB, U, H, WG), lambda n: (n, 0, 0, 0)),
        compiler_params=pltpu.CompilerParams(
            dimension_semantics=("parallel",)),
    )(w1f,
      b1.reshape(-1).astype(jnp.float32),
      w2f,
      b2.reshape(-1).astype(jnp.float32),
      xp)

    # Un-interleave: out[gi, u, h, w*G + s] -> (N, H, W*U) with column w*U + u.
    out = out.reshape(NG, U, H, W, G)
    out = jnp.transpose(out, (0, 4, 2, 3, 1)).reshape(Np, H, W * U)
    return out[:N]


def parallel_model_forward(x, m_items, params, *, batch_size, upscale):
    """JAX equivalent of parallel_model.forward (returned value only).

    x       : (b, c, k, g)  (PyTorch NCHW-style volume)
    m_items : unused for the returned tensor (model2 branch is dead code)
    returns : (b, c, k, g*upscale - 2) float32  == middle_slice_sr_right
    """
    del m_items  # only consumed by the discarded model2 branch
    w1, b1, w2, b2 = params
    x = x.astype(jnp.float32)
    b, c, k, g = x.shape
    assert b == batch_size
    # NOTE: the PyTorch view(...) for the right branch implicitly requires c == k.
    assert c == k, "parallel_model's reshape assumes square c == k slices"

    # right branch: unsqueeze(1).permute(0,3,1,2,4).view(-1,1,c,g) -> (b*k, c, g)
    xr = jnp.transpose(x, (0, 2, 1, 3)).reshape(b * k, c, g)

    sr = model1_sr_pallas(xr, w1, b1, w2, b2)          # (b*k, c, g*upscale)
    sr = sr[:, :, :-2]                                  # [:, :, :, :-2]
    g1 = sr.shape[-1]

    # view(b, k, 1, k, g1).permute(0,2,1,3,4).squeeze(1).permute(0,2,1,3)
    sr = sr.reshape(b, k, c, g1)
    sr = jnp.transpose(sr, (0, 2, 1, 3))                # (b, c, k, g1)
    return sr


def _reference_model1(x_slices, w1, b1, w2, b2):
    """Plain-JAX reference for the synthesized model1 (NHWC convs)."""
    x = x_slices[..., None]                             # (N, H, W, 1)
    dn = ("NHWC", "HWIO", "NHWC")
    h = lax.conv_general_dilated(x, w1[:, :, None, :], (1, 1), "SAME",
                                 dimension_numbers=dn,
                                 precision=lax.Precision.HIGHEST)
    h = jnp.maximum(h + b1[None, None, None, :], 0.0)
    o = lax.conv_general_dilated(h, w2, (1, 1), "SAME",
                                 dimension_numbers=dn,
                                 precision=lax.Precision.HIGHEST)
    o = o + b2[None, None, None, :]
    N, H, W, U = o.shape
    return o.reshape(N, H, W * U)


if __name__ == "__main__":
    key = jax.random.PRNGKey(0)
    k_x, k_w1, k_b1, k_w2, k_b2, k_m = jax.random.split(key, 6)

    # args: batch_size=2, upscale=2 ; volume (b, c, k, g) with c == k
    b, c, k, g = 2, 16, 16, 16
    x = jax.random.normal(k_x, (b, c, k, g), jnp.float32)
    m_items = jax.random.normal(k_m, (10, 64), jnp.float32)   # unused (dead branch)

    # deterministic model1 parameters
    w1 = 0.1 * jax.random.normal(k_w1, (3, 3, HIDDEN), jnp.float32)       # cin=1 squeezed
    b1 = 0.1 * jax.random.normal(k_b1, (HIDDEN,), jnp.float32)
    w2 = 0.1 * jax.random.normal(k_w2, (3, 3, HIDDEN, UPSCALE), jnp.float32)
    b2 = 0.1 * jax.random.normal(k_b2, (UPSCALE,), jnp.float32)
    params = (w1, b1, w2, b2)

    fwd = jax.jit(functools.partial(parallel_model_forward,
                                    batch_size=b, upscale=UPSCALE))
    out = fwd(x, m_items, params)
    out = jax.block_until_ready(out)

    assert out.shape == (b, c, k, g * UPSCALE - 2), out.shape

    # correctness check of the Pallas SR path against a plain-JAX conv reference
    xr = jnp.transpose(x.astype(jnp.float32), (0, 2, 1, 3)).reshape(b * k, c, g)
    ref = _reference_model1(xr, w1, b1, w2, b2)[:, :, :-2]
    ref = jnp.transpose(ref.reshape(b, k, c, -1), (0, 2, 1, 3))
    assert jnp.allclose(out, ref, rtol=2e-2, atol=2e-2), \
        float(jnp.max(jnp.abs(out - ref)))

    print("KERNEL_OK")
</pallas_src>

<mosaic_0001>
module attributes {stable_mosaic.version = 11 : i64} {
  func.func @_sr_group_kernel(%arg0: i32, %arg1: memref<288xf32, #tpu.memory_space<smem>>, %arg2: memref<32xf32, #tpu.memory_space<smem>>, %arg3: memref<576xf32, #tpu.memory_space<smem>>, %arg4: memref<2xf32, #tpu.memory_space<smem>>, %arg5: memref<2x20x144xf32, #tpu.memory_space<vmem>>, %arg6: memref<2x2x16x128xf32, #tpu.memory_space<vmem>>) attributes {dimension_semantics = [#tpu.dimension_semantics<parallel>], iteration_bounds = array<i64: 2>, scalar_prefetch = 0 : i64, scratch_operands = 0 : i64, tpu.core_type = #tpu.core_type<tc>, window_params = [{transform_indices = @transform_0, window_bounds = array<i64: 288>}, {transform_indices = @transform_1, window_bounds = array<i64: 32>}, {transform_indices = @transform_2, window_bounds = array<i64: 576>}, {transform_indices = @transform_3, window_bounds = array<i64: 2>}, {transform_indices = @transform_4, window_bounds = array<i64: 2, 20, 144>}, {transform_indices = @transform_5, window_bounds = array<i64: 2, 2, 16, 128>}]} {
    %0 = tpu.iota {dimensions = array<i32: 0>} : vector<18x128xi32>
    %c1_i32 = arith.constant 1 : i32
    %1 = vector.broadcast %c1_i32 : i32 to vector<18x128xi32>
    %2 = arith.cmpi sge, %0, %1 : vector<18x128xi32>
    %c16_i32 = arith.constant 16 : i32
    %3 = vector.broadcast %c16_i32 : i32 to vector<18x128xi32>
    %4 = arith.cmpi sle, %0, %3 : vector<18x128xi32>
    %5 = arith.andi %2, %4 : vector<18x128xi1>
    %c0 = arith.constant 0 : index
    %c0_0 = arith.constant 0 : index
    %c0_1 = arith.constant 0 : index
    %6 = vector.load %arg5[%c0, %c0_0, %c0_1] : memref<2x20x144xf32, #tpu.memory_space<vmem>>, vector<1x20x144xf32>
    %7 = vector.shape_cast %6 : vector<1x20x144xf32> to vector<20x144xf32>
    %cst = arith.constant 0.000000e+00 : f32
    %8 = vector.broadcast %cst : f32 to vector<16x128xf32>
    %c0_i32 = arith.constant 0 : i32
    %c8_i32 = arith.constant 8 : i32
    %9 = arith.addi %c0_i32, %c8_i32 : i32
    %c1_i32_2 = arith.constant 1 : i32
    %10:6 = scf.for %arg7 = %c0_i32 to %9 step %c1_i32_2 iter_args(%arg8 = %8, %arg9 = %8, %arg10 = %8, %arg11 = %8, %arg12 = %8, %arg13 = %8) -> (vector<16x128xf32>, vector<16x128xf32>, vector<16x128xf32>, vector<16x128xf32>, vector<16x128xf32>, vector<16x128xf32>)  : i32 {
      %82 = vector.extract_strided_slice %7 {offsets = [0, 0], sizes = [18, 128], strides = [1, 1]} : vector<20x144xf32> to vector<18x128xf32>
      %83 = vector.extract_strided_slice %7 {offsets = [0, 8], sizes = [18, 128], strides = [1, 1]} : vector<20x144xf32> to vector<18x128xf32>
      %84 = vector.extract_strided_slice %7 {offsets = [0, 16], sizes = [18, 128], strides = [1, 1]} : vector<20x144xf32> to vector<18x128xf32>
      %85 = vector.extract_strided_slice %7 {offsets = [1, 0], sizes = [18, 128], strides = [1, 1]} : vector<20x144xf32> to vector<18x128xf32>
      %86 = vector.extract_strided_slice %7 {offsets = [1, 8], sizes = [18, 128], strides = [1, 1]} : vector<20x144xf32> to vector<18x128xf32>
      %87 = vector.extract_strided_slice %7 {offsets = [1, 16], sizes = [18, 128], strides = [1, 1]} : vector<20x144xf32> to vector<18x128xf32>
      %88 = vector.extract_strided_slice %7 {offsets = [2, 0], sizes = [18, 128], strides = [1, 1]} : vector<20x144xf32> to vector<18x128xf32>
      %89 = vector.extract_strided_slice %7 {offsets = [2, 8], sizes = [18, 128], strides = [1, 1]} : vector<20x144xf32> to vector<18x128xf32>
      %90 = vector.extract_strided_slice %7 {offsets = [2, 16], sizes = [18, 128], strides = [1, 1]} : vector<20x144xf32> to vector<18x128xf32>
      %c4_i32 = arith.constant 4 : i32
      %91 = arith.muli %arg7, %c4_i32 : i32
      %c0_i32_50 = arith.constant 0 : i32
      %92 = arith.addi %91, %c0_i32_50 : i32
      %c9_i32 = arith.constant 9 : i32
      %93 = arith.muli %92, %c9_i32 : i32
      %94 = arith.index_cast %93 : i32 to index
      %95 = memref.load %arg1[%94] : memref<288xf32, #tpu.memory_space<smem>>
      %96 = vector.broadcast %95 : f32 to vector<18x128xf32>
      %97 = arith.mulf %96, %82 : vector<18x128xf32>
      %c1_i32_51 = arith.constant 1 : i32
      %98 = arith.addi %93, %c1_i32_51 : i32
      %99 = arith.index_cast %98 : i32 to index
      %100 = memref.load %arg1[%99] : memref<288xf32, #tpu.memory_space<smem>>
      %101 = vector.broadcast %100 : f32 to vector<18x128xf32>
      %102 = arith.mulf %101, %83 : vector<18x128xf32>
      %103 = arith.addf %97, %102 : vector<18x128xf32>
      %c2_i32 = arith.constant 2 : i32
      %104 = arith.addi %93, %c2_i32 : i32
      %105 = arith.index_cast %104 : i32 to index
      %106 = memref.load %arg1[%105] : memref<288xf32, #tpu.memory_space<smem>>
      %107 = vector.broadcast %106 : f32 to vector<18x128xf32>
      %108 = arith.mulf %107, %84 : vector<18x128xf32>
      %109 = arith.addf %103, %108 : vector<18x128xf32>
      %c3_i32 = arith.constant 3 : i32
      %110 = arith.addi %93, %c3_i32 : i32
      %111 = arith.index_cast %110 : i32 to index
      %112 = memref.load %arg1[%111] : memref<288xf32, #tpu.memory_space<smem>>
      %113 = vector.broadcast %112 : f32 to vector<18x128xf32>
      %114 = arith.mulf %113, %85 : vector<18x128xf32>
      %115 = arith.addf %109, %114 : vector<18x128xf32>
      %c4_i32_52 = arith.constant 4 : i32
      %116 = arith.addi %93, %c4_i32_52 : i32
      %117 = arith.index_cast %116 : i32 to index
      %118 = memref.load %arg1[%117] : memref<288xf32, #tpu.memory_space<smem>>
      %119 = vector.broadcast %118 : f32 to vector<18x128xf32>
      %120 = arith.mulf %119, %86 : vector<18x128xf32>
      %121 = arith.addf %115, %120 : vector<18x128xf32>
      %c5_i32 = arith.constant 5 : i32
      %122 = arith.addi %93, %c5_i32 : i32
      %123 = arith.index_cast %122 : i32 to index
      %124 = memref.load %arg1[%123] : memref<288xf32, #tpu.memory_space<smem>>
      %125 = vector.broadcast %124 : f32 to vector<18x128xf32>
      %126 = arith.mulf %125, %87 : vector<18x128xf32>
      %127 = arith.addf %121, %126 : vector<18x128xf32>
      %c6_i32 = arith.constant 6 : i32
      %128 = arith.addi %93, %c6_i32 : i32
      %129 = arith.index_cast %128 : i32 to index
      %130 = memref.load %arg1[%129] : memref<288xf32, #tpu.memory_space<smem>>
      %131 = vector.broadcast %130 : f32 to vector<18x128xf32>
      %132 = arith.mulf %131, %88 : vector<18x128xf32>
      %133 = arith.addf %127, %132 : vector<18x128xf32>
      %c7_i32 = arith.constant 7 : i32
      %134 = arith.addi %93, %c7_i32 : i32
      %135 = arith.index_cast %134 : i32 to index
      %136 = memref.load %arg1[%135] : memref<288xf32, #tpu.memory_space<smem>>
      %137 = vector.broadcast %136 : f32 to vector<18x128xf32>
      %138 = arith.mulf %137, %89 : vector<18x128xf32>
      %139 = arith.addf %133, %138 : vector<18x128xf32>
      %c8_i32_53 = arith.constant 8 : i32
      %140 = arith.addi %93, %c8_i32_53 : i32
      %141 = arith.index_cast %140 : i32 to index
      %142 = memref.load %arg1[%141] : memref<288xf32, #tpu.memory_space<smem>>
      %143 = vector.broadcast %142 : f32 to vector<18x128xf32>
      %144 = arith.mulf %143, %90 : vector<18x128xf32>
      %145 = arith.addf %139, %144 : vector<18x128xf32>
      %146 = arith.index_cast %92 : i32 to index
      %147 = memref.load %arg2[%146] : memref<32xf32, #tpu.memory_space<smem>>
      %148 = vector.broadcast %147 : f32 to vector<18x128xf32>
      %149 = arith.addf %145, %148 : vector<18x128xf32>
      %cst_54 = arith.constant 0.000000e+00 : f32
      %150 = vector.broadcast %cst_54 : f32 to vector<18x128xf32>
      %151 = arith.maximumf %149, %150 : vector<18x128xf32>
      %cst_55 = arith.constant 0.000000e+00 : f32
      %152 = vector.broadcast %cst_55 : f32 to vector<18x128xf32>
      %153 = arith.select %5, %151, %152 : vector<18x128xi1>, vector<18x128xf32>
      %c9_i32_56 = arith.constant 9 : i32
      %154 = arith.muli %92, %c9_i32_56 : i32
      %c2_i32_57 = arith.constant 2 : i32
      %155 = arith.muli %154, %c2_i32_57 : i32
      %156 = vector.extract_strided_slice %153 {offsets = [0, 0], sizes = [16, 128], strides = [1, 1]} : vector<18x128xf32> to vector<16x128xf32>
      %c0_i32_58 = arith.constant 0 : i32
      %157 = arith.addi %155, %c0_i32_58 : i32
      %c0_i32_59 = arith.constant 0 : i32
      %158 = arith.addi %157, %c0_i32_59 : i32
      %159 = arith.index_cast %158 : i32 to index
      %160 = memref.load %arg3[%159] : memref<576xf32, #tpu.memory_space<smem>>
      %161 = vector.broadcast %160 : f32 to vector<16x128xf32>
      %162 = arith.mulf %161, %156 : vector<16x128xf32>
      %163 = arith.addf %arg8, %162 : vector<16x128xf32>
      %c1_i32_60 = arith.constant 1 : i32
      %164 = arith.addi %157, %c1_i32_60 : i32
      %165 = arith.index_cast %164 : i32 to index
      %166 = memref.load %arg3[%165] : memref<576xf32, #tpu.memory_space<smem>>
      %167 = vector.broadcast %166 : f32 to vector<16x128xf32>
      %168 = arith.mulf %167, %156 : vector<16x128xf32>
      %169 = arith.addf %arg9, %168 : vector<16x128xf32>
      %c2_i32_61 = arith.constant 2 : i32
      %170 = arith.addi %155, %c2_i32_61 : i32
      %c0_i32_62 = arith.constant 0 : i32
      %171 = arith.addi %170, %c0_i32_62 : i32
      %172 = arith.index_cast %171 : i32 to index
      %173 = memref.load %arg3[%172] : memref<576xf32, #tpu.memory_space<smem>>
      %174 = vector.broadcast %173 : f32 to vector<16x128xf32>
      %175 = arith.mulf %174, %156 : vector<16x128xf32>
      %176 = arith.addf %arg10, %175 : vector<16x128xf32>
      %c1_i32_63 = arith.constant 1 : i32
      %177 = arith.addi %170, %c1_i32_63 : i32
      %178 = arith.index_cast %177 : i32 to index
      %179 = memref.load %arg3[%178] : memref<576xf32, #tpu.memory_space<smem>>
      %180 = vector.broadcast %179 : f32 to vector<16x128xf32>
      %181 = arith.mulf %180, %156 : vector<16x128xf32>
      %182 = arith.addf %arg11, %181 : vector<16x128xf32>
      %c4_i32_64 = arith.constant 4 : i32
      %183 = arith.addi %155, %c4_i32_64 : i32
      %c0_i32_65 = arith.constant 0 : i32
      %184 = arith.addi %183, %c0_i32_65 : i32
      %185 = arith.index_cast %184 : i32 to index
      %186 = memref.load %arg3[%185] : memref<576xf32, #tpu.memory_space<smem>>
      %187 = vector.broadcast %186 : f32 to vector<16x128xf32>
      %188 = arith.mulf %187, %156 : vector<16x128xf32>
      %189 = arith.addf %arg12, %188 : vector<16x128xf32>
      %c1_i32_66 = arith.constant 1 : i32
      %190 = arith.addi %183, %c1_i32_66 : i32
      %191 = arith.index_cast %190 : i32 to index
      %192 = memref.load %arg3[%191] : memref<576xf32, #tpu.memory_space<smem>>
      %193 = vector.broadcast %192 : f32 to vector<16x128xf32>
      %194 = arith.mulf %193, %156 : vector<16x128xf32>
      %195 = arith.addf %arg13, %194 : vector<16x128xf32>
      %196 = vector.extract_strided_slice %153 {offsets = [1, 0], sizes = [16, 128], strides = [1, 1]} : vector<18x128xf32> to vector<16x128xf32>
      %c6_i32_67 = arith.constant 6 : i32
      %197 = arith.addi %155, %c6_i32_67 : i32
      %c0_i32_68 = arith.constant 0 : i32
      %198 = arith.addi %197, %c0_i32_68 : i32
      %199 = arith.index_cast %198 : i32 to index
      %200 = memref.load %arg3[%199] : memref<576xf32, #tpu.memory_space<smem>>
      %201 = vector.broadcast %200 : f32 to vector<16x128xf32>
      %202 = arith.mulf %201, %196 : vector<16x128xf32>
      %203 = arith.addf %163, %202 : vector<16x128xf32>
      %c1_i32_69 = arith.constant 1 : i32
      %204 = arith.addi %197, %c1_i32_69 : i32
      %205 = arith.index_cast %204 : i32 to index
      %206 = memref.load %arg3[%205] : memref<576xf32, #tpu.memory_space<smem>>
      %207 = vector.broadcast %206 : f32 to vector<16x128xf32>
      %208 = arith.mulf %207, %196 : vector<16x128xf32>
      %209 = arith.addf %169, %208 : vector<16x128xf32>
      %c8_i32_70 = arith.constant 8 : i32
      %210 = arith.addi %155, %c8_i32_70 : i32
      %c0_i32_71 = arith.constant 0 : i32
      %211 = arith.addi %210, %c0_i32_71 : i32
      %212 = arith.index_cast %211 : i32 to index
      %213 = memref.load %arg3[%212] : memref<576xf32, #tpu.memory_space<smem>>
      %214 = vector.broadcast %213 : f32 to vector<16x128xf32>
      %215 = arith.mulf %214, %196 : vector<16x128xf32>
      %216 = arith.addf %176, %215 : vector<16x128xf32>
      %c1_i32_72 = arith.constant 1 : i32
      %217 = arith.addi %210, %c1_i32_72 : i32
      %218 = arith.index_cast %217 : i32 to index
      %219 = memref.load %arg3[%218] : memref<576xf32, #tpu.memory_space<smem>>
      %220 = vector.broadcast %219 : f32 to vector<16x128xf32>
      %221 = arith.mulf %220, %196 : vector<16x128xf32>
      %222 = arith.addf %182, %221 : vector<16x128xf32>
      %c10_i32 = arith.constant 10 : i32
      %223 = arith.addi %155, %c10_i32 : i32
      %c0_i32_73 = arith.constant 0 : i32
      %224 = arith.addi %223, %c0_i32_73 : i32
      %225 = arith.index_cast %224 : i32 to index
      %226 = memref.load %arg3[%225] : memref<576xf32, #tpu.memory_space<smem>>
      %227 = vector.broadcast %226 : f32 to vector<16x128xf32>
      %228 = arith.mulf %227, %196 : vector<16x128xf32>
      %229 = arith.addf %189, %228 : vector<16x128xf32>
      %c1_i32_74 = arith.constant 1 : i32
      %230 = arith.addi %223, %c1_i32_74 : i32
      %231 = arith.index_cast %230 : i32 to index
      %232 = memref.load %arg3[%231] : memref<576xf32, #tpu.memory_space<smem>>
      %233 = vector.broadcast %232 : f32 to vector<16x128xf32>
      %234 = arith.mulf %233, %196 : vector<16x128xf32>
      %235 = arith.addf %195, %234 : vector<16x128xf32>
      %236 = vector.extract_strided_slice %153 {offsets = [2, 0], sizes = [16, 128], strides = [1, 1]} : vector<18x128xf32> to vector<16x128xf32>
      %c12_i32 = arith.constant 12 : i32
      %237 = arith.addi %155, %c12_i32 : i32
      %c0_i32_75 = arith.constant 0 : i32
      %238 = arith.addi %237, %c0_i32_75 : i32
      %239 = arith.index_cast %238 : i32 to index
      %240 = memref.load %arg3[%239] : memref<576xf32, #tpu.memory_space<smem>>
      %241 = vector.broadcast %240 : f32 to vector<16x128xf32>
      %242 = arith.mulf %241, %236 : vector<16x128xf32>
      %243 = arith.addf %203, %242 : vector<16x128xf32>
      %c1_i32_76 = arith.constant 1 : i32
      %244 = arith.addi %237, %c1_i32_76 : i32
      %245 = arith.index_cast %244 : i32 to index
      %246 = memref.load %arg3[%245] : memref<576xf32, #tpu.memory_space<smem>>
      %247 = vector.broadcast %246 : f32 to vector<16x128xf32>
      %248 = arith.mulf %247, %236 : vector<16x128xf32>
      %249 = arith.addf %209, %248 : vector<16x128xf32>
      %c14_i32 = arith.constant 14 : i32
      %250 = arith.addi %155, %c14_i32 : i32
      %c0_i32_77 = arith.constant 0 : i32
      %251 = arith.addi %250, %c0_i32_77 : i32
      %252 = arith.index_cast %251 : i32 to index
      %253 = memref.load %arg3[%252] : memref<576xf32, #tpu.memory_space<smem>>
      %254 = vector.broadcast %253 : f32 to vector<16x128xf32>
      %255 = arith.mulf %254, %236 : vector<16x128xf32>
      %256 = arith.addf %216, %255 : vector<16x128xf32>
      %c1_i32_78 = arith.constant 1 : i32
      %257 = arith.addi %250, %c1_i32_78 : i32
      %258 = arith.index_cast %257 : i32 to index
      %259 = memref.load %arg3[%258] : memref<576xf32, #tpu.memory_space<smem>>
      %260 = vector.broadcast %259 : f32 to vector<16x128xf32>
      %261 = arith.mulf %260, %236 : vector<16x128xf32>
      %262 = arith.addf %222, %261 : vector<16x128xf32>
      %c16_i32_79 = arith.constant 16 : i32
      %263 = arith.addi %155, %c16_i32_79 : i32
      %c0_i32_80 = arith.constant 0 : i32
      %264 = arith.addi %263, %c0_i32_80 : i32
      %265 = arith.index_cast %264 : i32 to index
      %266 = memref.load %arg3[%265] : memref<576xf32, #tpu.memory_space<smem>>
      %267 = vector.broadcast %266 : f32 to vector<16x128xf32>
      %268 = arith.mulf %267, %236 : vector<16x128xf32>
      %269 = arith.addf %229, %268 : vector<16x128xf32>
      %c1_i32_81 = arith.constant 1 : i32
      %270 = arith.addi %263, %c1_i32_81 : i32
      %271 = arith.index_cast %270 : i32 to index
      %272 = memref.load %arg3[%271] : memref<576xf32, #tpu.memory_space<smem>>
      %273 = vector.broadcast %272 : f32 to vector<16x128xf32>
      %274 = arith.mulf %273, %236 : vector<16x128xf32>
      %275 = arith.addf %235, %274 : vector<16x128xf32>
      %c4_i32_82 = arith.constant 4 : i32
      %276 = arith.muli %arg7, %c4_i32_82 : i32
      %c1_i32_83 = arith.constant 1 : i32
      %277 = arith.addi %276, %c1_i32_83 : i32
      %c9_i32_84 = arith.constant 9 : i32
      %278 = arith.muli %277, %c9_i32_84 : i32
      %279 = arith.index_cast %278 : i32 to index
      %280 = memref.load %arg1[%279] : memref<288xf32, #tpu.memory_space<smem>>
      %281 = vector.broadcast %280 : f32 to vector<18x128xf32>
      %282 = arith.mulf %281, %82 : vector<18x128xf32>
      %c1_i32_85 = arith.constant 1 : i32
      %283 = arith.addi %278, %c1_i32_85 : i32
      %284 = arith.index_cast %283 : i32 to index
      %285 = memref.load %arg1[%284] : memref<288xf32, #tpu.memory_space<smem>>
      %286 = vector.broadcast %285 : f32 to vector<18x128xf32>
      %287 = arith.mulf %286, %83 : vector<18x128xf32>
      %288 = arith.addf %282, %287 : vector<18x128xf32>
      %c2_i32_86 = arith.constant 2 : i32
      %289 = arith.addi %278, %c2_i32_86 : i32
      %290 = arith.index_cast %289 : i32 to index
      %291 = memref.load %arg1[%290] : memref<288xf32, #tpu.memory_space<smem>>
      %292 = vector.broadcast %291 : f32 to vector<18x128xf32>
      %293 = arith.mulf %292, %84 : vector<18x128xf32>
      %294 = arith.addf %288, %293 : vector<18x128xf32>
      %c3_i32_87 = arith.constant 3 : i32
      %295 = arith.addi %278, %c3_i32_87 : i32
      %296 = arith.index_cast %295 : i32 to index
      %297 = memref.load %arg1[%296] : memref<288xf32, #tpu.memory_space<smem>>
      %298 = vector.broadcast %297 : f32 to vector<18x128xf32>
      %299 = arith.mulf %298, %85 : vector<18x128xf32>
      %300 = arith.addf %294, %299 : vector<18x128xf32>
      %c4_i32_88 = arith.constant 4 : i32
      %301 = arith.addi %278, %c4_i32_88 : i32
      %302 = arith.index_cast %301 : i32 to index
      %303 = memref.load %arg1[%302] : memref<288xf32, #tpu.memory_space<smem>>
      %304 = vector.broadcast %303 : f32 to vector<18x128xf32>
      %305 = arith.mulf %304, %86 : vector<18x128xf32>
      %306 = arith.addf %300, %305 : vector<18x128xf32>
      %c5_i32_89 = arith.constant 5 : i32
      %307 = arith.addi %278, %c5_i32_89 : i32
      %308 = arith.index_cast %307 : i32 to index
      %309 = memref.load %arg1[%308] : memref<288xf32, #tpu.memory_space<smem>>
      %310 = vector.broadcast %309 : f32 to vector<18x128xf32>
      %311 = arith.mulf %310, %87 : vector<18x128xf32>
      %312 = arith.addf %306, %311 : vector<18x128xf32>
      %c6_i32_90 = arith.constant 6 : i32
      %313 = arith.addi %278, %c6_i32_90 : i32
      %314 = arith.index_cast %313 : i32 to index
      %315 = memref.load %arg1[%314] : memref<288xf32, #tpu.memory_space<smem>>
      %316 = vector.broadcast %315 : f32 to vector<18x128xf32>
      %317 = arith.mulf %316, %88 : vector<18x128xf32>
      %318 = arith.addf %312, %317 : vector<18x128xf32>
      %c7_i32_91 = arith.constant 7 : i32
      %319 = arith.addi %278, %c7_i32_91 : i32
      %320 = arith.index_cast %319 : i32 to index
      %321 = memref.load %arg1[%320] : memref<288xf32, #tpu.memory_space<smem>>
      %322 = vector.broadcast %321 : f32 to vector<18x128xf32>
      %323 = arith.mulf %322, %89 : vector<18x128xf32>
      %324 = arith.addf %318, %323 : vector<18x128xf32>
      %c8_i32_92 = arith.constant 8 : i32
      %325 = arith.addi %278, %c8_i32_92 : i32
      %326 = arith.index_cast %325 : i32 to index
      %327 = memref.load %arg1[%326] : memref<288xf32, #tpu.memory_space<smem>>
      %328 = vector.broadcast %327 : f32 to vector<18x128xf32>
      %329 = arith.mulf %328, %90 : vector<18x128xf32>
      %330 = arith.addf %324, %329 : vector<18x128xf32>
      %331 = arith.index_cast %277 : i32 to index
      %332 = memref.load %arg2[%331] : memref<32xf32, #tpu.memory_space<smem>>
      %333 = vector.broadcast %332 : f32 to vector<18x128xf32>
      %334 = arith.addf %330, %333 : vector<18x128xf32>
      %cst_93 = arith.constant 0.000000e+00 : f32
      %335 = vector.broadcast %cst_93 : f32 to vector<18x128xf32>
      %336 = arith.maximumf %334, %335 : vector<18x128xf32>
      %cst_94 = arith.constant 0.000000e+00 : f32
      %337 = vector.broadcast %cst_94 : f32 to vector<18x128xf32>
      %338 = arith.select %5, %336, %337 : vector<18x128xi1>, vector<18x128xf32>
      %c9_i32_95 = arith.constant 9 : i32
      %339 = arith.muli %277, %c9_i32_95 : i32
      %c2_i32_96 = arith.constant 2 : i32
      %340 = arith.muli %339, %c2_i32_96 : i32
      %341 = vector.extract_strided_slice %338 {offsets = [0, 0], sizes = [16, 128], strides = [1, 1]} : vector<18x128xf32> to vector<16x128xf32>
      %c0_i32_97 = arith.constant 0 : i32
      %342 = arith.addi %340, %c0_i32_97 : i32
      %c0_i32_98 = arith.constant 0 : i32
      %343 = arith.addi %342, %c0_i32_98 : i32
      %344 = arith.index_cast %343 : i32 to index
      %345 = memref.load %arg3[%344] : memref<576xf32, #tpu.memory_space<smem>>
      %346 = vector.broadcast %345 : f32 to vector<16x128xf32>
      %347 = arith.mulf %346, %341 : vector<16x128xf32>
      %348 = arith.addf %243, %347 : vector<16x128xf32>
      %c1_i32_99 = arith.constant 1 : i32
      %349 = arith.addi %342, %c1_i32_99 : i32
      %350 = arith.index_cast %349 : i32 to index
      %351 = memref.load %arg3[%350] : memref<576xf32, #tpu.memory_space<smem>>
      %352 = vector.broadcast %351 : f32 to vector<16x128xf32>
      %353 = arith.mulf %352, %341 : vector<16x128xf32>
      %354 = arith.addf %249, %353 : vector<16x128xf32>
      %c2_i32_100 = arith.constant 2 : i32
      %355 = arith.addi %340, %c2_i32_100 : i32
      %c0_i32_101 = arith.constant 0 : i32
      %356 = arith.addi %355, %c0_i32_101 : i32
      %357 = arith.index_cast %356 : i32 to index
      %358 = memref.load %arg3[%357] : memref<576xf32, #tpu.memory_space<smem>>
      %359 = vector.broadcast %358 : f32 to vector<16x128xf32>
      %360 = arith.mulf %359, %341 : vector<16x128xf32>
      %361 = arith.addf %256, %360 : vector<16x128xf32>
      %c1_i32_102 = arith.constant 1 : i32
      %362 = arith.addi %355, %c1_i32_102 : i32
      %363 = arith.index_cast %362 : i32 to index
      %364 = memref.load %arg3[%363] : memref<576xf32, #tpu.memory_space<smem>>
      %365 = vector.broadcast %364 : f32 to vector<16x128xf32>
      %366 = arith.mulf %365, %341 : vector<16x128xf32>
      %367 = arith.addf %262, %366 : vector<16x128xf32>
      %c4_i32_103 = arith.constant 4 : i32
      %368 = arith.addi %340, %c4_i32_103 : i32
      %c0_i32_104 = arith.constant 0 : i32
      %369 = arith.addi %368, %c0_i32_104 : i32
      %370 = arith.index_cast %369 : i32 to index
      %371 = memref.load %arg3[%370] : memref<576xf32, #tpu.memory_space<smem>>
      %372 = vector.broadcast %371 : f32 to vector<16x128xf32>
      %373 = arith.mulf %372, %341 : vector<16x128xf32>
      %374 = arith.addf %269, %373 : vector<16x128xf32>
      %c1_i32_105 = arith.constant 1 : i32
      %375 = arith.addi %368, %c1_i32_105 : i32
      %376 = arith.index_cast %375 : i32 to index
      %377 = memref.load %arg3[%376] : memref<576xf32, #tpu.memory_space<smem>>
      %378 = vector.broadcast %377 : f32 to vector<16x128xf32>
      %379 = arith.mulf %378, %341 : vector<16x128xf32>
      %380 = arith.addf %275, %379 : vector<16x128xf32>
      %381 = vector.extract_strided_slice %338 {offsets = [1, 0], sizes = [16, 128], strides = [1, 1]} : vector<18x128xf32> to vector<16x128xf32>
      %c6_i32_106 = arith.constant 6 : i32
      %382 = arith.addi %340, %c6_i32_106 : i32
      %c0_i32_107 = arith.constant 0 : i32
      %383 = arith.addi %382, %c0_i32_107 : i32
      %384 = arith.index_cast %383 : i32 to index
      %385 = memref.load %arg3[%384] : memref<576xf32, #tpu.memory_space<smem>>
      %386 = vector.broadcast %385 : f32 to vector<16x128xf32>
      %387 = arith.mulf %386, %381 : vector<16x128xf32>
      %388 = arith.addf %348, %387 : vector<16x128xf32>
      %c1_i32_108 = arith.constant 1 : i32
      %389 = arith.addi %382, %c1_i32_108 : i32
      %390 = arith.index_cast %389 : i32 to index
      %391 = memref.load %arg3[%390] : memref<576xf32, #tpu.memory_space<smem>>
      %392 = vector.broadcast %391 : f32 to vector<16x128xf32>
      %393 = arith.mulf %392, %381 : vector<16x128xf32>
      %394 = arith.addf %354, %393 : vector<16x128xf32>
      %c8_i32_109 = arith.constant 8 : i32
      %395 = arith.addi %340, %c8_i32_109 : i32
      %c0_i32_110 = arith.constant 0 : i32
      %396 = arith.addi %395, %c0_i32_110 : i32
      %397 = arith.index_cast %396 : i32 to index
      %398 = memref.load %arg3[%397] : memref<576xf32, #tpu.memory_space<smem>>
      %399 = vector.broadcast %398 : f32 to vector<16x128xf32>
      %400 = arith.mulf %399, %381 : vector<16x128xf32>
      %401 = arith.addf %361, %400 : vector<16x128xf32>
      %c1_i32_111 = arith.constant 1 : i32
      %402 = arith.addi %395, %c1_i32_111 : i32
      %403 = arith.index_cast %402 : i32 to index
      %404 = memref.load %arg3[%403] : memref<576xf32, #tpu.memory_space<smem>>
      %405 = vector.broadcast %404 : f32 to vector<16x128xf32>
      %406 = arith.mulf %405, %381 : vector<16x128xf32>
      %407 = arith.addf %367, %406 : vector<16x128xf32>
      %c10_i32_112 = arith.constant 10 : i32
      %408 = arith.addi %340, %c10_i32_112 : i32
      %c0_i32_113 = arith.constant 0 : i32
      %409 = arith.addi %408, %c0_i32_113 : i32
      %410 = arith.index_cast %409 : i32 to index
      %411 = memref.load %arg3[%410] : memref<576xf32, #tpu.memory_space<smem>>
      %412 = vector.broadcast %411 : f32 to vector<16x128xf32>
      %413 = arith.mulf %412, %381 : vector<16x128xf32>
      %414 = arith.addf %374, %413 : vector<16x128xf32>
      %c1_i32_114 = arith.constant 1 : i32
      %415 = arith.addi %408, %c1_i32_114 : i32
      %416 = arith.index_cast %415 : i32 to index
      %417 = memref.load %arg3[%416] : memref<576xf32, #tpu.memory_space<smem>>
      %418 = vector.broadcast %417 : f32 to vector<16x128xf32>
      %419 = arith.mulf %418, %381 : vector<16x128xf32>
      %420 = arith.addf %380, %419 : vector<16x128xf32>
      %421 = vector.extract_strided_slice %338 {offsets = [2, 0], sizes = [16, 128], strides = [1, 1]} : vector<18x128xf32> to vector<16x128xf32>
      %c12_i32_115 = arith.constant 12 : i32
      %422 = arith.addi %340, %c12_i32_115 : i32
      %c0_i32_116 = arith.constant 0 : i32
      %423 = arith.addi %422, %c0_i32_116 : i32
      %424 = arith.index_cast %423 : i32 to index
      %425 = memref.load %arg3[%424] : memref<576xf32, #tpu.memory_space<smem>>
      %426 = vector.broadcast %425 : f32 to vector<16x128xf32>
      %427 = arith.mulf %426, %421 : vector<16x128xf32>
      %428 = arith.addf %388, %427 : vector<16x128xf32>
      %c1_i32_117 = arith.constant 1 : i32
      %429 = arith.addi %422, %c1_i32_117 : i32
      %430 = arith.index_cast %429 : i32 to index
      %431 = memref.load %arg3[%430] : memref<576xf32, #tpu.memory_space<smem>>
      %432 = vector.broadcast %431 : f32 to vector<16x128xf32>
      %433 = arith.mulf %432, %421 : vector<16x128xf32>
      %434 = arith.addf %394, %433 : vector<16x128xf32>
      %c14_i32_118 = arith.constant 14 : i32
      %435 = arith.addi %340, %c14_i32_118 : i32
      %c0_i32_119 = arith.constant 0 : i32
      %436 = arith.addi %435, %c0_i32_119 : i32
      %437 = arith.index_cast %436 : i32 to index
      %438 = memref.load %arg3[%437] : memref<576xf32, #tpu.memory_space<smem>>
      %439 = vector.broadcast %438 : f32 to vector<16x128xf32>
      %440 = arith.mulf %439, %421 : vector<16x128xf32>
      %441 = arith.addf %401, %440 : vector<16x128xf32>
      %c1_i32_120 = arith.constant 1 : i32
      %442 = arith.addi %435, %c1_i32_120 : i32
      %443 = arith.index_cast %442 : i32 to index
      %444 = memref.load %arg3[%443] : memref<576xf32, #tpu.memory_space<smem>>
      %445 = vector.broadcast %444 : f32 to vector<16x128xf32>
      %446 = arith.mulf %445, %421 : vector<16x128xf32>
      %447 = arith.addf %407, %446 : vector<16x128xf32>
      %c16_i32_121 = arith.constant 16 : i32
      %448 = arith.addi %340, %c16_i32_121 : i32
      %c0_i32_122 = arith.constant 0 : i32
      %449 = arith.addi %448, %c0_i32_122 : i32
      %450 = arith.index_cast %449 : i32 to index
      %451 = memref.load %arg3[%450] : memref<576xf32, #tpu.memory_space<smem>>
      %452 = vector.broadcast %451 : f32 to vector<16x128xf32>
      %453 = arith.mulf %452, %421 : vector<16x128xf32>
      %454 = arith.addf %414, %453 : vector<16x128xf32>
      %c1_i32_123 = arith.constant 1 : i32
      %455 = arith.addi %448, %c1_i32_123 : i32
      %456 = arith.index_cast %455 : i32 to index
      %457 = memref.load %arg3[%456] : memref<576xf32, #tpu.memory_space<smem>>
      %458 = vector.broadcast %457 : f32 to vector<16x128xf32>
      %459 = arith.mulf %458, %421 : vector<16x128xf32>
      %460 = arith.addf %420, %459 : vector<16x128xf32>
      %c4_i32_124 = arith.constant 4 : i32
      %461 = arith.muli %arg7, %c4_i32_124 : i32
      %c2_i32_125 = arith.constant 2 : i32
      %462 = arith.addi %461, %c2_i32_125 : i32
      %c9_i32_126 = arith.constant 9 : i32
      %463 = arith.muli %462, %c9_i32_126 : i32
      %464 = arith.index_cast %463 : i32 to index
      %465 = memref.load %arg1[%464] : memref<288xf32, #tpu.memory_space<smem>>
      %466 = vector.broadcast %465 : f32 to vector<18x128xf32>
      %467 = arith.mulf %466, %82 : vector<18x128xf32>
      %c1_i32_127 = arith.constant 1 : i32
      %468 = arith.addi %463, %c1_i32_127 : i32
      %469 = arith.index_cast %468 : i32 to index
      %470 = memref.load %arg1[%469] : memref<288xf32, #tpu.memory_space<smem>>
      %471 = vector.broadcast %470 : f32 to vector<18x128xf32>
      %472 = arith.mulf %471, %83 : vector<18x128xf32>
      %473 = arith.addf %467, %472 : vector<18x128xf32>
      %c2_i32_128 = arith.constant 2 : i32
      %474 = arith.addi %463, %c2_i32_128 : i32
      %475 = arith.index_cast %474 : i32 to index
      %476 = memref.load %arg1[%475] : memref<288xf32, #tpu.memory_space<smem>>
      %477 = vector.broadcast %476 : f32 to vector<18x128xf32>
      %478 = arith.mulf %477, %84 : vector<18x128xf32>
      %479 = arith.addf %473, %478 : vector<18x128xf32>
      %c3_i32_129 = arith.constant 3 : i32
      %480 = arith.addi %463, %c3_i32_129 : i32
      %481 = arith.index_cast %480 : i32 to index
      %482 = memref.load %arg1[%481] : memref<288xf32, #tpu.memory_space<smem>>
      %483 = vector.broadcast %482 : f32 to vector<18x128xf32>
      %484 = arith.mulf %483, %85 : vector<18x128xf32>
      %485 = arith.addf %479, %484 : vector<18x128xf32>
      %c4_i32_130 = arith.constant 4 : i32
      %486 = arith.addi %463, %c4_i32_130 : i32
      %487 = arith.index_cast %486 : i32 to index
      %488 = memref.load %arg1[%487] : memref<288xf32, #tpu.memory_space<smem>>
      %489 = vector.broadcast %488 : f32 to vector<18x128xf32>
      %490 = arith.mulf %489, %86 : vector<18x128xf32>
      %491 = arith.addf %485, %490 : vector<18x128xf32>
      %c5_i32_131 = arith.constant 5 : i32
      %492 = arith.addi %463, %c5_i32_131 : i32
      %493 = arith.index_cast %492 : i32 to index
      %494 = memref.load %arg1[%493] : memref<288xf32, #tpu.memory_space<smem>>
      %495 = vector.broadcast %494 : f32 to vector<18x128xf32>
      %496 = arith.mulf %495, %87 : vector<18x128xf32>
      %497 = arith.addf %491, %496 : vector<18x128xf32>
      %c6_i32_132 = arith.constant 6 : i32
      %498 = arith.addi %463, %c6_i32_132 : i32
      %499 = arith.index_cast %498 : i32 to index
      %500 = memref.load %arg1[%499] : memref<288xf32, #tpu.memory_space<smem>>
      %501 = vector.broadcast %500 : f32 to vector<18x128xf32>
      %502 = arith.mulf %501, %88 : vector<18x128xf32>
      %503 = arith.addf %497, %502 : vector<18x128xf32>
      %c7_i32_133 = arith.constant 7 : i32
      %504 = arith.addi %463, %c7_i32_133 : i32
      %505 = arith.index_cast %504 : i32 to index
      %506 = memref.load %arg1[%505] : memref<288xf32, #tpu.memory_space<smem>>
      %507 = vector.broadcast %506 : f32 to vector<18x128xf32>
      %508 = arith.mulf %507, %89 : vector<18x128xf32>
      %509 = arith.addf %503, %508 : vector<18x128xf32>
      %c8_i32_134 = arith.constant 8 : i32
      %510 = arith.addi %463, %c8_i32_134 : i32
      %511 = arith.index_cast %510 : i32 to index
      %512 = memref.load %arg1[%511] : memref<288xf32, #tpu.memory_space<smem>>
      %513 = vector.broadcast %512 : f32 to vector<18x128xf32>
      %514 = arith.mulf %513, %90 : vector<18x128xf32>
      %515 = arith.addf %509, %514 : vector<18x128xf32>
      %516 = arith.index_cast %462 : i32 to index
      %517 = memref.load %arg2[%516] : memref<32xf32, #tpu.memory_space<smem>>
      %518 = vector.broadcast %517 : f32 to vector<18x128xf32>
      %519 = arith.addf %515, %518 : vector<18x128xf32>
      %cst_135 = arith.constant 0.000000e+00 : f32
      %520 = vector.broadcast %cst_135 : f32 to vector<18x128xf32>
      %521 = arith.maximumf %519, %520 : vector<18x128xf32>
      %cst_136 = arith.constant 0.000000e+00 : f32
      %522 = vector.broadcast %cst_136 : f32 to vector<18x128xf32>
      %523 = arith.select %5, %521, %522 : vector<18x128xi1>, vector<18x128xf32>
      %c9_i32_137 = arith.constant 9 : i32
      %524 = arith.muli %462, %c9_i32_137 : i32
      %c2_i32_138 = arith.constant 2 : i32
      %525 = arith.muli %524, %c2_i32_138 : i32
      %526 = vector.extract_strided_slice %523 {offsets = [0, 0], sizes = [16, 128], strides = [1, 1]} : vector<18x128xf32> to vector<16x128xf32>
      %c0_i32_139 = arith.constant 0 : i32
      %527 = arith.addi %525, %c0_i32_139 : i32
      %c0_i32_140 = arith.constant 0 : i32
      %528 = arith.addi %527, %c0_i32_140 : i32
      %529 = arith.index_cast %528 : i32 to index
      %530 = memref.load %arg3[%529] : memref<576xf32, #tpu.memory_space<smem>>
      %531 = vector.broadcast %530 : f32 to vector<16x128xf32>
      %532 = arith.mulf %531, %526 : vector<16x128xf32>
      %533 = arith.addf %428, %532 : vector<16x128xf32>
      %c1_i32_141 = arith.constant 1 : i32
      %534 = arith.addi %527, %c1_i32_141 : i32
      %535 = arith.index_cast %534 : i32 to index
      %536 = memref.load %arg3[%535] : memref<576xf32, #tpu.memory_space<smem>>
      %537 = vector.broadcast %536 : f32 to vector<16x128xf32>
      %538 = arith.mulf %537, %526 : vector<16x128xf32>
      %539 = arith.addf %434, %538 : vector<16x128xf32>
      %c2_i32_142 = arith.constant 2 : i32
      %540 = arith.addi %525, %c2_i32_142 : i32
      %c0_i32_143 = arith.constant 0 : i32
      %541 = arith.addi %540, %c0_i32_143 : i32
      %542 = arith.index_cast %541 : i32 to index
      %543 = memref.load %arg3[%542] : memref<576xf32, #tpu.memory_space<smem>>
      %544 = vector.broadcast %543 : f32 to vector<16x128xf32>
      %545 = arith.mulf %544, %526 : vector<16x128xf32>
      %546 = arith.addf %441, %545 : vector<16x128xf32>
      %c1_i32_144 = arith.constant 1 : i32
      %547 = arith.addi %540, %c1_i32_144 : i32
      %548 = arith.index_cast %547 : i32 to index
      %549 = memref.load %arg3[%548] : memref<576xf32, #tpu.memory_space<smem>>
      %550 = vector.broadcast %549 : f32 to vector<16x128xf32>
      %551 = arith.mulf %550, %526 : vector<16x128xf32>
      %552 = arith.addf %447, %551 : vector<16x128xf32>
      %c4_i32_145 = arith.constant 4 : i32
      %553 = arith.addi %525, %c4_i32_145 : i32
      %c0_i32_146 = arith.constant 0 : i32
      %554 = arith.addi %553, %c0_i32_146 : i32
      %555 = arith.index_cast %554 : i32 to index
      %556 = memref.load %arg3[%555] : memref<576xf32, #tpu.memory_space<smem>>
      %557 = vector.broadcast %556 : f32 to vector<16x128xf32>
      %558 = arith.mulf %557, %526 : vector<16x128xf32>
      %559 = arith.addf %454, %558 : vector<16x128xf32>
      %c1_i32_147 = arith.constant 1 : i32
      %560 = arith.addi %553, %c1_i32_147 : i32
      %561 = arith.index_cast %560 : i32 to index
      %562 = memref.load %arg3[%561] : memref<576xf32, #tpu.memory_space<smem>>
      %563 = vector.broadcast %562 : f32 to vector<16x128xf32>
      %564 = arith.mulf %563, %526 : vector<16x128xf32>
      %565 = arith.addf %460, %564 : vector<16x128xf32>
      %566 = vector.extract_strided_slice %523 {offsets = [1, 0], sizes = [16, 128], strides = [1, 1]} : vector<18x128xf32> to vector<16x128xf32>
      %c6_i32_148 = arith.constant 6 : i32
      %567 = arith.addi %525, %c6_i32_148 : i32
      %c0_i32_149 = arith.constant 0 : i32
      %568 = arith.addi %567, %c0_i32_149 : i32
      %569 = arith.index_cast %568 : i32 to index
      %570 = memref.load %arg3[%569] : memref<576xf32, #tpu.memory_space<smem>>
      %571 = vector.broadcast %570 : f32 to vector<16x128xf32>
      %572 = arith.mulf %571, %566 : vector<16x128xf32>
      %573 = arith.addf %533, %572 : vector<16x128xf32>
      %c1_i32_150 = arith.constant 1 : i32
      %574 = arith.addi %567, %c1_i32_150 : i32
      %575 = arith.index_cast %574 : i32 to index
      %576 = memref.load %arg3[%575] : memref<576xf32, #tpu.memory_space<smem>>
      %577 = vector.broadcast %576 : f32 to vector<16x128xf32>
      %578 = arith.mulf %577, %566 : vector<16x128xf32>
      %579 = arith.addf %539, %578 : vector<16x128xf32>
      %c8_i32_151 = arith.constant 8 : i32
      %580 = arith.addi %525, %c8_i32_151 : i32
      %c0_i32_152 = arith.constant 0 : i32
      %581 = arith.addi %580, %c0_i32_152 : i32
      %582 = arith.index_cast %581 : i32 to index
      %583 = memref.load %arg3[%582] : memref<576xf32, #tpu.memory_space<smem>>
      %584 = vector.broadcast %583 : f32 to vector<16x128xf32>
      %585 = arith.mulf %584, %566 : vector<16x128xf32>
      %586 = arith.addf %546, %585 : vector<16x128xf32>
      %c1_i32_153 = arith.constant 1 : i32
      %587 = arith.addi %580, %c1_i32_153 : i32
      %588 = arith.index_cast %587 : i32 to index
      %589 = memref.load %arg3[%588] : memref<576xf32, #tpu.memory_space<smem>>
      %590 = vector.broadcast %589 : f32 to vector<16x128xf32>
      %591 = arith.mulf %590, %566 : vector<16x128xf32>
      %592 = arith.addf %552, %591 : vector<16x128xf32>
      %c10_i32_154 = arith.constant 10 : i32
      %593 = arith.addi %525, %c10_i32_154 : i32
      %c0_i32_155 = arith.constant 0 : i32
      %594 = arith.addi %593, %c0_i32_155 : i32
      %595 = arith.index_cast %594 : i32 to index
      %596 = memref.load %arg3[%595] : memref<576xf32, #tpu.memory_space<smem>>
      %597 = vector.broadcast %596 : f32 to vector<16x128xf32>
      %598 = arith.mulf %597, %566 : vector<16x128xf32>
      %599 = arith.addf %559, %598 : vector<16x128xf32>
      %c1_i32_156 = arith.constant 1 : i32
      %600 = arith.addi %593, %c1_i32_156 : i32
      %601 = arith.index_cast %600 : i32 to index
      %602 = memref.load %arg3[%601] : memref<576xf32, #tpu.memory_space<smem>>
      %603 = vector.broadcast %602 : f32 to vector<16x128xf32>
      %604 = arith.mulf %603, %566 : vector<16x128xf32>
      %605 = arith.addf %565, %604 : vector<16x128xf32>
      %606 = vector.extract_strided_slice %523 {offsets = [2, 0], sizes = [16, 128], strides = [1, 1]} : vector<18x128xf32> to vector<16x128xf32>
      %c12_i32_157 = arith.constant 12 : i32
      %607 = arith.addi %525, %c12_i32_157 : i32
      %c0_i32_158 = arith.constant 0 : i32
      %608 = arith.addi %607, %c0_i32_158 : i32
      %609 = arith.index_cast %608 : i32 to index
      %610 = memref.load %arg3[%609] : memref<576xf32, #tpu.memory_space<smem>>
      %611 = vector.broadcast %610 : f32 to vector<16x128xf32>
      %612 = arith.mulf %611, %606 : vector<16x128xf32>
      %613 = arith.addf %573, %612 : vector<16x128xf32>
      %c1_i32_159 = arith.constant 1 : i32
      %614 = arith.addi %607, %c1_i32_159 : i32
      %615 = arith.index_cast %614 : i32 to index
      %616 = memref.load %arg3[%615] : memref<576xf32, #tpu.memory_space<smem>>
      %617 = vector.broadcast %616 : f32 to vector<16x128xf32>
      %618 = arith.mulf %617, %606 : vector<16x128xf32>
      %619 = arith.addf %579, %618 : vector<16x128xf32>
      %c14_i32_160 = arith.constant 14 : i32
      %620 = arith.addi %525, %c14_i32_160 : i32
      %c0_i32_161 = arith.constant 0 : i32
      %621 = arith.addi %620, %c0_i32_161 : i32
      %622 = arith.index_cast %621 : i32 to index
      %623 = memref.load %arg3[%622] : memref<576xf32, #tpu.memory_space<smem>>
      %624 = vector.broadcast %623 : f32 to vector<16x128xf32>
      %625 = arith.mulf %624, %606 : vector<16x128xf32>
      %626 = arith.addf %586, %625 : vector<16x128xf32>
      %c1_i32_162 = arith.constant 1 : i32
      %627 = arith.addi %620, %c1_i32_162 : i32
      %628 = arith.index_cast %627 : i32 to index
      %629 = memref.load %arg3[%628] : memref<576xf32, #tpu.memory_space<smem>>
      %630 = vector.broadcast %629 : f32 to vector<16x128xf32>
      %631 = arith.mulf %630, %606 : vector<16x128xf32>
      %632 = arith.addf %592, %631 : vector<16x128xf32>
      %c16_i32_163 = arith.constant 16 : i32
      %633 = arith.addi %525, %c16_i32_163 : i32
      %c0_i32_164 = arith.constant 0 : i32
      %634 = arith.addi %633, %c0_i32_164 : i32
      %635 = arith.index_cast %634 : i32 to index
      %636 = memref.load %arg3[%635] : memref<576xf32, #tpu.memory_space<smem>>
      %637 = vector.broadcast %636 : f32 to vector<16x128xf32>
      %638 = arith.mulf %637, %606 : vector<16x128xf32>
      %639 = arith.addf %599, %638 : vector<16x128xf32>
      %c1_i32_165 = arith.constant 1 : i32
      %640 = arith.addi %633, %c1_i32_165 : i32
      %641 = arith.index_cast %640 : i32 to index
      %642 = memref.load %arg3[%641] : memref<576xf32, #tpu.memory_space<smem>>
      %643 = vector.broadcast %642 : f32 to vector<16x128xf32>
      %644 = arith.mulf %643, %606 : vector<16x128xf32>
      %645 = arith.addf %605, %644 : vector<16x128xf32>
      %c4_i32_166 = arith.constant 4 : i32
      %646 = arith.muli %arg7, %c4_i32_166 : i32
      %c3_i32_167 = arith.constant 3 : i32
      %647 = arith.addi %646, %c3_i32_167 : i32
      %c9_i32_168 = arith.constant 9 : i32
      %648 = arith.muli %647, %c9_i32_168 : i32
      %649 = arith.index_cast %648 : i32 to index
      %650 = memref.load %arg1[%649] : memref<288xf32, #tpu.memory_space<smem>>
      %651 = vector.broadcast %650 : f32 to vector<18x128xf32>
      %652 = arith.mulf %651, %82 : vector<18x128xf32>
      %c1_i32_169 = arith.constant 1 : i32
      %653 = arith.addi %648, %c1_i32_169 : i32
      %654 = arith.index_cast %653 : i32 to index
      %655 = memref.load %arg1[%654] : memref<288xf32, #tpu.memory_space<smem>>
      %656 = vector.broadcast %655 : f32 to vector<18x128xf32>
      %657 = arith.mulf %656, %83 : vector<18x128xf32>
      %658 = arith.addf %652, %657 : vector<18x128xf32>
      %c2_i32_170 = arith.constant 2 : i32
      %659 = arith.addi %648, %c2_i32_170 : i32
      %660 = arith.index_cast %659 : i32 to index
      %661 = memref.load %arg1[%660] : memref<288xf32, #tpu.memory_space<smem>>
      %662 = vector.broadcast %661 : f32 to vector<18x128xf32>
      %663 = arith.mulf %662, %84 : vector<18x128xf32>
      %664 = arith.addf %658, %663 : vector<18x128xf32>
      %c3_i32_171 = arith.constant 3 : i32
      %665 = arith.addi %648, %c3_i32_171 : i32
      %666 = arith.index_cast %665 : i32 to index
      %667 = memref.load %arg1[%666] : memref<288xf32, #tpu.memory_space<smem>>
      %668 = vector.broadcast %667 : f32 to vector<18x128xf32>
      %669 = arith.mulf %668, %85 : vector<18x128xf32>
      %670 = arith.addf %664, %669 : vector<18x128xf32>
      %c4_i32_172 = arith.constant 4 : i32
      %671 = arith.addi %648, %c4_i32_172 : i32
      %672 = arith.index_cast %671 : i32 to index
      %673 = memref.load %arg1[%672] : memref<288xf32, #tpu.memory_space<smem>>
      %674 = vector.broadcast %673 : f32 to vector<18x128xf32>
      %675 = arith.mulf %674, %86 : vector<18x128xf32>
      %676 = arith.addf %670, %675 : vector<18x128xf32>
      %c5_i32_173 = arith.constant 5 : i32
      %677 = arith.addi %648, %c5_i32_173 : i32
      %678 = arith.index_cast %677 : i32 to index
      %679 = memref.load %arg1[%678] : memref<288xf32, #tpu.memory_space<smem>>
      %680 = vector.broadcast %679 : f32 to vector<18x128xf32>
      %681 = arith.mulf %680, %87 : vector<18x128xf32>
      %682 = arith.addf %676, %681 : vector<18x128xf32>
      %c6_i32_174 = arith.constant 6 : i32
      %683 = arith.addi %648, %c6_i32_174 : i32
      %684 = arith.index_cast %683 : i32 to index
      %685 = memref.load %arg1[%684] : memref<288xf32, #tpu.memory_space<smem>>
      %686 = vector.broadcast %685 : f32 to vector<18x128xf32>
      %687 = arith.mulf %686, %88 : vector<18x128xf32>
      %688 = arith.addf %682, %687 : vector<18x128xf32>
      %c7_i32_175 = arith.constant 7 : i32
      %689 = arith.addi %648, %c7_i32_175 : i32
      %690 = arith.index_cast %689 : i32 to index
      %691 = memref.load %arg1[%690] : memref<288xf32, #tpu.memory_space<smem>>
      %692 = vector.broadcast %691 : f32 to vector<18x128xf32>
      %693 = arith.mulf %692, %89 : vector<18x128xf32>
      %694 = arith.addf %688, %693 : vector<18x128xf32>
      %c8_i32_176 = arith.constant 8 : i32
      %695 = arith.addi %648, %c8_i32_176 : i32
      %696 = arith.index_cast %695 : i32 to index
      %697 = memref.load %arg1[%696] : memref<288xf32, #tpu.memory_space<smem>>
      %698 = vector.broadcast %697 : f32 to vector<18x128xf32>
      %699 = arith.mulf %698, %90 : vector<18x128xf32>
      %700 = arith.addf %694, %699 : vector<18x128xf32>
      %701 = arith.index_cast %647 : i32 to index
      %702 = memref.load %arg2[%701] : memref<32xf32, #tpu.memory_space<smem>>
      %703 = vector.broadcast %702 : f32 to vector<18x128xf32>
      %704 = arith.addf %700, %703 : vector<18x128xf32>
      %cst_177 = arith.constant 0.000000e+00 : f32
      %705 = vector.broadcast %cst_177 : f32 to vector<18x128xf32>
      %706 = arith.maximumf %704, %705 : vector<18x128xf32>
      %cst_178 = arith.constant 0.000000e+00 : f32
      %707 = vector.broadcast %cst_178 : f32 to vector<18x128xf32>
      %708 = arith.select %5, %706, %707 : vector<18x128xi1>, vector<18x128xf32>
      %c9_i32_179 = arith.constant 9 : i32
      %709 = arith.muli %647, %c9_i32_179 : i32
      %c2_i32_180 = arith.constant 2 : i32
      %710 = arith.muli %709, %c2_i32_180 : i32
      %711 = vector.extract_strided_slice %708 {offsets = [0, 0], sizes = [16, 128], strides = [1, 1]} : vector<18x128xf32> to vector<16x128xf32>
      %c0_i32_181 = arith.constant 0 : i32
      %712 = arith.addi %710, %c0_i32_181 : i32
      %c0_i32_182 = arith.constant 0 : i32
      %713 = arith.addi %712, %c0_i32_182 : i32
      %714 = arith.index_cast %713 : i32 to index
      %715 = memref.load %arg3[%714] : memref<576xf32, #tpu.memory_space<smem>>
      %716 = vector.broadcast %715 : f32 to vector<16x128xf32>
      %717 = arith.mulf %716, %711 : vector<16x128xf32>
      %718 = arith.addf %613, %717 : vector<16x128xf32>
      %c1_i32_183 = arith.constant 1 : i32
      %719 = arith.addi %712, %c1_i32_183 : i32
      %720 = arith.index_cast %719 : i32 to index
      %721 = memref.load %arg3[%720] : memref<576xf32, #tpu.memory_space<smem>>
      %722 = vector.broadcast %721 : f32 to vector<16x128xf32>
      %723 = arith.mulf %722, %711 : vector<16x128xf32>
      %724 = arith.addf %619, %723 : vector<16x128xf32>
      %c2_i32_184 = arith.constant 2 : i32
      %725 = arith.addi %710, %c2_i32_184 : i32
      %c0_i32_185 = arith.constant 0 : i32
      %726 = arith.addi %725, %c0_i32_185 : i32
      %727 = arith.index_cast %726 : i32 to index
      %728 = memref.load %arg3[%727] : memref<576xf32, #tpu.memory_space<smem>>
      %729 = vector.broadcast %728 : f32 to vector<16x128xf32>
      %730 = arith.mulf %729, %711 : vector<16x128xf32>
      %731 = arith.addf %626, %730 : vector<16x128xf32>
      %c1_i32_186 = arith.constant 1 : i32
      %732 = arith.addi %725, %c1_i32_186 : i32
      %733 = arith.index_cast %732 : i32 to index
      %734 = memref.load %arg3[%733] : memref<576xf32, #tpu.memory_space<smem>>
      %735 = vector.broadcast %734 : f32 to vector<16x128xf32>
      %736 = arith.mulf %735, %711 : vector<16x128xf32>
      %737 = arith.addf %632, %736 : vector<16x128xf32>
      %c4_i32_187 = arith.constant 4 : i32
      %738 = arith.addi %710, %c4_i32_187 : i32
      %c0_i32_188 = arith.constant 0 : i32
      %739 = arith.addi %738, %c0_i32_188 : i32
      %740 = arith.index_cast %739 : i32 to index
      %741 = memref.load %arg3[%740] : memref<576xf32, #tpu.memory_space<smem>>
      %742 = vector.broadcast %741 : f32 to vector<16x128xf32>
      %743 = arith.mulf %742, %711 : vector<16x128xf32>
      %744 = arith.addf %639, %743 : vector<16x128xf32>
      %c1_i32_189 = arith.constant 1 : i32
      %745 = arith.addi %738, %c1_i32_189 : i32
      %746 = arith.index_cast %745 : i32 to index
      %747 = memref.load %arg3[%746] : memref<576xf32, #tpu.memory_space<smem>>
      %748 = vector.broadcast %747 : f32 to vector<16x128xf32>
      %749 = arith.mulf %748, %711 : vector<16x128xf32>
      %750 = arith.addf %645, %749 : vector<16x128xf32>
      %751 = vector.extract_strided_slice %708 {offsets = [1, 0], sizes = [16, 128], strides = [1, 1]} : vector<18x128xf32> to vector<16x128xf32>
      %c6_i32_190 = arith.constant 6 : i32
      %752 = arith.addi %710, %c6_i32_190 : i32
      %c0_i32_191 = arith.constant 0 : i32
      %753 = arith.addi %752, %c0_i32_191 : i32
      %754 = arith.index_cast %753 : i32 to index
      %755 = memref.load %arg3[%754] : memref<576xf32, #tpu.memory_space<smem>>
      %756 = vector.broadcast %755 : f32 to vector<16x128xf32>
      %757 = arith.mulf %756, %751 : vector<16x128xf32>
      %758 = arith.addf %718, %757 : vector<16x128xf32>
      %c1_i32_192 = arith.constant 1 : i32
      %759 = arith.addi %752, %c1_i32_192 : i32
      %760 = arith.index_cast %759 : i32 to index
      %761 = memref.load %arg3[%760] : memref<576xf32, #tpu.memory_space<smem>>
      %762 = vector.broadcast %761 : f32 to vector<16x128xf32>
      %763 = arith.mulf %762, %751 : vector<16x128xf32>
      %764 = arith.addf %724, %763 : vector<16x128xf32>
      %c8_i32_193 = arith.constant 8 : i32
      %765 = arith.addi %710, %c8_i32_193 : i32
      %c0_i32_194 = arith.constant 0 : i32
      %766 = arith.addi %765, %c0_i32_194 : i32
      %767 = arith.index_cast %766 : i32 to index
      %768 = memref.load %arg3[%767] : memref<576xf32, #tpu.memory_space<smem>>
      %769 = vector.broadcast %768 : f32 to vector<16x128xf32>
      %770 = arith.mulf %769, %751 : vector<16x128xf32>
      %771 = arith.addf %731, %770 : vector<16x128xf32>
      %c1_i32_195 = arith.constant 1 : i32
      %772 = arith.addi %765, %c1_i32_195 : i32
      %773 = arith.index_cast %772 : i32 to index
      %774 = memref.load %arg3[%773] : memref<576xf32, #tpu.memory_space<smem>>
      %775 = vector.broadcast %774 : f32 to vector<16x128xf32>
      %776 = arith.mulf %775, %751 : vector<16x128xf32>
      %777 = arith.addf %737, %776 : vector<16x128xf32>
      %c10_i32_196 = arith.constant 10 : i32
      %778 = arith.addi %710, %c10_i32_196 : i32
      %c0_i32_197 = arith.constant 0 : i32
      %779 = arith.addi %778, %c0_i32_197 : i32
      %780 = arith.index_cast %779 : i32 to index
      %781 = memref.load %arg3[%780] : memref<576xf32, #tpu.memory_space<smem>>
      %782 = vector.broadcast %781 : f32 to vector<16x128xf32>
      %783 = arith.mulf %782, %751 : vector<16x128xf32>
      %784 = arith.addf %744, %783 : vector<16x128xf32>
      %c1_i32_198 = arith.constant 1 : i32
      %785 = arith.addi %778, %c1_i32_198 : i32
      %786 = arith.index_cast %785 : i32 to index
      %787 = memref.load %arg3[%786] : memref<576xf32, #tpu.memory_space<smem>>
      %788 = vector.broadcast %787 : f32 to vector<16x128xf32>
      %789 = arith.mulf %788, %751 : vector<16x128xf32>
      %790 = arith.addf %750, %789 : vector<16x128xf32>
      %791 = vector.extract_strided_slice %708 {offsets = [2, 0], sizes = [16, 128], strides = [1, 1]} : vector<18x128xf32> to vector<16x128xf32>
      %c12_i32_199 = arith.constant 12 : i32
      %792 = arith.addi %710, %c12_i32_199 : i32
      %c0_i32_200 = arith.constant 0 : i32
      %793 = arith.addi %792, %c0_i32_200 : i32
      %794 = arith.index_cast %793 : i32 to index
      %795 = memref.load %arg3[%794] : memref<576xf32, #tpu.memory_space<smem>>
      %796 = vector.broadcast %795 : f32 to vector<16x128xf32>
      %797 = arith.mulf %796, %791 : vector<16x128xf32>
      %798 = arith.addf %758, %797 : vector<16x128xf32>
      %c1_i32_201 = arith.constant 1 : i32
      %799 = arith.addi %792, %c1_i32_201 : i32
      %800 = arith.index_cast %799 : i32 to index
      %801 = memref.load %arg3[%800] : memref<576xf32, #tpu.memory_space<smem>>
      %802 = vector.broadcast %801 : f32 to vector<16x128xf32>
      %803 = arith.mulf %802, %791 : vector<16x128xf32>
      %804 = arith.addf %764, %803 : vector<16x128xf32>
      %c14_i32_202 = arith.constant 14 : i32
      %805 = arith.addi %710, %c14_i32_202 : i32
      %c0_i32_203 = arith.constant 0 : i32
      %806 = arith.addi %805, %c0_i32_203 : i32
      %807 = arith.index_cast %806 : i32 to index
      %808 = memref.load %arg3[%807] : memref<576xf32, #tpu.memory_space<smem>>
      %809 = vector.broadcast %808 : f32 to vector<16x128xf32>
      %810 = arith.mulf %809, %791 : vector<16x128xf32>
      %811 = arith.addf %771, %810 : vector<16x128xf32>
      %c1_i32_204 = arith.constant 1 : i32
      %812 = arith.addi %805, %c1_i32_204 : i32
      %813 = arith.index_cast %812 : i32 to index
      %814 = memref.load %arg3[%813] : memref<576xf32, #tpu.memory_space<smem>>
      %815 = vector.broadcast %814 : f32 to vector<16x128xf32>
      %816 = arith.mulf %815, %791 : vector<16x128xf32>
      %817 = arith.addf %777, %816 : vector<16x128xf32>
      %c16_i32_205 = arith.constant 16 : i32
      %818 = arith.addi %710, %c16_i32_205 : i32
      %c0_i32_206 = arith.constant 0 : i32
      %819 = arith.addi %818, %c0_i32_206 : i32
      %820 = arith.index_cast %819 : i32 to index
      %821 = memref.load %arg3[%820] : memref<576xf32, #tpu.memory_space<smem>>
      %822 = vector.broadcast %821 : f32 to vector<16x128xf32>
      %823 = arith.mulf %822, %791 : vector<16x128xf32>
      %824 = arith.addf %784, %823 : vector<16x128xf32>
      %c1_i32_207 = arith.constant 1 : i32
      %825 = arith.addi %818, %c1_i32_207 : i32
      %826 = arith.index_cast %825 : i32 to index
      %827 = memref.load %arg3[%826] : memref<576xf32, #tpu.memory_space<smem>>
      %828 = vector.broadcast %827 : f32 to vector<16x128xf32>
      %829 = arith.mulf %828, %791 : vector<16x128xf32>
      %830 = arith.addf %790, %829 : vector<16x128xf32>
      scf.yield %798, %804, %811, %817, %824, %830 : vector<16x128xf32>, vector<16x128xf32>, vector<16x128xf32>, vector<16x128xf32>, vector<16x128xf32>, vector<16x128xf32>
    }
    %c8_i32_3 = arith.constant 8 : i32
    %11 = tpu.iota {dimensions = array<i32: 1>} : vector<16x128xi32>
    %c8_i32_4 = arith.constant 8 : i32
    %12 = vector.broadcast %c8_i32_4 : i32 to vector<16x128xi32>
    %13 = arith.cmpi sge, %11, %12 : vector<16x128xi32>
    %c120_i32 = arith.constant 120 : i32
    %14 = vector.broadcast %c120_i32 : i32 to vector<16x128xi32>
    %15 = arith.cmpi slt, %11, %14 : vector<16x128xi32>
    %c8_i32_5 = arith.constant 8 : i32
    %16 = tpu.dynamic_rotate %10#0 by %c8_i32_5 dim 1 : vector<16x128xf32>, i32 -> vector<16x128xf32>
    %cst_6 = arith.constant 0.000000e+00 : f32
    %17 = vector.broadcast %cst_6 : f32 to vector<16x128xf32>
    %18 = arith.select %13, %16, %17 : vector<16x128xi1>, vector<16x128xf32>
    %c120_i32_7 = arith.constant 120 : i32
    %19 = tpu.dynamic_rotate %10#4 by %c120_i32_7 dim 1 : vector<16x128xf32>, i32 -> vector<16x128xf32>
    %cst_8 = arith.constant 0.000000e+00 : f32
    %20 = vector.broadcast %cst_8 : f32 to vector<16x128xf32>
    %21 = arith.select %15, %19, %20 : vector<16x128xi1>, vector<16x128xf32>
    %22 = arith.addf %10#2, %18 : vector<16x128xf32>
    %23 = arith.addf %22, %21 : vector<16x128xf32>
    %c0_9 = arith.constant 0 : index
    %24 = memref.load %arg4[%c0_9] : memref<2xf32, #tpu.memory_space<smem>>
    %25 = vector.broadcast %24 : f32 to vector<16x128xf32>
    %26 = arith.addf %23, %25 : vector<16x128xf32>
    %c0_10 = arith.constant 0 : index
    %c0_11 = arith.constant 0 : index
    %c0_12 = arith.constant 0 : index
    %c0_13 = arith.constant 0 : index
    %27 = vector.load %arg6[%c0_10, %c0_11, %c0_12, %c0_13] : memref<2x2x16x128xf32, #tpu.memory_space<vmem>>, vector<1x1x16x128xf32>
    %28 = vector.shape_cast %27 : vector<1x1x16x128xf32> to vector<16x128xf32>
    %29 = vector.shape_cast %26 : vector<16x128xf32> to vector<1x1x16x128xf32>
    tpu.vector_store %arg6[%c0_10, %c0_11, %c0_12, %c0_13], %29 {strides = array<i32>} : memref<2x2x16x128xf32, #tpu.memory_space<vmem>>, vector<1x1x16x128xf32>,
    %c8_i32_14 = arith.constant 8 : i32
    %30 = tpu.dynamic_rotate %10#1 by %c8_i32_14 dim 1 : vector<16x128xf32>, i32 -> vector<16x128xf32>
    %cst_15 = arith.constant 0.000000e+00 : f32
    %31 = vector.broadcast %cst_15 : f32 to vector<16x128xf32>
    %32 = arith.select %13, %30, %31 : vector<16x128xi1>, vector<16x128xf32>
    %c120_i32_16 = arith.constant 120 : i32
    %33 = tpu.dynamic_rotate %10#5 by %c120_i32_16 dim 1 : vector<16x128xf32>, i32 -> vector<16x128xf32>
    %cst_17 = arith.constant 0.000000e+00 : f32
    %34 = vector.broadcast %cst_17 : f32 to vector<16x128xf32>
    %35 = arith.select %15, %33, %34 : vector<16x128xi1>, vector<16x128xf32>
    %36 = arith.addf %10#3, %32 : vector<16x128xf32>
    %37 = arith.addf %36, %35 : vector<16x128xf32>
    %c1 = arith.constant 1 : index
    %38 = memref.load %arg4[%c1] : memref<2xf32, #tpu.memory_space<smem>>
    %39 = vector.broadcast %38 : f32 to vector<16x128xf32>
    %40 = arith.addf %37, %39 : vector<16x128xf32>
    %c0_18 = arith.constant 0 : index
    %c1_19 = arith.constant 1 : index
    %c0_20 = arith.constant 0 : index
    %c0_21 = arith.constant 0 : index
    %41 = vector.load %arg6[%c0_18, %c1_19, %c0_20, %c0_21] : memref<2x2x16x128xf32, #tpu.memory_space<vmem>>, vector<1x1x16x128xf32>
    %42 = vector.shape_cast %41 : vector<1x1x16x128xf32> to vector<16x128xf32>
    %43 = vector.shape_cast %40 : vector<16x128xf32> to vector<1x1x16x128xf32>
    tpu.vector_store %arg6[%c0_18, %c1_19, %c0_20, %c0_21], %43 {strides = array<i32>} : memref<2x2x16x128xf32, #tpu.memory_space<vmem>>, vector<1x1x16x128xf32>,
    %c1_22 = arith.constant 1 : index
    %c0_23 = arith.constant 0 : index
    %c0_24 = arith.constant 0 : index
    %44 = vector.load %arg5[%c1_22, %c0_23, %c0_24] : memref<2x20x144xf32, #tpu.memory_space<vmem>>, vector<1x20x144xf32>
    %45 = vector.shape_cast %44 : vector<1x20x144xf32> to vector<20x144xf32>
    %cst_25 = arith.constant 0.000000e+00 : f32
    %46 = vector.broadcast %cst_25 : f32 to vector<16x128xf32>
    %c0_i32_26 = arith.constant 0 : i32
    %c8_i32_27 = arith.constant 8 : i32
    %47 = arith.addi %c0_i32_26, %c8_i32_27 : i32
    %c1_i32_28 = arith.constant 1 : i32
    %48:6 = scf.for %arg7 = %c0_i32_26 to %47 step %c1_i32_28 iter_args(%arg8 = %46, %arg9 = %46, %arg10 = %46, %arg11 = %46, %arg12 = %46, %arg13 = %46) -> (vector<16x128xf32>, vector<16x128xf32>, vector<16x128xf32>, vector<16x128xf32>, vector<16x128xf32>, vector<16x128xf32>)  : i32 {
      %82 = vector.extract_strided_slice %45 {offsets = [0, 0], sizes = [18, 128], strides = [1, 1]} : vector<20x144xf32> to vector<18x128xf32>
      %83 = vector.extract_strided_slice %45 {offsets = [0, 8], sizes = [18, 128], strides = [1, 1]} : vector<20x144xf32> to vector<18x128xf32>
      %84 = vector.extract_strided_slice %45 {offsets = [0, 16], sizes = [18, 128], strides = [1, 1]} : vector<20x144xf32> to vector<18x128xf32>
      %85 = vector.extract_strided_slice %45 {offsets = [1, 0], sizes = [18, 128], strides = [1, 1]} : vector<20x144xf32> to vector<18x128xf32>
      %86 = vector.extract_strided_slice %45 {offsets = [1, 8], sizes = [18, 128], strides = [1, 1]} : vector<20x144xf32> to vector<18x128xf32>
      %87 = vector.extract_strided_slice %45 {offsets = [1, 16], sizes = [18, 128], strides = [1, 1]} : vector<20x144xf32> to vector<18x128xf32>
      %88 = vector.extract_strided_slice %45 {offsets = [2, 0], sizes = [18, 128], strides = [1, 1]} : vector<20x144xf32> to vector<18x128xf32>
      %89 = vector.extract_strided_slice %45 {offsets = [2, 8], sizes = [18, 128], strides = [1, 1]} : vector<20x144xf32> to vector<18x128xf32>
      %90 = vector.extract_strided_slice %45 {offsets = [2, 16], sizes = [18, 128], strides = [1, 1]} : vector<20x144xf32> to vector<18x128xf32>
      %c4_i32 = arith.constant 4 : i32
      %91 = arith.muli %arg7, %c4_i32 : i32
      %c0_i32_50 = arith.constant 0 : i32
      %92 = arith.addi %91, %c0_i32_50 : i32
      %c9_i32 = arith.constant 9 : i32
      %93 = arith.muli %92, %c9_i32 : i32
      %94 = arith.index_cast %93 : i32 to index
      %95 = memref.load %arg1[%94] : memref<288xf32, #tpu.memory_space<smem>>
      %96 = vector.broadcast %95 : f32 to vector<18x128xf32>
      %97 = arith.mulf %96, %82 : vector<18x128xf32>
      %c1_i32_51 = arith.constant 1 : i32
      %98 = arith.addi %93, %c1_i32_51 : i32
      %99 = arith.index_cast %98 : i32 to index
      %100 = memref.load %arg1[%99] : memref<288xf32, #tpu.memory_space<smem>>
      %101 = vector.broadcast %100 : f32 to vector<18x128xf32>
      %102 = arith.mulf %101, %83 : vector<18x128xf32>
      %103 = arith.addf %97, %102 : vector<18x128xf32>
      %c2_i32 = arith.constant 2 : i32
      %104 = arith.addi %93, %c2_i32 : i32
      %105 = arith.index_cast %104 : i32 to index
      %106 = memref.load %arg1[%105] : memref<288xf32, #tpu.memory_space<smem>>
      %107 = vector.broadcast %106 : f32 to vector<18x128xf32>
      %108 = arith.mulf %107, %84 : vector<18x128xf32>
      %109 = arith.addf %103, %108 : vector<18x128xf32>
      %c3_i32 = arith.constant 3 : i32
      %110 = arith.addi %93, %c3_i32 : i32
      %111 = arith.index_cast %110 : i32 to index
      %112 = memref.load %arg1[%111] : memref<288xf32, #tpu.memory_space<smem>>
      %113 = vector.broadcast %112 : f32 to vector<18x128xf32>
      %114 = arith.mulf %113, %85 : vector<18x128xf32>
      %115 = arith.addf %109, %114 : vector<18x128xf32>
      %c4_i32_52 = arith.constant 4 : i32
      %116 = arith.addi %93, %c4_i32_52 : i32
      %117 = arith.index_cast %116 : i32 to index
      %118 = memref.load %arg1[%117] : memref<288xf32, #tpu.memory_space<smem>>
      %119 = vector.broadcast %118 : f32 to vector<18x128xf32>
      %120 = arith.mulf %119, %86 : vector<18x128xf32>
      %121 = arith.addf %115, %120 : vector<18x128xf32>
      %c5_i32 = arith.constant 5 : i32
      %122 = arith.addi %93, %c5_i32 : i32
      %123 = arith.index_cast %122 : i32 to index
      %124 = memref.load %arg1[%123] : memref<288xf32, #tpu.memory_space<smem>>
      %125 = vector.broadcast %124 : f32 to vector<18x128xf32>
      %126 = arith.mulf %125, %87 : vector<18x128xf32>
      %127 = arith.addf %121, %126 : vector<18x128xf32>
      %c6_i32 = arith.constant 6 : i32
      %128 = arith.addi %93, %c6_i32 : i32
      %129 = arith.index_cast %128 : i32 to index
      %130 = memref.load %arg1[%129] : memref<288xf32, #tpu.memory_space<smem>>
      %131 = vector.broadcast %130 : f32 to vector<18x128xf32>
      %132 = arith.mulf %131, %88 : vector<18x128xf32>
      %133 = arith.addf %127, %132 : vector<18x128xf32>
      %c7_i32 = arith.constant 7 : i32
      %134 = arith.addi %93, %c7_i32 : i32
      %135 = arith.index_cast %134 : i32 to index
      %136 = memref.load %arg1[%135] : memref<288xf32, #tpu.memory_space<smem>>
      %137 = vector.broadcast %136 : f32 to vector<18x128xf32>
      %138 = arith.mulf %137, %89 : vector<18x128xf32>
      %139 = arith.addf %133, %138 : vector<18x128xf32>
      %c8_i32_53 = arith.constant 8 : i32
      %140 = arith.addi %93, %c8_i32_53 : i32
      %141 = arith.index_cast %140 : i32 to index
      %142 = memref.load %arg1[%141] : memref<288xf32, #tpu.memory_space<smem>>
      %143 = vector.broadcast %142 : f32 to vector<18x128xf32>
      %144 = arith.mulf %143, %90 : vector<18x128xf32>
      %145 = arith.addf %139, %144 : vector<18x128xf32>
      %146 = arith.index_cast %92 : i32 to index
      %147 = memref.load %arg2[%146] : memref<32xf32, #tpu.memory_space<smem>>
      %148 = vector.broadcast %147 : f32 to vector<18x128xf32>
      %149 = arith.addf %145, %148 : vector<18x128xf32>
      %cst_54 = arith.constant 0.000000e+00 : f32
      %150 = vector.broadcast %cst_54 : f32 to vector<18x128xf32>
      %151 = arith.maximumf %149, %150 : vector<18x128xf32>
      %cst_55 = arith.constant 0.000000e+00 : f32
      %152 = vector.broadcast %cst_55 : f32 to vector<18x128xf32>
      %153 = arith.select %5, %151, %152 : vector<18x128xi1>, vector<18x128xf32>
      %c9_i32_56 = arith.constant 9 : i32
      %154 = arith.muli %92, %c9_i32_56 : i32
      %c2_i32_57 = arith.constant 2 : i32
      %155 = arith.muli %154, %c2_i32_57 : i32
      %156 = vector.extract_strided_slice %153 {offsets = [0, 0], sizes = [16, 128], strides = [1, 1]} : vector<18x128xf32> to vector<16x128xf32>
      %c0_i32_58 = arith.constant 0 : i32
      %157 = arith.addi %155, %c0_i32_58 : i32
      %c0_i32_59 = arith.constant 0 : i32
      %158 = arith.addi %157, %c0_i32_59 : i32
      %159 = arith.index_cast %158 : i32 to index
      %160 = memref.load %arg3[%159] : memref<576xf32, #tpu.memory_space<smem>>
      %161 = vector.broadcast %160 : f32 to vector<16x128xf32>
      %162 = arith.mulf %161, %156 : vector<16x128xf32>
      %163 = arith.addf %arg8, %162 : vector<16x128xf32>
      %c1_i32_60 = arith.constant 1 : i32
      %164 = arith.addi %157, %c1_i32_60 : i32
      %165 = arith.index_cast %164 : i32 to index
      %166 = memref.load %arg3[%165] : memref<576xf32, #tpu.memory_space<smem>>
      %167 = vector.broadcast %166 : f32 to vector<16x128xf32>
      %168 = arith.mulf %167, %156 : vector<16x128xf32>
      %169 = arith.addf %arg9, %168 : vector<16x128xf32>
      %c2_i32_61 = arith.constant 2 : i32
      %170 = arith.addi %155, %c2_i32_61 : i32
      %c0_i32_62 = arith.constant 0 : i32
      %171 = arith.addi %170, %c0_i32_62 : i32
      %172 = arith.index_cast %171 : i32 to index
      %173 = memref.load %arg3[%172] : memref<576xf32, #tpu.memory_space<smem>>
      %174 = vector.broadcast %173 : f32 to vector<16x128xf32>
      %175 = arith.mulf %174, %156 : vector<16x128xf32>
      %176 = arith.addf %arg10, %175 : vector<16x128xf32>
      %c1_i32_63 = arith.constant 1 : i32
      %177 = arith.addi %170, %c1_i32_63 : i32
      %178 = arith.index_cast %177 : i32 to index
      %179 = memref.load %arg3[%178] : memref<576xf32, #tpu.memory_space<smem>>
      %180 = vector.broadcast %179 : f32 to vector<16x128xf32>
      %181 = arith.mulf %180, %156 : vector<16x128xf32>
      %182 = arith.addf %arg11, %181 : vector<16x128xf32>
      %c4_i32_64 = arith.constant 4 : i32
      %183 = arith.addi %155, %c4_i32_64 : i32
      %c0_i32_65 = arith.constant 0 : i32
      %184 = arith.addi %183, %c0_i32_65 : i32
      %185 = arith.index_cast %184 : i32 to index
      %186 = memref.load %arg3[%185] : memref<576xf32, #tpu.memory_space<smem>>
      %187 = vector.broadcast %186 : f32 to vector<16x128xf32>
      %188 = arith.mulf %187, %156 : vector<16x128xf32>
      %189 = arith.addf %arg12, %188 : vector<16x128xf32>
      %c1_i32_66 = arith.constant 1 : i32
      %190 = arith.addi %183, %c1_i32_66 : i32
      %191 = arith.index_cast %190 : i32 to index
      %192 = memref.load %arg3[%191] : memref<576xf32, #tpu.memory_space<smem>>
      %193 = vector.broadcast %192 : f32 to vector<16x128xf32>
      %194 = arith.mulf %193, %156 : vector<16x128xf32>
      %195 = arith.addf %arg13, %194 : vector<16x128xf32>
      %196 = vector.extract_strided_slice %153 {offsets = [1, 0], sizes = [16, 128], strides = [1, 1]} : vector<18x128xf32> to vector<16x128xf32>
      %c6_i32_67 = arith.constant 6 : i32
      %197 = arith.addi %155, %c6_i32_67 : i32
      %c0_i32_68 = arith.constant 0 : i32
      %198 = arith.addi %197, %c0_i32_68 : i32
      %199 = arith.index_cast %198 : i32 to index
      %200 = memref.load %arg3[%199] : memref<576xf32, #tpu.memory_space<smem>>
      %201 = vector.broadcast %200 : f32 to vector<16x128xf32>
      %202 = arith.mulf %201, %196 : vector<16x128xf32>
      %203 = arith.addf %163, %202 : vector<16x128xf32>
      %c1_i32_69 = arith.constant 1 : i32
      %204 = arith.addi %197, %c1_i32_69 : i32
      %205 = arith.index_cast %204 : i32 to index
      %206 = memref.load %arg3[%205] : memref<576xf32, #tpu.memory_space<smem>>
      %207 = vector.broadcast %206 : f32 to vector<16x128xf32>
      %208 = arith.mulf %207, %196 : vector<16x128xf32>
      %209 = arith.addf %169, %208 : vector<16x128xf32>
      %c8_i32_70 = arith.constant 8 : i32
      %210 = arith.addi %155, %c8_i32_70 : i32
      %c0_i32_71 = arith.constant 0 : i32
      %211 = arith.addi %210, %c0_i32_71 : i32
      %212 = arith.index_cast %211 : i32 to index
      %213 = memref.load %arg3[%212] : memref<576xf32, #tpu.memory_space<smem>>
      %214 = vector.broadcast %213 : f32 to vector<16x128xf32>
      %215 = arith.mulf %214, %196 : vector<16x128xf32>
      %216 = arith.addf %176, %215 : vector<16x128xf32>
      %c1_i32_72 = arith.constant 1 : i32
      %217 = arith.addi %210, %c1_i32_72 : i32
      %218 = arith.index_cast %217 : i32 to index
      %219 = memref.load %arg3[%218] : memref<576xf32, #tpu.memory_space<smem>>
      %220 = vector.broadcast %219 : f32 to vector<16x128xf32>
      %221 = arith.mulf %220, %196 : vector<16x128xf32>
      %222 = arith.addf %182, %221 : vector<16x128xf32>
      %c10_i32 = arith.constant 10 : i32
      %223 = arith.addi %155, %c10_i32 : i32
      %c0_i32_73 = arith.constant 0 : i32
      %224 = arith.addi %223, %c0_i32_73 : i32
      %225 = arith.index_cast %224 : i32 to index
      %226 = memref.load %arg3[%225] : memref<576xf32, #tpu.memory_space<smem>>
      %227 = vector.broadcast %226 : f32 to vector<16x128xf32>
      %228 = arith.mulf %227, %196 : vector<16x128xf32>
      %229 = arith.addf %189, %228 : vector<16x128xf32>
      %c1_i32_74 = arith.constant 1 : i32
      %230 = arith.addi %223, %c1_i32_74 : i32
      %231 = arith.index_cast %230 : i32 to index
      %232 = memref.load %arg3[%231] : memref<576xf32, #tpu.memory_space<smem>>
      %233 = vector.broadcast %232 : f32 to vector<16x128xf32>
      %234 = arith.mulf %233, %196 : vector<16x128xf32>
      %235 = arith.addf %195, %234 : vector<16x128xf32>
      %236 = vector.extract_strided_slice %153 {offsets = [2, 0], sizes = [16, 128], strides = [1, 1]} : vector<18x128xf32> to vector<16x128xf32>
      %c12_i32 = arith.constant 12 : i32
      %237 = arith.addi %155, %c12_i32 : i32
      %c0_i32_75 = arith.constant 0 : i32
      %238 = arith.addi %237, %c0_i32_75 : i32
      %239 = arith.index_cast %238 : i32 to index
      %240 = memref.load %arg3[%239] : memref<576xf32, #tpu.memory_space<smem>>
      %241 = vector.broadcast %240 : f32 to vector<16x128xf32>
      %242 = arith.mulf %241, %236 : vector<16x128xf32>
      %243 = arith.addf %203, %242 : vector<16x128xf32>
      %c1_i32_76 = arith.constant 1 : i32
      %244 = arith.addi %237, %c1_i32_76 : i32
      %245 = arith.index_cast %244 : i32 to index
      %246 = memref.load %arg3[%245] : memref<576xf32, #tpu.memory_space<smem>>
      %247 = vector.broadcast %246 : f32 to vector<16x128xf32>
      %248 = arith.mulf %247, %236 : vector<16x128xf32>
      %249 = arith.addf %209, %248 : vector<16x128xf32>
      %c14_i32 = arith.constant 14 : i32
      %250 = arith.addi %155, %c14_i32 : i32
      %c0_i32_77 = arith.constant 0 : i32
      %251 = arith.addi %250, %c0_i32_77 : i32
      %252 = arith.index_cast %251 : i32 to index
      %253 = memref.load %arg3[%252] : memref<576xf32, #tpu.memory_space<smem>>
      %254 = vector.broadcast %253 : f32 to vector<16x128xf32>
      %255 = arith.mulf %254, %236 : vector<16x128xf32>
      %256 = arith.addf %216, %255 : vector<16x128xf32>
      %c1_i32_78 = arith.constant 1 : i32
      %257 = arith.addi %250, %c1_i32_78 : i32
      %258 = arith.index_cast %257 : i32 to index
      %259 = memref.load %arg3[%258] : memref<576xf32, #tpu.memory_space<smem>>
      %260 = vector.broadcast %259 : f32 to vector<16x128xf32>
      %261 = arith.mulf %260, %236 : vector<16x128xf32>
      %262 = arith.addf %222, %261 : vector<16x128xf32>
      %c16_i32_79 = arith.constant 16 : i32
      %263 = arith.addi %155, %c16_i32_79 : i32
      %c0_i32_80 = arith.constant 0 : i32
      %264 = arith.addi %263, %c0_i32_80 : i32
      %265 = arith.index_cast %264 : i32 to index
      %266 = memref.load %arg3[%265] : memref<576xf32, #tpu.memory_space<smem>>
      %267 = vector.broadcast %266 : f32 to vector<16x128xf32>
      %268 = arith.mulf %267, %236 : vector<16x128xf32>
      %269 = arith.addf %229, %268 : vector<16x128xf32>
      %c1_i32_81 = arith.constant 1 : i32
      %270 = arith.addi %263, %c1_i32_81 : i32
      %271 = arith.index_cast %270 : i32 to index
      %272 = memref.load %arg3[%271] : memref<576xf32, #tpu.memory_space<smem>>
      %273 = vector.broadcast %272 : f32 to vector<16x128xf32>
      %274 = arith.mulf %273, %236 : vector<16x128xf32>
      %275 = arith.addf %235, %274 : vector<16x128xf32>
      %c4_i32_82 = arith.constant 4 : i32
      %276 = arith.muli %arg7, %c4_i32_82 : i32
      %c1_i32_83 = arith.constant 1 : i32
      %277 = arith.addi %276, %c1_i32_83 : i32
      %c9_i32_84 = arith.constant 9 : i32
      %278 = arith.muli %277, %c9_i32_84 : i32
      %279 = arith.index_cast %278 : i32 to index
      %280 = memref.load %arg1[%279] : memref<288xf32, #tpu.memory_space<smem>>
      %281 = vector.broadcast %280 : f32 to vector<18x128xf32>
      %282 = arith.mulf %281, %82 : vector<18x128xf32>
      %c1_i32_85 = arith.constant 1 : i32
      %283 = arith.addi %278, %c1_i32_85 : i32
      %284 = arith.index_cast %283 : i32 to index
      %285 = memref.load %arg1[%284] : memref<288xf32, #tpu.memory_space<smem>>
      %286 = vector.broadcast %285 : f32 to vector<18x128xf32>
      %287 = arith.mulf %286, %83 : vector<18x128xf32>
      %288 = arith.addf %282, %287 : vector<18x128xf32>
      %c2_i32_86 = arith.constant 2 : i32
      %289 = arith.addi %278, %c2_i32_86 : i32
      %290 = arith.index_cast %289 : i32 to index
      %291 = memref.load %arg1[%290] : memref<288xf32, #tpu.memory_space<smem>>
      %292 = vector.broadcast %291 : f32 to vector<18x128xf32>
      %293 = arith.mulf %292, %84 : vector<18x128xf32>
      %294 = arith.addf %288, %293 : vector<18x128xf32>
      %c3_i32_87 = arith.constant 3 : i32
      %295 = arith.addi %278, %c3_i32_87 : i32
      %296 = arith.index_cast %295 : i32 to index
      %297 = memref.load %arg1[%296] : memref<288xf32, #tpu.memory_space<smem>>
      %298 = vector.broadcast %297 : f32 to vector<18x128xf32>
      %299 = arith.mulf %298, %85 : vector<18x128xf32>
      %300 = arith.addf %294, %299 : vector<18x128xf32>
      %c4_i32_88 = arith.constant 4 : i32
      %301 = arith.addi %278, %c4_i32_88 : i32
      %302 = arith.index_cast %301 : i32 to index
      %303 = memref.load %arg1[%302] : memref<288xf32, #tpu.memory_space<smem>>
      %304 = vector.broadcast %303 : f32 to vector<18x128xf32>
      %305 = arith.mulf %304, %86 : vector<18x128xf32>
      %306 = arith.addf %300, %305 : vector<18x128xf32>
      %c5_i32_89 = arith.constant 5 : i32
      %307 = arith.addi %278, %c5_i32_89 : i32
      %308 = arith.index_cast %307 : i32 to index
      %309 = memref.load %arg1[%308] : memref<288xf32, #tpu.memory_space<smem>>
      %310 = vector.broadcast %309 : f32 to vector<18x128xf32>
      %311 = arith.mulf %310, %87 : vector<18x128xf32>
      %312 = arith.addf %306, %311 : vector<18x128xf32>
      %c6_i32_90 = arith.constant 6 : i32
      %313 = arith.addi %278, %c6_i32_90 : i32
      %314 = arith.index_cast %313 : i32 to index
      %315 = memref.load %arg1[%314] : memref<288xf32, #tpu.memory_space<smem>>
      %316 = vector.broadcast %315 : f32 to vector<18x128xf32>
      %317 = arith.mulf %316, %88 : vector<18x128xf32>
      %318 = arith.addf %312, %317 : vector<18x128xf32>
      %c7_i32_91 = arith.constant 7 : i32
      %319 = arith.addi %278, %c7_i32_91 : i32
      %320 = arith.index_cast %319 : i32 to index
      %321 = memref.load %arg1[%320] : memref<288xf32, #tpu.memory_space<smem>>
      %322 = vector.broadcast %321 : f32 to vector<18x128xf32>
      %323 = arith.mulf %322, %89 : vector<18x128xf32>
      %324 = arith.addf %318, %323 : vector<18x128xf32>
      %c8_i32_92 = arith.constant 8 : i32
      %325 = arith.addi %278, %c8_i32_92 : i32
      %326 = arith.index_cast %325 : i32 to index
      %327 = memref.load %arg1[%326] : memref<288xf32, #tpu.memory_space<smem>>
      %328 = vector.broadcast %327 : f32 to vector<18x128xf32>
      %329 = arith.mulf %328, %90 : vector<18x128xf32>
      %330 = arith.addf %324, %329 : vector<18x128xf32>
      %331 = arith.index_cast %277 : i32 to index
      %332 = memref.load %arg2[%331] : memref<32xf32, #tpu.memory_space<smem>>
      %333 = vector.broadcast %332 : f32 to vector<18x128xf32>
      %334 = arith.addf %330, %333 : vector<18x128xf32>
      %cst_93 = arith.constant 0.000000e+00 : f32
      %335 = vector.broadcast %cst_93 : f32 to vector<18x128xf32>
      %336 = arith.maximumf %334, %335 : vector<18x128xf32>
      %cst_94 = arith.constant 0.000000e+00 : f32
      %337 = vector.broadcast %cst_94 : f32 to vector<18x128xf32>
      %338 = arith.select %5, %336, %337 : vector<18x128xi1>, vector<18x128xf32>
      %c9_i32_95 = arith.constant 9 : i32
      %339 = arith.muli %277, %c9_i32_95 : i32
      %c2_i32_96 = arith.constant 2 : i32
      %340 = arith.muli %339, %c2_i32_96 : i32
      %341 = vector.extract_strided_slice %338 {offsets = [0, 0], sizes = [16, 128], strides = [1, 1]} : vector<18x128xf32> to vector<16x128xf32>
      %c0_i32_97 = arith.constant 0 : i32
      %342 = arith.addi %340, %c0_i32_97 : i32
      %c0_i32_98 = arith.constant 0 : i32
      %343 = arith.addi %342, %c0_i32_98 : i32
      %344 = arith.index_cast %343 : i32 to index
      %345 = memref.load %arg3[%344] : memref<576xf32, #tpu.memory_space<smem>>
      %346 = vector.broadcast %345 : f32 to vector<16x128xf32>
      %347 = arith.mulf %346, %341 : vector<16x128xf32>
      %348 = arith.addf %243, %347 : vector<16x128xf32>
      %c1_i32_99 = arith.constant 1 : i32
      %349 = arith.addi %342, %c1_i32_99 : i32
      %350 = arith.index_cast %349 : i32 to index
      %351 = memref.load %arg3[%350] : memref<576xf32, #tpu.memory_space<smem>>
      %352 = vector.broadcast %351 : f32 to vector<16x128xf32>
      %353 = arith.mulf %352, %341 : vector<16x128xf32>
      %354 = arith.addf %249, %353 : vector<16x128xf32>
      %c2_i32_100 = arith.constant 2 : i32
      %355 = arith.addi %340, %c2_i32_100 : i32
      %c0_i32_101 = arith.constant 0 : i32
      %356 = arith.addi %355, %c0_i32_101 : i32
      %357 = arith.index_cast %356 : i32 to index
      %358 = memref.load %arg3[%357] : memref<576xf32, #tpu.memory_space<smem>>
      %359 = vector.broadcast %358 : f32 to vector<16x128xf32>
      %360 = arith.mulf %359, %341 : vector<16x128xf32>
      %361 = arith.addf %256, %360 : vector<16x128xf32>
      %c1_i32_102 = arith.constant 1 : i32
      %362 = arith.addi %355, %c1_i32_102 : i32
      %363 = arith.index_cast %362 : i32 to index
      %364 = memref.load %arg3[%363] : memref<576xf32, #tpu.memory_space<smem>>
      %365 = vector.broadcast %364 : f32 to vector<16x128xf32>
      %366 = arith.mulf %365, %341 : vector<16x128xf32>
      %367 = arith.addf %262, %366 : vector<16x128xf32>
      %c4_i32_103 = arith.constant 4 : i32
      %368 = arith.addi %340, %c4_i32_103 : i32
      %c0_i32_104 = arith.constant 0 : i32
      %369 = arith.addi %368, %c0_i32_104 : i32
      %370 = arith.index_cast %369 : i32 to index
      %371 = memref.load %arg3[%370] : memref<576xf32, #tpu.memory_space<smem>>
      %372 = vector.broadcast %371 : f32 to vector<16x128xf32>
      %373 = arith.mulf %372, %341 : vector<16x128xf32>
      %374 = arith.addf %269, %373 : vector<16x128xf32>
      %c1_i32_105 = arith.constant 1 : i32
      %375 = arith.addi %368, %c1_i32_105 : i32
      %376 = arith.index_cast %375 : i32 to index
      %377 = memref.load %arg3[%376] : memref<576xf32, #tpu.memory_space<smem>>
      %378 = vector.broadcast %377 : f32 to vector<16x128xf32>
      %379 = arith.mulf %378, %341 : vector<16x128xf32>
      %380 = arith.addf %275, %379 : vector<16x128xf32>
      %381 = vector.extract_strided_slice %338 {offsets = [1, 0], sizes = [16, 128], strides = [1, 1]} : vector<18x128xf32> to vector<16x128xf32>
      %c6_i32_106 = arith.constant 6 : i32
      %382 = arith.addi %340, %c6_i32_106 : i32
      %c0_i32_107 = arith.constant 0 : i32
      %383 = arith.addi %382, %c0_i32_107 : i32
      %384 = arith.index_cast %383 : i32 to index
      %385 = memref.load %arg3[%384] : memref<576xf32, #tpu.memory_space<smem>>
      %386 = vector.broadcast %385 : f32 to vector<16x128xf32>
      %387 = arith.mulf %386, %381 : vector<16x128xf32>
      %388 = arith.addf %348, %387 : vector<16x128xf32>
      %c1_i32_108 = arith.constant 1 : i32
      %389 = arith.addi %382, %c1_i32_108 : i32
      %390 = arith.index_cast %389 : i32 to index
      %391 = memref.load %arg3[%390] : memref<576xf32, #tpu.memory_space<smem>>
      %392 = vector.broadcast %391 : f32 to vector<16x128xf32>
      %393 = arith.mulf %392, %381 : vector<16x128xf32>
      %394 = arith.addf %354, %393 : vector<16x128xf32>
      %c8_i32_109 = arith.constant 8 : i32
      %395 = arith.addi %340, %c8_i32_109 : i32
      %c0_i32_110 = arith.constant 0 : i32
      %396 = arith.addi %395, %c0_i32_110 : i32
      %397 = arith.index_cast %396 : i32 to index
      %398 = memref.load %arg3[%397] : memref<576xf32, #tpu.memory_space<smem>>
      %399 = vector.broadcast %398 : f32 to vector<16x128xf32>
      %400 = arith.mulf %399, %381 : vector<16x128xf32>
      %401 = arith.addf %361, %400 : vector<16x128xf32>
      %c1_i32_111 = arith.constant 1 : i32
      %402 = arith.addi %395, %c1_i32_111 : i32
      %403 = arith.index_cast %402 : i32 to index
      %404 = memref.load %arg3[%403] : memref<576xf32, #tpu.memory_space<smem>>
      %405 = vector.broadcast %404 : f32 to vector<16x128xf32>
      %406 = arith.mulf %405, %381 : vector<16x128xf32>
      %407 = arith.addf %367, %406 : vector<16x128xf32>
      %c10_i32_112 = arith.constant 10 : i32
      %408 = arith.addi %340, %c10_i32_112 : i32
      %c0_i32_113 = arith.constant 0 : i32
      %409 = arith.addi %408, %c0_i32_113 : i32
      %410 = arith.index_cast %409 : i32 to index
      %411 = memref.load %arg3[%410] : memref<576xf32, #tpu.memory_space<smem>>
      %412 = vector.broadcast %411 : f32 to vector<16x128xf32>
      %413 = arith.mulf %412, %381 : vector<16x128xf32>
      %414 = arith.addf %374, %413 : vector<16x128xf32>
      %c1_i32_114 = arith.constant 1 : i32
      %415 = arith.addi %408, %c1_i32_114 : i32
      %416 = arith.index_cast %415 : i32 to index
      %417 = memref.load %arg3[%416] : memref<576xf32, #tpu.memory_space<smem>>
      %418 = vector.broadcast %417 : f32 to vector<16x128xf32>
      %419 = arith.mulf %418, %381 : vector<16x128xf32>
      %420 = arith.addf %380, %419 : vector<16x128xf32>
      %421 = vector.extract_strided_slice %338 {offsets = [2, 0], sizes = [16, 128], strides = [1, 1]} : vector<18x128xf32> to vector<16x128xf32>
      %c12_i32_115 = arith.constant 12 : i32
      %422 = arith.addi %340, %c12_i32_115 : i32
      %c0_i32_116 = arith.constant 0 : i32
      %423 = arith.addi %422, %c0_i32_116 : i32
      %424 = arith.index_cast %423 : i32 to index
      %425 = memref.load %arg3[%424] : memref<576xf32, #tpu.memory_space<smem>>
      %426 = vector.broadcast %425 : f32 to vector<16x128xf32>
      %427 = arith.mulf %426, %421 : vector<16x128xf32>
      %428 = arith.addf %388, %427 : vector<16x128xf32>
      %c1_i32_117 = arith.constant 1 : i32
      %429 = arith.addi %422, %c1_i32_117 : i32
      %430 = arith.index_cast %429 : i32 to index
      %431 = memref.load %arg3[%430] : memref<576xf32, #tpu.memory_space<smem>>
      %432 = vector.broadcast %431 : f32 to vector<16x128xf32>
      %433 = arith.mulf %432, %421 : vector<16x128xf32>
      %434 = arith.addf %394, %433 : vector<16x128xf32>
      %c14_i32_118 = arith.constant 14 : i32
      %435 = arith.addi %340, %c14_i32_118 : i32
      %c0_i32_119 = arith.constant 0 : i32
      %436 = arith.addi %435, %c0_i32_119 : i32
      %437 = arith.index_cast %436 : i32 to index
      %438 = memref.load %arg3[%437] : memref<576xf32, #tpu.memory_space<smem>>
      %439 = vector.broadcast %438 : f32 to vector<16x128xf32>
      %440 = arith.mulf %439, %421 : vector<16x128xf32>
      %441 = arith.addf %401, %440 : vector<16x128xf32>
      %c1_i32_120 = arith.constant 1 : i32
      %442 = arith.addi %435, %c1_i32_120 : i32
      %443 = arith.index_cast %442 : i32 to index
      %444 = memref.load %arg3[%443] : memref<576xf32, #tpu.memory_space<smem>>
      %445 = vector.broadcast %444 : f32 to vector<16x128xf32>
      %446 = arith.mulf %445, %421 : vector<16x128xf32>
      %447 = arith.addf %407, %446 : vector<16x128xf32>
      %c16_i32_121 = arith.constant 16 : i32
      %448 = arith.addi %340, %c16_i32_121 : i32
      %c0_i32_122 = arith.constant 0 : i32
      %449 = arith.addi %448, %c0_i32_122 : i32
      %450 = arith.index_cast %449 : i32 to index
      %451 = memref.load %arg3[%450] : memref<576xf32, #tpu.memory_space<smem>>
      %452 = vector.broadcast %451 : f32 to vector<16x128xf32>
      %453 = arith.mulf %452, %421 : vector<16x128xf32>
      %454 = arith.addf %414, %453 : vector<16x128xf32>
      %c1_i32_123 = arith.constant 1 : i32
      %455 = arith.addi %448, %c1_i32_123 : i32
      %456 = arith.index_cast %455 : i32 to index
      %457 = memref.load %arg3[%456] : memref<576xf32, #tpu.memory_space<smem>>
      %458 = vector.broadcast %457 : f32 to vector<16x128xf32>
      %459 = arith.mulf %458, %421 : vector<16x128xf32>
      %460 = arith.addf %420, %459 : vector<16x128xf32>
      %c4_i32_124 = arith.constant 4 : i32
      %461 = arith.muli %arg7, %c4_i32_124 : i32
      %c2_i32_125 = arith.constant 2 : i32
      %462 = arith.addi %461, %c2_i32_125 : i32
      %c9_i32_126 = arith.constant 9 : i32
      %463 = arith.muli %462, %c9_i32_126 : i32
      %464 = arith.index_cast %463 : i32 to index
      %465 = memref.load %arg1[%464] : memref<288xf32, #tpu.memory_space<smem>>
      %466 = vector.broadcast %465 : f32 to vector<18x128xf32>
      %467 = arith.mulf %466, %82 : vector<18x128xf32>
      %c1_i32_127 = arith.constant 1 : i32
      %468 = arith.addi %463, %c1_i32_127 : i32
      %469 = arith.index_cast %468 : i32 to index
      %470 = memref.load %arg1[%469] : memref<288xf32, #tpu.memory_space<smem>>
      %471 = vector.broadcast %470 : f32 to vector<18x128xf32>
      %472 = arith.mulf %471, %83 : vector<18x128xf32>
      %473 = arith.addf %467, %472 : vector<18x128xf32>
      %c2_i32_128 = arith.constant 2 : i32
      %474 = arith.addi %463, %c2_i32_128 : i32
      %475 = arith.index_cast %474 : i32 to index
      %476 = memref.load %arg1[%475] : memref<288xf32, #tpu.memory_space<smem>>
      %477 = vector.broadcast %476 : f32 to vector<18x128xf32>
      %478 = arith.mulf %477, %84 : vector<18x128xf32>
      %479 = arith.addf %473, %478 : vector<18x128xf32>
      %c3_i32_129 = arith.constant 3 : i32
      %480 = arith.addi %463, %c3_i32_129 : i32
      %481 = arith.index_cast %480 : i32 to index
      %482 = memref.load %arg1[%481] : memref<288xf32, #tpu.memory_space<smem>>
      %483 = vector.broadcast %482 : f32 to vector<18x128xf32>
      %484 = arith.mulf %483, %85 : vector<18x128xf32>
      %485 = arith.addf %479, %484 : vector<18x128xf32>
      %c4_i32_130 = arith.constant 4 : i32
      %486 = arith.addi %463, %c4_i32_130 : i32
      %487 = arith.index_cast %486 : i32 to index
      %488 = memref.load %arg1[%487] : memref<288xf32, #tpu.memory_space<smem>>
      %489 = vector.broadcast %488 : f32 to vector<18x128xf32>
      %490 = arith.mulf %489, %86 : vector<18x128xf32>
      %491 = arith.addf %485, %490 : vector<18x128xf32>
      %c5_i32_131 = arith.constant 5 : i32
      %492 = arith.addi %463, %c5_i32_131 : i32
      %493 = arith.index_cast %492 : i32 to index
      %494 = memref.load %arg1[%493] : memref<288xf32, #tpu.memory_space<smem>>
      %495 = vector.broadcast %494 : f32 to vector<18x128xf32>
      %496 = arith.mulf %495, %87 : vector<18x128xf32>
      %497 = arith.addf %491, %496 : vector<18x128xf32>
      %c6_i32_132 = arith.constant 6 : i32
      %498 = arith.addi %463, %c6_i32_132 : i32
      %499 = arith.index_cast %498 : i32 to index
      %500 = memref.load %arg1[%499] : memref<288xf32, #tpu.memory_space<smem>>
      %501 = vector.broadcast %500 : f32 to vector<18x128xf32>
      %502 = arith.mulf %501, %88 : vector<18x128xf32>
      %503 = arith.addf %497, %502 : vector<18x128xf32>
      %c7_i32_133 = arith.constant 7 : i32
      %504 = arith.addi %463, %c7_i32_133 : i32
      %505 = arith.index_cast %504 : i32 to index
      %506 = memref.load %arg1[%505] : memref<288xf32, #tpu.memory_space<smem>>
      %507 = vector.broadcast %506 : f32 to vector<18x128xf32>
      %508 = arith.mulf %507, %89 : vector<18x128xf32>
      %509 = arith.addf %503, %508 : vector<18x128xf32>
      %c8_i32_134 = arith.constant 8 : i32
      %510 = arith.addi %463, %c8_i32_134 : i32
      %511 = arith.index_cast %510 : i32 to index
      %512 = memref.load %arg1[%511] : memref<288xf32, #tpu.memory_space<smem>>
      %513 = vector.broadcast %512 : f32 to vector<18x128xf32>
      %514 = arith.mulf %513, %90 : vector<18x128xf32>
      %515 = arith.addf %509, %514 : vector<18x128xf32>
      %516 = arith.index_cast %462 : i32 to index
      %517 = memref.load %arg2[%516] : memref<32xf32, #tpu.memory_space<smem>>
      %518 = vector.broadcast %517 : f32 to vector<18x128xf32>
      %519 = arith.addf %515, %518 : vector<18x128xf32>
      %cst_135 = arith.constant 0.000000e+00 : f32
      %520 = vector.broadcast %cst_135 : f32 to vector<18x128xf32>
      %521 = arith.maximumf %519, %520 : vector<18x128xf32>
      %cst_136 = arith.constant 0.000000e+00 : f32
      %522 = vector.broadcast %cst_136 : f32 to vector<18x128xf32>
      %523 = arith.select %5, %521, %522 : vector<18x128xi1>, vector<18x128xf32>
      %c9_i32_137 = arith.constant 9 : i32
      %524 = arith.muli %462, %c9_i32_137 : i32
      %c2_i32_138 = arith.constant 2 : i32
      %525 = arith.muli %524, %c2_i32_138 : i32
      %526 = vector.extract_strided_slice %523 {offsets = [0, 0], sizes = [16, 128], strides = [1, 1]} : vector<18x128xf32> to vector<16x128xf32>
      %c0_i32_139 = arith.constant 0 : i32
      %527 = arith.addi %525, %c0_i32_139 : i32
      %c0_i32_140 = arith.constant 0 : i32
      %528 = arith.addi %527, %c0_i32_140 : i32
      %529 = arith.index_cast %528 : i32 to index
      %530 = memref.load %arg3[%529] : memref<576xf32, #tpu.memory_space<smem>>
      %531 = vector.broadcast %530 : f32 to vector<16x128xf32>
      %532 = arith.mulf %531, %526 : vector<16x128xf32>
      %533 = arith.addf %428, %532 : vector<16x128xf32>
      %c1_i32_141 = arith.constant 1 : i32
      %534 = arith.addi %527, %c1_i32_141 : i32
      %535 = arith.index_cast %534 : i32 to index
      %536 = memref.load %arg3[%535] : memref<576xf32, #tpu.memory_space<smem>>
      %537 = vector.broadcast %536 : f32 to vector<16x128xf32>
      %538 = arith.mulf %537, %526 : vector<16x128xf32>
      %539 = arith.addf %434, %538 : vector<16x128xf32>
      %c2_i32_142 = arith.constant 2 : i32
      %540 = arith.addi %525, %c2_i32_142 : i32
      %c0_i32_143 = arith.constant 0 : i32
      %541 = arith.addi %540, %c0_i32_143 : i32
      %542 = arith.index_cast %541 : i32 to index
      %543 = memref.load %arg3[%542] : memref<576xf32, #tpu.memory_space<smem>>
      %544 = vector.broadcast %543 : f32 to vector<16x128xf32>
      %545 = arith.mulf %544, %526 : vector<16x128xf32>
      %546 = arith.addf %441, %545 : vector<16x128xf32>
      %c1_i32_144 = arith.constant 1 : i32
      %547 = arith.addi %540, %c1_i32_144 : i32
      %548 = arith.index_cast %547 : i32 to index
      %549 = memref.load %arg3[%548] : memref<576xf32, #tpu.memory_space<smem>>
      %550 = vector.broadcast %549 : f32 to vector<16x128xf32>
      %551 = arith.mulf %550, %526 : vector<16x128xf32>
      %552 = arith.addf %447, %551 : vector<16x128xf32>
      %c4_i32_145 = arith.constant 4 : i32
      %553 = arith.addi %525, %c4_i32_145 : i32
      %c0_i32_146 = arith.constant 0 : i32
      %554 = arith.addi %553, %c0_i32_146 : i32
      %555 = arith.index_cast %554 : i32 to index
      %556 = memref.load %arg3[%555] : memref<576xf32, #tpu.memory_space<smem>>
      %557 = vector.broadcast %556 : f32 to vector<16x128xf32>
      %558 = arith.mulf %557, %526 : vector<16x128xf32>
      %559 = arith.addf %454, %558 : vector<16x128xf32>
      %c1_i32_147 = arith.constant 1 : i32
      %560 = arith.addi %553, %c1_i32_147 : i32
      %561 = arith.index_cast %560 : i32 to index
      %562 = memref.load %arg3[%561] : memref<576xf32, #tpu.memory_space<smem>>
      %563 = vector.broadcast %562 : f32 to vector<16x128xf32>
      %564 = arith.mulf %563, %526 : vector<16x128xf32>
      %565 = arith.addf %460, %564 : vector<16x128xf32>
      %566 = vector.extract_strided_slice %523 {offsets = [1, 0], sizes = [16, 128], strides = [1, 1]} : vector<18x128xf32> to vector<16x128xf32>
      %c6_i32_148 = arith.constant 6 : i32
      %567 = arith.addi %525, %c6_i32_148 : i32
      %c0_i32_149 = arith.constant 0 : i32
      %568 = arith.addi %567, %c0_i32_149 : i32
      %569 = arith.index_cast %568 : i32 to index
      %570 = memref.load %arg3[%569] : memref<576xf32, #tpu.memory_space<smem>>
      %571 = vector.broadcast %570 : f32 to vector<16x128xf32>
      %572 = arith.mulf %571, %566 : vector<16x128xf32>
      %573 = arith.addf %533, %572 : vector<16x128xf32>
      %c1_i32_150 = arith.constant 1 : i32
      %574 = arith.addi %567, %c1_i32_150 : i32
      %575 = arith.index_cast %574 : i32 to index
      %576 = memref.load %arg3[%575] : memref<576xf32, #tpu.memory_space<smem>>
      %577 = vector.broadcast %576 : f32 to vector<16x128xf32>
      %578 = arith.mulf %577, %566 : vector<16x128xf32>
      %579 = arith.addf %539, %578 : vector<16x128xf32>
      %c8_i32_151 = arith.constant 8 : i32
      %580 = arith.addi %525, %c8_i32_151 : i32
      %c0_i32_152 = arith.constant 0 : i32
      %581 = arith.addi %580, %c0_i32_152 : i32
      %582 = arith.index_cast %581 : i32 to index
      %583 = memref.load %arg3[%582] : memref<576xf32, #tpu.memory_space<smem>>
      %584 = vector.broadcast %583 : f32 to vector<16x128xf32>
      %585 = arith.mulf %584, %566 : vector<16x128xf32>
      %586 = arith.addf %546, %585 : vector<16x128xf32>
      %c1_i32_153 = arith.constant 1 : i32
      %587 = arith.addi %580, %c1_i32_153 : i32
      %588 = arith.index_cast %587 : i32 to index
      %589 = memref.load %arg3[%588] : memref<576xf32, #tpu.memory_space<smem>>
      %590 = vector.broadcast %589 : f32 to vector<16x128xf32>
      %591 = arith.mulf %590, %566 : vector<16x128xf32>
      %592 = arith.addf %552, %591 : vector<16x128xf32>
      %c10_i32_154 = arith.constant 10 : i32
      %593 = arith.addi %525, %c10_i32_154 : i32
      %c0_i32_155 = arith.constant 0 : i32
      %594 = arith.addi %593, %c0_i32_155 : i32
      %595 = arith.index_cast %594 : i32 to index
      %596 = memref.load %arg3[%595] : memref<576xf32, #tpu.memory_space<smem>>
      %597 = vector.broadcast %596 : f32 to vector<16x128xf32>
      %598 = arith.mulf %597, %566 : vector<16x128xf32>
      %599 = arith.addf %559, %598 : vector<16x128xf32>
      %c1_i32_156 = arith.constant 1 : i32
      %600 = arith.addi %593, %c1_i32_156 : i32
      %601 = arith.index_cast %600 : i32 to index
      %602 = memref.load %arg3[%601] : memref<576xf32, #tpu.memory_space<smem>>
      %603 = vector.broadcast %602 : f32 to vector<16x128xf32>
      %604 = arith.mulf %603, %566 : vector<16x128xf32>
      %605 = arith.addf %565, %604 : vector<16x128xf32>
      %606 = vector.extract_strided_slice %523 {offsets = [2, 0], sizes = [16, 128], strides = [1, 1]} : vector<18x128xf32> to vector<16x128xf32>
      %c12_i32_157 = arith.constant 12 : i32
      %607 = arith.addi %525, %c12_i32_157 : i32
      %c0_i32_158 = arith.constant 0 : i32
      %608 = arith.addi %607, %c0_i32_158 : i32
      %609 = arith.index_cast %608 : i32 to index
      %610 = memref.load %arg3[%609] : memref<576xf32, #tpu.memory_space<smem>>
      %611 = vector.broadcast %610 : f32 to vector<16x128xf32>
      %612 = arith.mulf %611, %606 : vector<16x128xf32>
      %613 = arith.addf %573, %612 : vector<16x128xf32>
      %c1_i32_159 = arith.constant 1 : i32
      %614 = arith.addi %607, %c1_i32_159 : i32
      %615 = arith.index_cast %614 : i32 to index
      %616 = memref.load %arg3[%615] : memref<576xf32, #tpu.memory_space<smem>>
      %617 = vector.broadcast %616 : f32 to vector<16x128xf32>
      %618 = arith.mulf %617, %606 : vector<16x128xf32>
      %619 = arith.addf %579, %618 : vector<16x128xf32>
      %c14_i32_160 = arith.constant 14 : i32
      %620 = arith.addi %525, %c14_i32_160 : i32
      %c0_i32_161 = arith.constant 0 : i32
      %621 = arith.addi %620, %c0_i32_161 : i32
      %622 = arith.index_cast %621 : i32 to index
      %623 = memref.load %arg3[%622] : memref<576xf32, #tpu.memory_space<smem>>
      %624 = vector.broadcast %623 : f32 to vector<16x128xf32>
      %625 = arith.mulf %624, %606 : vector<16x128xf32>
      %626 = arith.addf %586, %625 : vector<16x128xf32>
      %c1_i32_162 = arith.constant 1 : i32
      %627 = arith.addi %620, %c1_i32_162 : i32
      %628 = arith.index_cast %627 : i32 to index
      %629 = memref.load %arg3[%628] : memref<576xf32, #tpu.memory_space<smem>>
      %630 = vector.broadcast %629 : f32 to vector<16x128xf32>
      %631 = arith.mulf %630, %606 : vector<16x128xf32>
      %632 = arith.addf %592, %631 : vector<16x128xf32>
      %c16_i32_163 = arith.constant 16 : i32
      %633 = arith.addi %525, %c16_i32_163 : i32
      %c0_i32_164 = arith.constant 0 : i32
      %634 = arith.addi %633, %c0_i32_164 : i32
      %635 = arith.index_cast %634 : i32 to index
      %636 = memref.load %arg3[%635] : memref<576xf32, #tpu.memory_space<smem>>
      %637 = vector.broadcast %636 : f32 to vector<16x128xf32>
      %638 = arith.mulf %637, %606 : vector<16x128xf32>
      %639 = arith.addf %599, %638 : vector<16x128xf32>
      %c1_i32_165 = arith.constant 1 : i32
      %640 = arith.addi %633, %c1_i32_165 : i32
      %641 = arith.index_cast %640 : i32 to index
      %642 = memref.load %arg3[%641] : memref<576xf32, #tpu.memory_space<smem>>
      %643 = vector.broadcast %642 : f32 to vector<16x128xf32>
      %644 = arith.mulf %643, %606 : vector<16x128xf32>
      %645 = arith.addf %605, %644 : vector<16x128xf32>
      %c4_i32_166 = arith.constant 4 : i32
      %646 = arith.muli %arg7, %c4_i32_166 : i32
      %c3_i32_167 = arith.constant 3 : i32
      %647 = arith.addi %646, %c3_i32_167 : i32
      %c9_i32_168 = arith.constant 9 : i32
      %648 = arith.muli %647, %c9_i32_168 : i32
      %649 = arith.index_cast %648 : i32 to index
      %650 = memref.load %arg1[%649] : memref<288xf32, #tpu.memory_space<smem>>
      %651 = vector.broadcast %650 : f32 to vector<18x128xf32>
      %652 = arith.mulf %651, %82 : vector<18x128xf32>
      %c1_i32_169 = arith.constant 1 : i32
      %653 = arith.addi %648, %c1_i32_169 : i32
      %654 = arith.index_cast %653 : i32 to index
      %655 = memref.load %arg1[%654] : memref<288xf32, #tpu.memory_space<smem>>
      %656 = vector.broadcast %655 : f32 to vector<18x128xf32>
      %657 = arith.mulf %656, %83 : vector<18x128xf32>
      %658 = arith.addf %652, %657 : vector<18x128xf32>
      %c2_i32_170 = arith.constant 2 : i32
      %659 = arith.addi %648, %c2_i32_170 : i32
      %660 = arith.index_cast %659 : i32 to index
      %661 = memref.load %arg1[%660] : memref<288xf32, #tpu.memory_space<smem>>
      %662 = vector.broadcast %661 : f32 to vector<18x128xf32>
      %663 = arith.mulf %662, %84 : vector<18x128xf32>
      %664 = arith.addf %658, %663 : vector<18x128xf32>
      %c3_i32_171 = arith.constant 3 : i32
      %665 = arith.addi %648, %c3_i32_171 : i32
      %666 = arith.index_cast %665 : i32 to index
      %667 = memref.load %arg1[%666] : memref<288xf32, #tpu.memory_space<smem>>
      %668 = vector.broadcast %667 : f32 to vector<18x128xf32>
      %669 = arith.mulf %668, %85 : vector<18x128xf32>
      %670 = arith.addf %664, %669 : vector<18x128xf32>
      %c4_i32_172 = arith.constant 4 : i32
      %671 = arith.addi %648, %c4_i32_172 : i32
      %672 = arith.index_cast %671 : i32 to index
      %673 = memref.load %arg1[%672] : memref<288xf32, #tpu.memory_space<smem>>
      %674 = vector.broadcast %673 : f32 to vector<18x128xf32>
      %675 = arith.mulf %674, %86 : vector<18x128xf32>
      %676 = arith.addf %670, %675 : vector<18x128xf32>
      %c5_i32_173 = arith.constant 5 : i32
      %677 = arith.addi %648, %c5_i32_173 : i32
      %678 = arith.index_cast %677 : i32 to index
      %679 = memref.load %arg1[%678] : memref<288xf32, #tpu.memory_space<smem>>
      %680 = vector.broadcast %679 : f32 to vector<18x128xf32>
      %681 = arith.mulf %680, %87 : vector<18x128xf32>
      %682 = arith.addf %676, %681 : vector<18x128xf32>
      %c6_i32_174 = arith.constant 6 : i32
      %683 = arith.addi %648, %c6_i32_174 : i32
      %684 = arith.index_cast %683 : i32 to index
      %685 = memref.load %arg1[%684] : memref<288xf32, #tpu.memory_space<smem>>
      %686 = vector.broadcast %685 : f32 to vector<18x128xf32>
      %687 = arith.mulf %686, %88 : vector<18x128xf32>
      %688 = arith.addf %682, %687 : vector<18x128xf32>
      %c7_i32_175 = arith.constant 7 : i32
      %689 = arith.addi %648, %c7_i32_175 : i32
      %690 = arith.index_cast %689 : i32 to index
      %691 = memref.load %arg1[%690] : memref<288xf32, #tpu.memory_space<smem>>
      %692 = vector.broadcast %691 : f32 to vector<18x128xf32>
      %693 = arith.mulf %692, %89 : vector<18x128xf32>
      %694 = arith.addf %688, %693 : vector<18x128xf32>
      %c8_i32_176 = arith.constant 8 : i32
      %695 = arith.addi %648, %c8_i32_176 : i32
      %696 = arith.index_cast %695 : i32 to index
      %697 = memref.load %arg1[%696] : memref<288xf32, #tpu.memory_space<smem>>
      %698 = vector.broadcast %697 : f32 to vector<18x128xf32>
      %699 = arith.mulf %698, %90 : vector<18x128xf32>
      %700 = arith.addf %694, %699 : vector<18x128xf32>
      %701 = arith.index_cast %647 : i32 to index
      %702 = memref.load %arg2[%701] : memref<32xf32, #tpu.memory_space<smem>>
      %703 = vector.broadcast %702 : f32 to vector<18x128xf32>
      %704 = arith.addf %700, %703 : vector<18x128xf32>
      %cst_177 = arith.constant 0.000000e+00 : f32
      %705 = vector.broadcast %cst_177 : f32 to vector<18x128xf32>
      %706 = arith.maximumf %704, %705 : vector<18x128xf32>
      %cst_178 = arith.constant 0.000000e+00 : f32
      %707 = vector.broadcast %cst_178 : f32 to vector<18x128xf32>
      %708 = arith.select %5, %706, %707 : vector<18x128xi1>, vector<18x128xf32>
      %c9_i32_179 = arith.constant 9 : i32
      %709 = arith.muli %647, %c9_i32_179 : i32
      %c2_i32_180 = arith.constant 2 : i32
      %710 = arith.muli %709, %c2_i32_180 : i32
      %711 = vector.extract_strided_slice %708 {offsets = [0, 0], sizes = [16, 128], strides = [1, 1]} : vector<18x128xf32> to vector<16x128xf32>
      %c0_i32_181 = arith.constant 0 : i32
      %712 = arith.addi %710, %c0_i32_181 : i32
      %c0_i32_182 = arith.constant 0 : i32
      %713 = arith.addi %712, %c0_i32_182 : i32
      %714 = arith.index_cast %713 : i32 to index
      %715 = memref.load %arg3[%714] : memref<576xf32, #tpu.memory_space<smem>>
      %716 = vector.broadcast %715 : f32 to vector<16x128xf32>
      %717 = arith.mulf %716, %711 : vector<16x128xf32>
      %718 = arith.addf %613, %717 : vector<16x128xf32>
      %c1_i32_183 = arith.constant 1 : i32
      %719 = arith.addi %712, %c1_i32_183 : i32
      %720 = arith.index_cast %719 : i32 to index
      %721 = memref.load %arg3[%720] : memref<576xf32, #tpu.memory_space<smem>>
      %722 = vector.broadcast %721 : f32 to vector<16x128xf32>
      %723 = arith.mulf %722, %711 : vector<16x128xf32>
      %724 = arith.addf %619, %723 : vector<16x128xf32>
      %c2_i32_184 = arith.constant 2 : i32
      %725 = arith.addi %710, %c2_i32_184 : i32
      %c0_i32_185 = arith.constant 0 : i32
      %726 = arith.addi %725, %c0_i32_185 : i32
      %727 = arith.index_cast %726 : i32 to index
      %728 = memref.load %arg3[%727] : memref<576xf32, #tpu.memory_space<smem>>
      %729 = vector.broadcast %728 : f32 to vector<16x128xf32>
      %730 = arith.mulf %729, %711 : vector<16x128xf32>
      %731 = arith.addf %626, %730 : vector<16x128xf32>
      %c1_i32_186 = arith.constant 1 : i32
      %732 = arith.addi %725, %c1_i32_186 : i32
      %733 = arith.index_cast %732 : i32 to index
      %734 = memref.load %arg3[%733] : memref<576xf32, #tpu.memory_space<smem>>
      %735 = vector.broadcast %734 : f32 to vector<16x128xf32>
      %736 = arith.mulf %735, %711 : vector<16x128xf32>
      %737 = arith.addf %632, %736 : vector<16x128xf32>
      %c4_i32_187 = arith.constant 4 : i32
      %738 = arith.addi %710, %c4_i32_187 : i32
      %c0_i32_188 = arith.constant 0 : i32
      %739 = arith.addi %738, %c0_i32_188 : i32
      %740 = arith.index_cast %739 : i32 to index
      %741 = memref.load %arg3[%740] : memref<576xf32, #tpu.memory_space<smem>>
      %742 = vector.broadcast %741 : f32 to vector<16x128xf32>
      %743 = arith.mulf %742, %711 : vector<16x128xf32>
      %744 = arith.addf %639, %743 : vector<16x128xf32>
      %c1_i32_189 = arith.constant 1 : i32
      %745 = arith.addi %738, %c1_i32_189 : i32
      %746 = arith.index_cast %745 : i32 to index
      %747 = memref.load %arg3[%746] : memref<576xf32, #tpu.memory_space<smem>>
      %748 = vector.broadcast %747 : f32 to vector<16x128xf32>
      %749 = arith.mulf %748, %711 : vector<16x128xf32>
      %750 = arith.addf %645, %749 : vector<16x128xf32>
      %751 = vector.extract_strided_slice %708 {offsets = [1, 0], sizes = [16, 128], strides = [1, 1]} : vector<18x128xf32> to vector<16x128xf32>
      %c6_i32_190 = arith.constant 6 : i32
      %752 = arith.addi %710, %c6_i32_190 : i32
      %c0_i32_191 = arith.constant 0 : i32
      %753 = arith.addi %752, %c0_i32_191 : i32
      %754 = arith.index_cast %753 : i32 to index
      %755 = memref.load %arg3[%754] : memref<576xf32, #tpu.memory_space<smem>>
      %756 = vector.broadcast %755 : f32 to vector<16x128xf32>
      %757 = arith.mulf %756, %751 : vector<16x128xf32>
      %758 = arith.addf %718, %757 : vector<16x128xf32>
      %c1_i32_192 = arith.constant 1 : i32
      %759 = arith.addi %752, %c1_i32_192 : i32
      %760 = arith.index_cast %759 : i32 to index
      %761 = memref.load %arg3[%760] : memref<576xf32, #tpu.memory_space<smem>>
      %762 = vector.broadcast %761 : f32 to vector<16x128xf32>
      %763 = arith.mulf %762, %751 : vector<16x128xf32>
      %764 = arith.addf %724, %763 : vector<16x128xf32>
      %c8_i32_193 = arith.constant 8 : i32
      %765 = arith.addi %710, %c8_i32_193 : i32
      %c0_i32_194 = arith.constant 0 : i32
      %766 = arith.addi %765, %c0_i32_194 : i32
      %767 = arith.index_cast %766 : i32 to index
      %768 = memref.load %arg3[%767] : memref<576xf32, #tpu.memory_space<smem>>
      %769 = vector.broadcast %768 : f32 to vector<16x128xf32>
      %770 = arith.mulf %769, %751 : vector<16x128xf32>
      %771 = arith.addf %731, %770 : vector<16x128xf32>
      %c1_i32_195 = arith.constant 1 : i32
      %772 = arith.addi %765, %c1_i32_195 : i32
      %773 = arith.index_cast %772 : i32 to index
      %774 = memref.load %arg3[%773] : memref<576xf32, #tpu.memory_space<smem>>
      %775 = vector.broadcast %774 : f32 to vector<16x128xf32>
      %776 = arith.mulf %775, %751 : vector<16x128xf32>
      %777 = arith.addf %737, %776 : vector<16x128xf32>
      %c10_i32_196 = arith.constant 10 : i32
      %778 = arith.addi %710, %c10_i32_196 : i32
      %c0_i32_197 = arith.constant 0 : i32
      %779 = arith.addi %778, %c0_i32_197 : i32
      %780 = arith.index_cast %779 : i32 to index
      %781 = memref.load %arg3[%780] : memref<576xf32, #tpu.memory_space<smem>>
      %782 = vector.broadcast %781 : f32 to vector<16x128xf32>
      %783 = arith.mulf %782, %751 : vector<16x128xf32>
      %784 = arith.addf %744, %783 : vector<16x128xf32>
      %c1_i32_198 = arith.constant 1 : i32
      %785 = arith.addi %778, %c1_i32_198 : i32
      %786 = arith.index_cast %785 : i32 to index
      %787 = memref.load %arg3[%786] : memref<576xf32, #tpu.memory_space<smem>>
      %788 = vector.broadcast %787 : f32 to vector<16x128xf32>
      %789 = arith.mulf %788, %751 : vector<16x128xf32>
      %790 = arith.addf %750, %789 : vector<16x128xf32>
      %791 = vector.extract_strided_slice %708 {offsets = [2, 0], sizes = [16, 128], strides = [1, 1]} : vector<18x128xf32> to vector<16x128xf32>
      %c12_i32_199 = arith.constant 12 : i32
      %792 = arith.addi %710, %c12_i32_199 : i32
      %c0_i32_200 = arith.constant 0 : i32
      %793 = arith.addi %792, %c0_i32_200 : i32
      %794 = arith.index_cast %793 : i32 to index
      %795 = memref.load %arg3[%794] : memref<576xf32, #tpu.memory_space<smem>>
      %796 = vector.broadcast %795 : f32 to vector<16x128xf32>
      %797 = arith.mulf %796, %791 : vector<16x128xf32>
      %798 = arith.addf %758, %797 : vector<16x128xf32>
      %c1_i32_201 = arith.constant 1 : i32
      %799 = arith.addi %792, %c1_i32_201 : i32
      %800 = arith.index_cast %799 : i32 to index
      %801 = memref.load %arg3[%800] : memref<576xf32, #tpu.memory_space<smem>>
      %802 = vector.broadcast %801 : f32 to vector<16x128xf32>
      %803 = arith.mulf %802, %791 : vector<16x128xf32>
      %804 = arith.addf %764, %803 : vector<16x128xf32>
      %c14_i32_202 = arith.constant 14 : i32
      %805 = arith.addi %710, %c14_i32_202 : i32
      %c0_i32_203 = arith.constant 0 : i32
      %806 = arith.addi %805, %c0_i32_203 : i32
      %807 = arith.index_cast %806 : i32 to index
      %808 = memref.load %arg3[%807] : memref<576xf32, #tpu.memory_space<smem>>
      %809 = vector.broadcast %808 : f32 to vector<16x128xf32>
      %810 = arith.mulf %809, %791 : vector<16x128xf32>
      %811 = arith.addf %771, %810 : vector<16x128xf32>
      %c1_i32_204 = arith.constant 1 : i32
      %812 = arith.addi %805, %c1_i32_204 : i32
      %813 = arith.index_cast %812 : i32 to index
      %814 = memref.load %arg3[%813] : memref<576xf32, #tpu.memory_space<smem>>
      %815 = vector.broadcast %814 : f32 to vector<16x128xf32>
      %816 = arith.mulf %815, %791 : vector<16x128xf32>
      %817 = arith.addf %777, %816 : vector<16x128xf32>
      %c16_i32_205 = arith.constant 16 : i32
      %818 = arith.addi %710, %c16_i32_205 : i32
      %c0_i32_206 = arith.constant 0 : i32
      %819 = arith.addi %818, %c0_i32_206 : i32
      %820 = arith.index_cast %819 : i32 to index
      %821 = memref.load %arg3[%820] : memref<576xf32, #tpu.memory_space<smem>>
      %822 = vector.broadcast %821 : f32 to vector<16x128xf32>
      %823 = arith.mulf %822, %791 : vector<16x128xf32>
      %824 = arith.addf %784, %823 : vector<16x128xf32>
      %c1_i32_207 = arith.constant 1 : i32
      %825 = arith.addi %818, %c1_i32_207 : i32
      %826 = arith.index_cast %825 : i32 to index
      %827 = memref.load %arg3[%826] : memref<576xf32, #tpu.memory_space<smem>>
      %828 = vector.broadcast %827 : f32 to vector<16x128xf32>
      %829 = arith.mulf %828, %791 : vector<16x128xf32>
      %830 = arith.addf %790, %829 : vector<16x128xf32>
      scf.yield %798, %804, %811, %817, %824, %830 : vector<16x128xf32>, vector<16x128xf32>, vector<16x128xf32>, vector<16x128xf32>, vector<16x128xf32>, vector<16x128xf32>
    }
    %c8_i32_29 = arith.constant 8 : i32
    %49 = tpu.iota {dimensions = array<i32: 1>} : vector<16x128xi32>
    %c8_i32_30 = arith.constant 8 : i32
    %50 = vector.broadcast %c8_i32_30 : i32 to vector<16x128xi32>
    %51 = arith.cmpi sge, %49, %50 : vector<16x128xi32>
    %c120_i32_31 = arith.constant 120 : i32
    %52 = vector.broadcast %c120_i32_31 : i32 to vector<16x128xi32>
    %53 = arith.cmpi slt, %49, %52 : vector<16x128xi32>
    %c8_i32_32 = arith.constant 8 : i32
    %54 = tpu.dynamic_rotate %48#0 by %c8_i32_32 dim 1 : vector<16x128xf32>, i32 -> vector<16x128xf32>
    %cst_33 = arith.constant 0.000000e+00 : f32
    %55 = vector.broadcast %cst_33 : f32 to vector<16x128xf32>
    %56 = arith.select %51, %54, %55 : vector<16x128xi1>, vector<16x128xf32>
    %c120_i32_34 = arith.constant 120 : i32
    %57 = tpu.dynamic_rotate %48#4 by %c120_i32_34 dim 1 : vector<16x128xf32>, i32 -> vector<16x128xf32>
    %cst_35 = arith.constant 0.000000e+00 : f32
    %58 = vector.broadcast %cst_35 : f32 to vector<16x128xf32>
    %59 = arith.select %53, %57, %58 : vector<16x128xi1>, vector<16x128xf32>
    %60 = arith.addf %48#2, %56 : vector<16x128xf32>
    %61 = arith.addf %60, %59 : vector<16x128xf32>
    %c0_36 = arith.constant 0 : index
    %62 = memref.load %arg4[%c0_36] : memref<2xf32, #tpu.memory_space<smem>>
    %63 = vector.broadcast %62 : f32 to vector<16x128xf32>
    %64 = arith.addf %61, %63 : vector<16x128xf32>
    %c1_37 = arith.constant 1 : index
    %c0_38 = arith.constant 0 : index
    %c0_39 = arith.constant 0 : index
    %c0_40 = arith.constant 0 : index
    %65 = vector.load %arg6[%c1_37, %c0_38, %c0_39, %c0_40] : memref<2x2x16x128xf32, #tpu.memory_space<vmem>>, vector<1x1x16x128xf32>
    %66 = vector.shape_cast %65 : vector<1x1x16x128xf32> to vector<16x128xf32>
    %67 = vector.shape_cast %64 : vector<16x128xf32> to vector<1x1x16x128xf32>
    tpu.vector_store %arg6[%c1_37, %c0_38, %c0_39, %c0_40], %67 {strides = array<i32>} : memref<2x2x16x128xf32, #tpu.memory_space<vmem>>, vector<1x1x16x128xf32>,
    %c8_i32_41 = arith.constant 8 : i32
    %68 = tpu.dynamic_rotate %48#1 by %c8_i32_41 dim 1 : vector<16x128xf32>, i32 -> vector<16x128xf32>
    %cst_42 = arith.constant 0.000000e+00 : f32
    %69 = vector.broadcast %cst_42 : f32 to vector<16x128xf32>
    %70 = arith.select %51, %68, %69 : vector<16x128xi1>, vector<16x128xf32>
    %c120_i32_43 = arith.constant 120 : i32
    %71 = tpu.dynamic_rotate %48#5 by %c120_i32_43 dim 1 : vector<16x128xf32>, i32 -> vector<16x128xf32>
    %cst_44 = arith.constant 0.000000e+00 : f32
    %72 = vector.broadcast %cst_44 : f32 to vector<16x128xf32>
    %73 = arith.select %53, %71, %72 : vector<16x128xi1>, vector<16x128xf32>
    %74 = arith.addf %48#3, %70 : vector<16x128xf32>
    %75 = arith.addf %74, %73 : vector<16x128xf32>
    %c1_45 = arith.constant 1 : index
    %76 = memref.load %arg4[%c1_45] : memref<2xf32, #tpu.memory_space<smem>>
    %77 = vector.broadcast %76 : f32 to vector<16x128xf32>
    %78 = arith.addf %75, %77 : vector<16x128xf32>
    %c1_46 = arith.constant 1 : index
    %c1_47 = arith.constant 1 : index
    %c0_48 = arith.constant 0 : index
    %c0_49 = arith.constant 0 : index
    %79 = vector.load %arg6[%c1_46, %c1_47, %c0_48, %c0_49] : memref<2x2x16x128xf32, #tpu.memory_space<vmem>>, vector<1x1x16x128xf32>
    %80 = vector.shape_cast %79 : vector<1x1x16x128xf32> to vector<16x128xf32>
    %81 = vector.shape_cast %78 : vector<16x128xf32> to vector<1x1x16x128xf32>
    tpu.vector_store %arg6[%c1_46, %c1_47, %c0_48, %c0_49], %81 {strides = array<i32>} : memref<2x2x16x128xf32, #tpu.memory_space<vmem>>, vector<1x1x16x128xf32>,
    return
  }
  func.func @transform_0(%arg0: i32) -> i32 {
    %c0_i32 = arith.constant 0 : i32
    %c0_i32_0 = arith.constant 0 : i32
    return %c0_i32 : i32
  }
  func.func @transform_1(%arg0: i32) -> i32 {
    %c0_i32 = arith.constant 0 : i32
    %c0_i32_0 = arith.constant 0 : i32
    return %c0_i32 : i32
  }
  func.func @transform_2(%arg0: i32) -> i32 {
    %c0_i32 = arith.constant 0 : i32
    %c0_i32_0 = arith.constant 0 : i32
    return %c0_i32 : i32
  }
  func.func @transform_3(%arg0: i32) -> i32 {
    %c0_i32 = arith.constant 0 : i32
    %c0_i32_0 = arith.constant 0 : i32
    return %c0_i32 : i32
  }
  func.func @transform_4(%arg0: i32) -> (i32, i32, i32) {
    %c0_i32 = arith.constant 0 : i32
    %c0_i32_0 = arith.constant 0 : i32
    %c0_i32_1 = arith.constant 0 : i32
    return %arg0, %c0_i32, %c0_i32_0 : i32, i32, i32
  }
  func.func @transform_5(%arg0: i32) -> (i32, i32, i32, i32) {
    %c0_i32 = arith.constant 0 : i32
    %c0_i32_0 = arith.constant 0 : i32
    %c0_i32_1 = arith.constant 0 : i32
    %c0_i32_2 = arith.constant 0 : i32
    return %arg0, %c0_i32, %c0_i32_0, %c0_i32_1 : i32, i32, i32, i32
  }
}

</mosaic_0001>

<llo_original>
// kernel: parallel_model_forward.1
$region0: #{parallel_model_forward.1}
  #allocation0 [shape = 'u32[]', space=smem, size = 0x4, offset = 0x4, fixed_abs, tag = 'smem constant byte address 0x4 - core index']
  #allocation1 [shape = 'u32[144,128]{1,0:T(1,128)}', space=vmem, size = 0x12000, scoped, tag = 'internal scratch']
  %s0 = inlined_call_operand.vmem [shape: f32[288], index: 0, kind: input, shape index: {}]
  %s1 = inlined_call_operand.vmem [shape: f32[32], index: 1, kind: input, shape index: {}]
  %s2 = inlined_call_operand.vmem [shape: f32[576], index: 2, kind: input, shape index: {}]
  %s3 = inlined_call_operand.vmem [shape: f32[2], index: 3, kind: input, shape index: {}]
  %s4 = inlined_call_operand.vmem [shape: f32[4,20,144], index: 4, kind: input, shape index: {}]
  %s5 = inlined_call_operand.vmem [shape: f32[4,2,16,128], index: 5, kind: output, shape index: {}]
  %s6 = sld [smem:[#allocation0]]
  $region83: #{parallel_model_forward.1} parent=0
    _
  %s8 = ssub.s32 1, %s6
  %s9 = scalar_select 0, %s8, %s6
  $region1: #{parallel_model_forward.1} parent=0
    #allocation2 [shape = 'u8[1536]{0}', space=smem, size = 0x600, scoped, tag = 'input window, operand 0, single buffered']
    #allocation3 [shape = 's32[2]{0}', space=sflag, size = 0x8, scoped, tag = 'scoped memory for parallel_model_forward.1']
    #allocation4 [shape = 'u8[512]{0}', space=smem, size = 0x200, scoped, tag = 'input window, operand 1, single buffered']
    #allocation5 [shape = 's32[1]{0}', space=sflag, size = 0x4, scoped, tag = 'scoped memory for parallel_model_forward.1']
    #allocation6 [shape = 'u8[2560]{0}', space=smem, size = 0xa00, scoped, tag = 'input window, operand 2, single buffered']
    #allocation7 [shape = 'u8[512]{0}', space=smem, size = 0x200, scoped, tag = 'input window, operand 3, single buffered']
    #allocation8 [shape = 's32[1]{0}', space=sflag, size = 0x4, scoped, tag = 'scoped memory for parallel_model_forward.1']
    %10 = vsyncpa [#allocation3], 0
    %11 = vsyncpa [#allocation5], 0
    %12 = vsyncpa [#allocation8], 0
    loop: start=0, step=1, limit=4
    $region2: #{parallel_model_forward.1} parent=1 // loop_pre_header
      _
    $region3: #{parallel_model_forward.1} parent=1 // loop_header
      %s14 = sphi 0, %s18
      %p15 = scmp.ge.s32.totalorder %s14, 4
      %s22 = sphi 0, %s22
      %s24 = sphi 0, %s22
      %s25 = sphi 0, %s24
      %s39 = sphi 0, %s25
      %s43 = sphi 0, %s43
      %s45 = sphi 0, %s43
      %s46 = sphi 0, %s45
      %s60 = sphi 0, %s46
      %s64 = sphi 0, %s64
      %s66 = sphi 0, %s64
      %s67 = sphi 0, %s66
      %s81 = sphi 0, %s67
      %s85 = sphi 0, %s85
      %s87 = sphi 0, %s85
      %s88 = sphi 0, %s87
      %s102 = sphi 0, %s88
      %s108 = sphi 0, %s110
      %s111 = sphi 0, %s108
      %s112 = sphi 0, %s111
      %s128 = sphi 0, %s112
      %s134 = sphi 0, %s136
      %s137 = sphi 0, %s134
      %s138 = sphi 0, %s137
      %s154 = sphi 0, %s138
    $region4: #{parallel_model_forward.1} parent=1 // loop_header_branch
      %17 = sbr.rel (%p15) target = $region8
    $region5: #{parallel_model_forward.1} parent=1 // loop_body
      %s19 = ssub.s32 %s14, 1
      %s20 = ssub.s32 %s14, 2
      %s21 = sadd.s32 %s14, 1
      %s23 = sadd.s32 %s22, 1
      %p26 = scmp.eq.s32.totalorder %s14, 1
      %p27 = scmp.ne.s32.totalorder %s22, %s24
      %p28 = scmp.eq.s32.totalorder %s14, 0
      %p29 = por %p27, %p28
      %p30 = scmp.ne.s32.totalorder %s22, %s24
      %p31 = scmp.eq.s32.totalorder %s19, 1
      %p32 = por %p30, %p31
      %p33 = scmp.ne.s32.totalorder %s24, %s25
      %p34 = scmp.eq.s32.totalorder %s19, 0
      %p35 = por %p33, %p34
      %p36 = scmp.ne.s32.totalorder %s24, %s25
      %p37 = scmp.eq.s32.totalorder %s20, 1
      %p38 = por %p36, %p37
      %p40 = scmp.ne.s32.totalorder %s25, %s39
      %p41 = scmp.eq.s32.totalorder %s20, 0
      %p42 = por %p40, %p41
      %s44 = sadd.s32 %s43, 1
      %p47 = scmp.eq.s32.totalorder %s14, 1
      %p48 = scmp.ne.s32.totalorder %s43, %s45
      %p49 = scmp.eq.s32.totalorder %s14, 0
      %p50 = por %p48, %p49
      %p51 = scmp.ne.s32.totalorder %s43, %s45
      %p52 = scmp.eq.s32.totalorder %s19, 1
      %p53 = por %p51, %p52
      %p54 = scmp.ne.s32.totalorder %s45, %s46
      %p55 = scmp.eq.s32.totalorder %s19, 0
      %p56 = por %p54, %p55
      %p57 = scmp.ne.s32.totalorder %s45, %s46
      %p58 = scmp.eq.s32.totalorder %s20, 1
      %p59 = por %p57, %p58
      %p61 = scmp.ne.s32.totalorder %s46, %s60
      %p62 = scmp.eq.s32.totalorder %s20, 0
      %p63 = por %p61, %p62
      %s65 = sadd.s32 %s64, 1
      %p68 = scmp.eq.s32.totalorder %s14, 1
      %p69 = scmp.ne.s32.totalorder %s64, %s66
      %p70 = scmp.eq.s32.totalorder %s14, 0
      %p71 = por %p69, %p70
      %p72 = scmp.ne.s32.totalorder %s64, %s66
      %p73 = scmp.eq.s32.totalorder %s19, 1
      %p74 = por %p72, %p73
      %p75 = scmp.ne.s32.totalorder %s66, %s67
      %p76 = scmp.eq.s32.totalorder %s19, 0
      %p77 = por %p75, %p76
      %p78 = scmp.ne.s32.totalorder %s66, %s67
      %p79 = scmp.eq.s32.totalorder %s20, 1
      %p80 = por %p78, %p79
      %p82 = scmp.ne.s32.totalorder %s67, %s81
      %p83 = scmp.eq.s32.totalorder %s20, 0
      %p84 = por %p82, %p83
      %s86 = sadd.s32 %s85, 1
      %p89 = scmp.eq.s32.totalorder %s14, 1
      %p90 = scmp.ne.s32.totalorder %s85, %s87
      %p91 = scmp.eq.s32.totalorder %s14, 0
      %p92 = por %p90, %p91
      %p93 = scmp.ne.s32.totalorder %s85, %s87
      %p94 = scmp.eq.s32.totalorder %s19, 1
      %p95 = por %p93, %p94
      %p96 = scmp.ne.s32.totalorder %s87, %s88
      %p97 = scmp.eq.s32.totalorder %s19, 0
      %p98 = por %p96, %p97
      %p99 = scmp.ne.s32.totalorder %s87, %s88
      %p100 = scmp.eq.s32.totalorder %s20, 1
      %p101 = por %p99, %p100
      %p103 = scmp.ne.s32.totalorder %s88, %s102
      %p104 = scmp.eq.s32.totalorder %s20, 0
      %p105 = por %p103, %p104
      %s106 = ssub.s32 %s14, %s21
      %p107 = scmp.eq.s32.totalorder %s106, 0
      %s109 = sadd.s32 %s108, 1
      %s110 = scalar_select %p107, %s108, %s109
      %p113 = pneg %p107
      %p114 = scmp.eq.s32.totalorder %s14, 1
      %p115 = por %p113, %p114
      %p116 = scmp.ne.s32.totalorder %s108, %s111
      %p117 = scmp.eq.s32.totalorder %s14, 0
      %p118 = por %p116, %p117
      %p119 = scmp.ne.s32.totalorder %s108, %s111
      %p120 = scmp.eq.s32.totalorder %s19, 1
      %p121 = por %p119, %p120
      %p122 = scmp.ne.s32.totalorder %s111, %s112
      %p123 = scmp.eq.s32.totalorder %s19, 0
      %p124 = por %p122, %p123
      %p125 = scmp.ne.s32.totalorder %s111, %s112
      %p126 = scmp.eq.s32.totalorder %s20, 1
      %p127 = por %p125, %p126
      %p129 = scmp.ne.s32.totalorder %s112, %s128
      %p130 = scmp.eq.s32.totalorder %s20, 0
      %p131 = por %p129, %p130
      %s132 = ssub.s32 %s14, %s21
      %p133 = scmp.eq.s32.totalorder %s132, 0
      %s135 = sadd.s32 %s134, 1
      %s136 = scalar_select %p133, %s134, %s135
      %p139 = pneg %p133
      %p140 = scmp.eq.s32.totalorder %s14, 1
      %p141 = por %p139, %p140
      %p142 = scmp.ne.s32.totalorder %s134, %s137
      %p143 = scmp.eq.s32.totalorder %s14, 0
      %p144 = por %p142, %p143
      %p145 = scmp.ne.s32.totalorder %s134, %s137
      %p146 = scmp.eq.s32.totalorder %s19, 1
      %p147 = por %p145, %p146
      %p148 = scmp.ne.s32.totalorder %s137, %s138
      %p149 = scmp.eq.s32.totalorder %s19, 0
      %p150 = por %p148, %p149
      %p151 = scmp.ne.s32.totalorder %s137, %s138
      %p152 = scmp.eq.s32.totalorder %s20, 1
      %p153 = por %p151, %p152
      %p155 = scmp.ne.s32.totalorder %s138, %s154
      %p156 = scmp.eq.s32.totalorder %s20, 0
      %p157 = por %p155, %p156
      %p158 = scmp.le.s32.totalorder 1, %s14
      %p159 = scmp.lt.s32.totalorder %s14, 3
      %p160 = pnand %p158, %p159
      %p161 = pneg %p160
      // Predicated region
      $region9: #{parallel_model_forward.1} parent=5 // pred_check
        _
      $region10: #{parallel_model_forward.1} parent=5 // pred_check_branch
        %163 = sbr.rel (%p160) target = $region12
      $region11: #{parallel_model_forward.1} parent=5 // pred_region
        %s164 = ssub.s32 %s14, 1
        // Predicated region
        $region13: #{parallel_model_forward.1} parent=11 // pred_check
          %p165 = pneg %p35
        $region14: #{parallel_model_forward.1} parent=11 // pred_check_branch
          %167 = sbr.rel (%p165) target = $region16
        $region15: #{parallel_model_forward.1} parent=11 // pred_region
          %s169 = ssub.s32 48, 48
          %170 = vsyncadd [#allocation3], %s169
          %s172 = sshll.u32 %s0, 4
          %s173 = int_to_ptr.vmem [resolvable:$true] %s172
          %175 = dma.vmem_to_smem %s173, 48, [#allocation2], [#allocation3]
        $region16: #{parallel_model_forward.1} parent=11 // pred_fallthru
          _
        // Predicated region
        $region17: #{parallel_model_forward.1} parent=11 // pred_check
          %p176 = pneg %p56
        $region18: #{parallel_model_forward.1} parent=11 // pred_check_branch
          %178 = sbr.rel (%p176) target = $region20
        $region19: #{parallel_model_forward.1} parent=11 // pred_region
          %s180 = ssub.s32 16, 16
          %181 = vsyncadd [#allocation5], %s180
          %s183 = sshll.u32 %s1, 4
          %s184 = int_to_ptr.vmem [resolvable:$true] %s183
          %186 = dma.vmem_to_smem %s184, 16, [#allocation4], [#allocation5]
        $region20: #{parallel_model_forward.1} parent=11 // pred_fallthru
          _
        // Predicated region
        $region21: #{parallel_model_forward.1} parent=11 // pred_check
          %p187 = pneg %p77
        $region22: #{parallel_model_forward.1} parent=11 // pred_check_branch
          %189 = sbr.rel (%p187) target = $region24
        $region23: #{parallel_model_forward.1} parent=11 // pred_region
          %s191 = ssub.s32 80, 80
          %192 = vsyncadd [#allocation5], %s191
          %s194 = sshll.u32 %s2, 4
          %s195 = int_to_ptr.vmem [resolvable:$true] %s194
          %197 = dma.vmem_to_smem %s195, 80, [#allocation6], [#allocation5]
        $region24: #{parallel_model_forward.1} parent=11 // pred_fallthru
          _
        // Predicated region
        $region25: #{parallel_model_forward.1} parent=11 // pred_check
          %p198 = pneg %p98
        $region26: #{parallel_model_forward.1} parent=11 // pred_check_branch
          %200 = sbr.rel (%p198) target = $region28
        $region27: #{parallel_model_forward.1} parent=11 // pred_region
          %s202 = ssub.s32 16, 16
          %203 = vsyncadd [#allocation8], %s202
          %s205 = sshll.u32 %s3, 4
          %s206 = int_to_ptr.vmem [resolvable:$true] %s205
          %208 = dma.vmem_to_smem %s206, 16, [#allocation7], [#allocation8]
        $region28: #{parallel_model_forward.1} parent=11 // pred_fallthru
          _
      $region12: #{parallel_model_forward.1} parent=5 // pred_fallthru
        _
      %p209 = scmp.lt.s32.totalorder %s14, 2
      // Predicated region
      $region29: #{parallel_model_forward.1} parent=5 // pred_check
        %p210 = pneg %p209
      $region30: #{parallel_model_forward.1} parent=5 // pred_check_branch
        %212 = sbr.rel (%p210) target = $region32
      $region31: #{parallel_model_forward.1} parent=5 // pred_region
        // Predicated region
        $region33: #{parallel_model_forward.1} parent=31 // pred_check
          %p213 = pneg %p118
        $region34: #{parallel_model_forward.1} parent=31 // pred_check_branch
          %215 = sbr.rel (%p213) target = $region36
        $region35: #{parallel_model_forward.1} parent=31 // pred_region
          %s216 = smul.u32 2, %s14
          %p217 = scmp.lt.s32.totalorder %s216, 3
          %s218 = scalar_select %p217, %s216, 3
          %s219 = smul.addr %s218, 6
          %s220 = smul.addr %s219, 8
          %s221 = scalar_lea.vmem %s4, %s220
          %s222 = smul.u32 2, %s14
        $region36: #{parallel_model_forward.1} parent=31 // pred_fallthru
          _
      $region32: #{parallel_model_forward.1} parent=5 // pred_fallthru
        _
      %p223 = scmp.le.s32.totalorder 1, %s14
      %p224 = scmp.lt.s32.totalorder %s14, 3
      %p225 = pnand %p223, %p224
      %p226 = pneg %p225
      // Predicated region
      $region37: #{parallel_model_forward.1} parent=5 // pred_check
        _
      $region38: #{parallel_model_forward.1} parent=5 // pred_check_branch
        %228 = sbr.rel (%p225) target = $region40
      $region39: #{parallel_model_forward.1} parent=5 // pred_region
        %s229 = ssub.s32 %s14, 1
        // Predicated region
        $region41: #{parallel_model_forward.1} parent=39 // pred_check
          %p230 = pneg %p35
        $region42: #{parallel_model_forward.1} parent=39 // pred_check_branch
          %232 = sbr.rel (%p230) target = $region44
        $region43: #{parallel_model_forward.1} parent=39 // pred_region
          %233 = dma.done [#allocation3], 48
        $region44: #{parallel_model_forward.1} parent=39 // pred_fallthru
          _
        // Predicated region
        $region45: #{parallel_model_forward.1} parent=39 // pred_check
          %p234 = pneg %p56
        $region46: #{parallel_model_forward.1} parent=39 // pred_check_branch
          %236 = sbr.rel (%p234) target = $region48
        $region47: #{parallel_model_forward.1} parent=39 // pred_region
          %237 = dma.done [#allocation5], 16
        $region48: #{parallel_model_forward.1} parent=39 // pred_fallthru
          _
        // Predicated region
        $region49: #{parallel_model_forward.1} parent=39 // pred_check
          %p238 = pneg %p77
        $region50: #{parallel_model_forward.1} parent=39 // pred_check_branch
          %240 = sbr.rel (%p238) target = $region52
        $region51: #{parallel_model_forward.1} parent=39 // pred_region
          %241 = dma.done [#allocation5], 80
        $region52: #{parallel_model_forward.1} parent=39 // pred_fallthru
          _
        // Predicated region
        $region53: #{parallel_model_forward.1} parent=39 // pred_check
          %p242 = pneg %p98
        $region54: #{parallel_model_forward.1} parent=39 // pred_check_branch
          %244 = sbr.rel (%p242) target = $region56
        $region55: #{parallel_model_forward.1} parent=39 // pred_region
          %245 = dma.done [#allocation8], 16
        $region56: #{parallel_model_forward.1} parent=39 // pred_fallthru
          _
        %246 = sfence
        %p247 = pneg %p35
        %p248 = pneg %p32
        %p249 = pneg %p56
        %p250 = pneg %p53
        %p251 = pneg %p77
        %p252 = pneg %p74
        %p253 = pneg %p98
        %p254 = pneg %p95
        %s255 = smul.u32 2, %s19
        %p256 = scmp.lt.s32.totalorder %s255, 3
        %s257 = scalar_select %p256, %s255, 3
        %s258 = smul.addr %s257, 6
        %s259 = smul.addr %s258, 8
        %s260 = scalar_lea.vmem %s4, %s259
        %p261 = pneg %p124
        %p262 = pneg %p121
        %p263 = pneg %p150
        %p264 = pneg %p147
        %s265 = smul.u32 2, %s19
        %p266 = scmp.lt.s32.totalorder %s265, 3
        %s267 = scalar_select %p266, %s265, 3
        %s268 = smul.addr %s267, 4
        %s269 = smul.addr %s268, 8
        %s270 = scalar_lea.vmem %s5, %s269
        %s271 = smul.u32 2, %s19
        %p272 = scmp.lt.s32.totalorder %s271, 3
        %s273 = scalar_select %p272, %s271, 3
        %s274 = smul.addr %s273, 6
        %s275 = smul.addr %s274, 8
        %s276 = scalar_lea.vmem %s4, %s275
        %s277 = smul.u32 2, %s19
        %s278 = smul.u32 2, %s19
        %p279 = scmp.lt.s32.totalorder %s278, 3
        %s280 = scalar_select %p279, %s278, 3
        %s281 = smul.addr %s280, 4
        %s282 = smul.addr %s281, 8
        %s283 = scalar_lea.vmem %s5, %s282
        %s284 = smul.u32 2, %s19
        %v285 = vlaneseq
        %v286 = vshrl.u32 %v285, 7
        %v287 = vadd.s32 %v286, 8
        %v288 = vadd.s32 %v286, 16
        %vm289 = vcmp.ge.s32.totalorder %v286, 1
        %vm290 = vcmp.ge.s32.totalorder %v287, 1
        %vm291 = vcmp.ge.s32.totalorder %v288, 1
        %vm292 = vcmp.le.s32.totalorder %v286, 16
        %vm293 = vcmp.le.s32.totalorder %v287, 16
        %vm294 = vcmp.le.s32.totalorder %v288, 16
        %vm295 = vmand %vm289, %vm292
        %vm296 = vmand %vm290, %vm293
        %vm297 = vmand %vm291, %vm294
        %v298 = vld [vmem:[%s276] sm:$0xff]
        %v299 = vld [vmem:[%s276 + $0x8] sm:$0xff]
        %v300 = vld [vmem:[%s276 + $0x10] sm:$0xff]
        %v301 = vld [vmem:[%s276 + $0x18] sm:$0xff]
        %v302 = vld [vmem:[%s276 + $0x20] sm:$0xf]
        %v303 = vld [vmem:[%s276 + $0x28] sm:$0xf]
        loop: start=0, step=1, limit=8
        $region57: #{parallel_model_forward.1} parent=39 // loop_pre_header
          _
        $region58: #{parallel_model_forward.1} parent=39 // loop_header
          %s305 = sphi 0, %s309
          %p306 = scmp.ge.s32.totalorder %s305, 8
          %v310 = vphi 0.0, %v2522
          %v311 = vphi 0.0, %v2523
          %v312 = vphi 0.0, %v2540
          %v313 = vphi 0.0, %v2541
          %v314 = vphi 0.0, %v2558
          %v315 = vphi 0.0, %v2559
          %v316 = vphi 0.0, %v2576
          %v317 = vphi 0.0, %v2577
          %v318 = vphi 0.0, %v2594
          %v319 = vphi 0.0, %v2595
          %v320 = vphi 0.0, %v2612
          %v321 = vphi 0.0, %v2613
        $region59: #{parallel_model_forward.1} parent=39 // loop_header_branch
          %308 = sbr.rel (%p306) target = $region63
        $region60: #{parallel_model_forward.1} parent=39 // loop_body
          %s322 = smul.u32 %s305, 4
          %s323 = smul.u32 %s305, 36
          %s324 = sld [smem:[#allocation2 + %s323]]
          %v325 = vstv %s324
          %v326 = vmul.f32 %v325, %v298
          %v327 = vmul.f32 %v325, %v300
          %v328 = vmul.f32 %v325, %v302
          %s329 = sadd.s32 %s323, 1
          %s330 = sld [smem:[#allocation2 + %s329]]
          %v331 = vstv %s330
          %v332 = vmul.f32 %v331, %v298
          %v333 = vmul.f32 %v331, %v299
          %v334 = vmul.f32 %v331, %v300
          %v335 = vmul.f32 %v331, %v301
          %v336 = vmul.f32 %v331, %v302
          %v337 = vmul.f32 %v331, %v303
          %344 = vrot.lane.b32.xlu0 %v332, 120
          %v345 = vpop.permute.xlu0 %344
          %346 = vrot.lane.b32.xlu0 %v333, 120
          %v347 = vpop.permute.xlu0 %346
          %348 = vrot.lane.b32.xlu0 %v334, 120
          %v349 = vpop.permute.xlu0 %348
          %350 = vrot.lane.b32.xlu0 %v335, 120
          %v351 = vpop.permute.xlu0 %350
          %352 = vrot.lane.b32.xlu0 %v336, 120
          %v353 = vpop.permute.xlu0 %352
          %354 = vrot.lane.b32.xlu0 %v337, 120
          %v355 = vpop.permute.xlu0 %354
          %vm356 = vcmask 982016
          %v357 = vsel %vm356, %v345, %v347
          %v358 = vsel %vm356, %v349, %v351
          %v359 = vsel %vm356, %v353, %v355
          %v363 = vadd.f32 %v326, %v357
          %v364 = vadd.f32 %v327, %v358
          %v365 = vadd.f32 %v328, %v359
          %s366 = sadd.s32 %s323, 2
          %s367 = sld [smem:[#allocation2 + %s366]]
          %v368 = vstv %s367
          %v369 = vmul.f32 %v368, %v298
          %v370 = vmul.f32 %v368, %v299
          %v371 = vmul.f32 %v368, %v300
          %v372 = vmul.f32 %v368, %v301
          %v373 = vmul.f32 %v368, %v302
          %v374 = vmul.f32 %v368, %v303
          %381 = vrot.lane.b32.xlu0 %v369, 112
          %v382 = vpop.permute.xlu0 %381
          %383 = vrot.lane.b32.xlu0 %v370, 112
          %v384 = vpop.permute.xlu0 %383
          %385 = vrot.lane.b32.xlu0 %v371, 112
          %v386 = vpop.permute.xlu0 %385
          %387 = vrot.lane.b32.xlu0 %v372, 112
          %v388 = vpop.permute.xlu0 %387
          %389 = vrot.lane.b32.xlu0 %v373, 112
          %v390 = vpop.permute.xlu0 %389
          %391 = vrot.lane.b32.xlu0 %v374, 112
          %v392 = vpop.permute.xlu0 %391
          %vm393 = vcmask 916480
          %v394 = vsel %vm393, %v382, %v384
          %v395 = vsel %vm393, %v386, %v388
          %v396 = vsel %vm393, %v390, %v392
          %v400 = vadd.f32 %v363, %v394
          %v401 = vadd.f32 %v364, %v395
          %v402 = vadd.f32 %v365, %v396
          %s403 = sadd.s32 %s323, 3
          %s404 = sld [smem:[#allocation2 + %s403]]
          %v405 = vstv %s404
          %v406 = vmul.f32 %v405, %v298
          %v407 = vmul.f32 %v405, %v300
          %v408 = vmul.f32 %v405, %v302
          %vm412 = vcmask 1046528
          %v413 = vrot.slane %v406, 1
          %v414 = vrot.slane %v407, 1
          %v415 = vsel %vm412, %v413, %v414
          %v416 = vrot.slane %v408, 1
          %v417 = vsel %vm412, %v414, %v416
          %v421 = vadd.f32 %v400, %v415
          %v422 = vadd.f32 %v401, %v417
          %v423 = vadd.f32 %v402, %v416
          %s424 = sadd.s32 %s323, 4
          %s425 = sld [smem:[#allocation2 + %s424]]
          %v426 = vstv %s425
          %v427 = vmul.f32 %v426, %v298
          %v428 = vmul.f32 %v426, %v299
          %v429 = vmul.f32 %v426, %v300
          %v430 = vmul.f32 %v426, %v301
          %v431 = vmul.f32 %v426, %v302
          %v432 = vmul.f32 %v426, %v303
          %v439 = vrot.slane %v427, 1
          %v440 = vrot.slane %v429, 1
          %v441 = vsel %vm412, %v439, %v440
          %v442 = vrot.slane %v428, 1
          %v443 = vrot.slane %v430, 1
          %v444 = vsel %vm412, %v442, %v443
          %v445 = vrot.slane %v431, 1
          %v446 = vsel %vm412, %v440, %v445
          %v447 = vrot.slane %v432, 1
          %v448 = vsel %vm412, %v443, %v447
          %449 = vrot.lane.b32.xlu0 %v441, 120
          %v450 = vpop.permute.xlu0 %449
          %451 = vrot.lane.b32.xlu0 %v444, 120
          %v452 = vpop.permute.xlu0 %451
          %453 = vrot.lane.b32.xlu0 %v446, 120
          %v454 = vpop.permute.xlu0 %453
          %455 = vrot.lane.b32.xlu0 %v448, 120
          %v456 = vpop.permute.xlu0 %455
          %457 = vrot.lane.b32.xlu0 %v445, 120
          %v458 = vpop.permute.xlu0 %457
          %459 = vrot.lane.b32.xlu0 %v447, 120
          %v460 = vpop.permute.xlu0 %459
          %v461 = vsel %vm356, %v450, %v452
          %v462 = vsel %vm356, %v454, %v456
          %v463 = vsel %vm356, %v458, %v460
          %v467 = vadd.f32 %v421, %v461
          %v468 = vadd.f32 %v422, %v462
          %v469 = vadd.f32 %v423, %v463
          %s470 = sadd.s32 %s323, 5
          %s471 = sld [smem:[#allocation2 + %s470]]
          %v472 = vstv %s471
          %v473 = vmul.f32 %v472, %v298
          %v474 = vmul.f32 %v472, %v299
          %v475 = vmul.f32 %v472, %v300
          %v476 = vmul.f32 %v472, %v301
          %v477 = vmul.f32 %v472, %v302
          %v478 = vmul.f32 %v472, %v303
          %v485 = vrot.slane %v473, 1
          %v486 = vrot.slane %v475, 1
          %v487 = vsel %vm412, %v485, %v486
          %v488 = vrot.slane %v474, 1
          %v489 = vrot.slane %v476, 1
          %v490 = vsel %vm412, %v488, %v489
          %v491 = vrot.slane %v477, 1
          %v492 = vsel %vm412, %v486, %v491
          %v493 = vrot.slane %v478, 1
          %v494 = vsel %vm412, %v489, %v493
          %495 = vrot.lane.b32.xlu0 %v487, 112
          %v496 = vpop.permute.xlu0 %495
          %497 = vrot.lane.b32.xlu0 %v490, 112
          %v498 = vpop.permute.xlu0 %497
          %499 = vrot.lane.b32.xlu0 %v492, 112
          %v500 = vpop.permute.xlu0 %499
          %501 = vrot.lane.b32.xlu0 %v494, 112
          %v502 = vpop.permute.xlu0 %501
          %503 = vrot.lane.b32.xlu0 %v491, 112
          %v504 = vpop.permute.xlu0 %503
          %505 = vrot.lane.b32.xlu0 %v493, 112
          %v506 = vpop.permute.xlu0 %505
          %v507 = vsel %vm393, %v496, %v498
          %v508 = vsel %vm393, %v500, %v502
          %v509 = vsel %vm393, %v504, %v506
          %v513 = vadd.f32 %v467, %v507
          %v514 = vadd.f32 %v468, %v508
          %v515 = vadd.f32 %v469, %v509
          %s516 = sadd.s32 %s323, 6
          %s517 = sld [smem:[#allocation2 + %s516]]
          %v518 = vstv %s517
          %v519 = vmul.f32 %v518, %v298
          %v520 = vmul.f32 %v518, %v300
          %v521 = vmul.f32 %v518, %v302
          %vm525 = vcmask 1045504
          %v526 = vrot.slane %v519, 2
          %v527 = vrot.slane %v520, 2
          %v528 = vsel %vm525, %v526, %v527
          %v529 = vrot.slane %v521, 2
          %v530 = vsel %vm525, %v527, %v529
          %v534 = vadd.f32 %v513, %v528
          %v535 = vadd.f32 %v514, %v530
          %v536 = vadd.f32 %v515, %v529
          %s537 = sadd.s32 %s323, 7
          %s538 = sld [smem:[#allocation2 + %s537]]
          %v539 = vstv %s538
          %v540 = vmul.f32 %v539, %v298
          %v541 = vmul.f32 %v539, %v299
          %v542 = vmul.f32 %v539, %v300
          %v543 = vmul.f32 %v539, %v301
          %v544 = vmul.f32 %v539, %v302
          %v545 = vmul.f32 %v539, %v303
          %v552 = vrot.slane %v540, 2
          %v553 = vrot.slane %v542, 2
          %v554 = vsel %vm525, %v552, %v553
          %v555 = vrot.slane %v541, 2
          %v556 = vrot.slane %v543, 2
          %v557 = vsel %vm525, %v555, %v556
          %v558 = vrot.slane %v544, 2
          %v559 = vsel %vm525, %v553, %v558
          %v560 = vrot.slane %v545, 2
          %v561 = vsel %vm525, %v556, %v560
          %562 = vrot.lane.b32.xlu0 %v554, 120
          %v563 = vpop.permute.xlu0 %562
          %564 = vrot.lane.b32.xlu0 %v557, 120
          %v565 = vpop.permute.xlu0 %564
          %566 = vrot.lane.b32.xlu0 %v559, 120
          %v567 = vpop.permute.xlu0 %566
          %568 = vrot.lane.b32.xlu0 %v561, 120
          %v569 = vpop.permute.xlu0 %568
          %570 = vrot.lane.b32.xlu0 %v558, 120
          %v571 = vpop.permute.xlu0 %570
          %572 = vrot.lane.b32.xlu0 %v560, 120
          %v573 = vpop.permute.xlu0 %572
          %v574 = vsel %vm356, %v563, %v565
          %v575 = vsel %vm356, %v567, %v569
          %v576 = vsel %vm356, %v571, %v573
          %v580 = vadd.f32 %v534, %v574
          %v581 = vadd.f32 %v535, %v575
          %v582 = vadd.f32 %v536, %v576
          %s583 = sadd.s32 %s323, 8
          %s584 = sld [smem:[#allocation2 + %s583]]
          %v585 = vstv %s584
          %v586 = vmul.f32 %v585, %v298
          %v587 = vmul.f32 %v585, %v299
          %v588 = vmul.f32 %v585, %v300
          %v589 = vmul.f32 %v585, %v301
          %v590 = vmul.f32 %v585, %v302
          %v591 = vmul.f32 %v585, %v303
          %v598 = vrot.slane %v586, 2
          %v599 = vrot.slane %v588, 2
          %v600 = vsel %vm525, %v598, %v599
          %v601 = vrot.slane %v587, 2
          %v602 = vrot.slane %v589, 2
          %v603 = vsel %vm525, %v601, %v602
          %v604 = vrot.slane %v590, 2
          %v605 = vsel %vm525, %v599, %v604
          %v606 = vrot.slane %v591, 2
          %v607 = vsel %vm525, %v602, %v606
          %608 = vrot.lane.b32.xlu0 %v600, 112
          %v609 = vpop.permute.xlu0 %608
          %610 = vrot.lane.b32.xlu0 %v603, 112
          %v611 = vpop.permute.xlu0 %610
          %612 = vrot.lane.b32.xlu0 %v605, 112
          %v613 = vpop.permute.xlu0 %612
          %614 = vrot.lane.b32.xlu0 %v607, 112
          %v615 = vpop.permute.xlu0 %614
          %616 = vrot.lane.b32.xlu0 %v604, 112
          %v617 = vpop.permute.xlu0 %616
          %618 = vrot.lane.b32.xlu0 %v606, 112
          %v619 = vpop.permute.xlu0 %618
          %v620 = vsel %vm393, %v609, %v611
          %v621 = vsel %vm393, %v613, %v615
          %v622 = vsel %vm393, %v617, %v619
          %v626 = vadd.f32 %v580, %v620
          %v627 = vadd.f32 %v581, %v621
          %v628 = vadd.f32 %v582, %v622
          %s629 = sld [smem:[#allocation4 + %s322]]
          %v630 = vstv %s629
          %v631 = vadd.f32 %v626, %v630
          %v632 = vadd.f32 %v627, %v630
          %v633 = vadd.f32 %v628, %v630
          %v634 = vmax.f32 %v631, 0.0
          %v635 = vmax.f32 %v632, 0.0
          %v636 = vmax.f32 %v633, 0.0
          %v637 = vsel %vm295, %v634, 0.0
          %v638 = vsel %vm296, %v635, 0.0
          %v639 = vsel %vm297, %v636, 0.0
          %s640 = smul.u32 %s305, 72
          %s641 = sld [smem:[#allocation6 + %s640]]
          %v642 = vstv %s641
          %v643 = vmul.f32 %v642, %v637
          %v644 = vmul.f32 %v642, %v638
          %v645 = vadd.f32 %v310, %v643
          %v646 = vadd.f32 %v311, %v644
          %s647 = sadd.s32 %s640, 1
          %s648 = sld [smem:[#allocation6 + %s647]]
          %v649 = vstv %s648
          %v650 = vmul.f32 %v649, %v637
          %v651 = vmul.f32 %v649, %v638
          %v652 = vadd.f32 %v312, %v650
          %v653 = vadd.f32 %v313, %v651
          %s654 = sadd.s32 %s640, 2
          %s655 = sld [smem:[#allocation6 + %s654]]
          %v656 = vstv %s655
          %v657 = vmul.f32 %v656, %v637
          %v658 = vmul.f32 %v656, %v638
          %v659 = vadd.f32 %v314, %v657
          %v660 = vadd.f32 %v315, %v658
          %s661 = sadd.s32 %s640, 3
          %s662 = sld [smem:[#allocation6 + %s661]]
          %v663 = vstv %s662
          %v664 = vmul.f32 %v663, %v637
          %v665 = vmul.f32 %v663, %v638
          %v666 = vadd.f32 %v316, %v664
          %v667 = vadd.f32 %v317, %v665
          %s668 = sadd.s32 %s640, 4
          %s669 = sld [smem:[#allocation6 + %s668]]
          %v670 = vstv %s669
          %v671 = vmul.f32 %v670, %v637
          %v672 = vmul.f32 %v670, %v638
          %v673 = vadd.f32 %v318, %v671
          %v674 = vadd.f32 %v319, %v672
          %s675 = sadd.s32 %s640, 5
          %s676 = sld [smem:[#allocation6 + %s675]]
          %v677 = vstv %s676
          %v678 = vmul.f32 %v677, %v637
          %v679 = vmul.f32 %v677, %v638
          %v680 = vadd.f32 %v320, %v678
          %v681 = vadd.f32 %v321, %v679
          %s682 = sadd.s32 %s640, 6
          %s683 = sld [smem:[#allocation6 + %s682]]
          %v684 = vstv %s683
          %v685 = vmul.f32 %v684, %v637
          %v686 = vmul.f32 %v684, %v638
          %v687 = vmul.f32 %v684, %v639
          %v691 = vrot.slane %v685, 1
          %v692 = vrot.slane %v686, 1
          %v693 = vsel %vm412, %v691, %v692
          %v694 = vrot.slane %v687, 1
          %v695 = vsel %vm412, %v692, %v694
          %v698 = vadd.f32 %v645, %v693
          %v699 = vadd.f32 %v646, %v695
          %s700 = sadd.s32 %s640, 7
          %s701 = sld [smem:[#allocation6 + %s700]]
          %v702 = vstv %s701
          %v703 = vmul.f32 %v702, %v637
          %v704 = vmul.f32 %v702, %v638
          %v705 = vmul.f32 %v702, %v639
          %v709 = vrot.slane %v703, 1
          %v710 = vrot.slane %v704, 1
          %v711 = vsel %vm412, %v709, %v710
          %v712 = vrot.slane %v705, 1
          %v713 = vsel %vm412, %v710, %v712
          %v716 = vadd.f32 %v652, %v711
          %v717 = vadd.f32 %v653, %v713
          %s718 = sadd.s32 %s640, 8
          %s719 = sld [smem:[#allocation6 + %s718]]
          %v720 = vstv %s719
          %v721 = vmul.f32 %v720, %v637
          %v722 = vmul.f32 %v720, %v638
          %v723 = vmul.f32 %v720, %v639
          %v727 = vrot.slane %v721, 1
          %v728 = vrot.slane %v722, 1
          %v729 = vsel %vm412, %v727, %v728
          %v730 = vrot.slane %v723, 1
          %v731 = vsel %vm412, %v728, %v730
          %v734 = vadd.f32 %v659, %v729
          %v735 = vadd.f32 %v660, %v731
          %s736 = sadd.s32 %s640, 9
          %s737 = sld [smem:[#allocation6 + %s736]]
          %v738 = vstv %s737
          %v739 = vmul.f32 %v738, %v637
          %v740 = vmul.f32 %v738, %v638
          %v741 = vmul.f32 %v738, %v639
          %v745 = vrot.slane %v739, 1
          %v746 = vrot.slane %v740, 1
          %v747 = vsel %vm412, %v745, %v746
          %v748 = vrot.slane %v741, 1
          %v749 = vsel %vm412, %v746, %v748
          %v752 = vadd.f32 %v666, %v747
          %v753 = vadd.f32 %v667, %v749
          %s754 = sadd.s32 %s640, 10
          %s755 = sld [smem:[#allocation6 + %s754]]
          %v756 = vstv %s755
          %v757 = vmul.f32 %v756, %v637
          %v758 = vmul.f32 %v756, %v638
          %v759 = vmul.f32 %v756, %v639
          %v763 = vrot.slane %v757, 1
          %v764 = vrot.slane %v758, 1
          %v765 = vsel %vm412, %v763, %v764
          %v766 = vrot.slane %v759, 1
          %v767 = vsel %vm412, %v764, %v766
          %v770 = vadd.f32 %v673, %v765
          %v771 = vadd.f32 %v674, %v767
          %s772 = sadd.s32 %s640, 11
          %s773 = sld [smem:[#allocation6 + %s772]]
          %v774 = vstv %s773
          %v775 = vmul.f32 %v774, %v637
          %v776 = vmul.f32 %v774, %v638
          %v777 = vmul.f32 %v774, %v639
          %v781 = vrot.slane %v775, 1
          %v782 = vrot.slane %v776, 1
          %v783 = vsel %vm412, %v781, %v782
          %v784 = vrot.slane %v777, 1
          %v785 = vsel %vm412, %v782, %v784
          %v788 = vadd.f32 %v680, %v783
          %v789 = vadd.f32 %v681, %v785
          %s790 = sadd.s32 %s640, 12
          %s791 = sld [smem:[#allocation6 + %s790]]
          %v792 = vstv %s791
          %v793 = vmul.f32 %v792, %v637
          %v794 = vmul.f32 %v792, %v638
          %v795 = vmul.f32 %v792, %v639
          %v799 = vrot.slane %v793, 2
          %v800 = vrot.slane %v794, 2
          %v801 = vsel %vm525, %v799, %v800
          %v802 = vrot.slane %v795, 2
          %v803 = vsel %vm525, %v800, %v802
          %v806 = vadd.f32 %v698, %v801
          %v807 = vadd.f32 %v699, %v803
          %s808 = sadd.s32 %s640, 13
          %s809 = sld [smem:[#allocation6 + %s808]]
          %v810 = vstv %s809
          %v811 = vmul.f32 %v810, %v637
          %v812 = vmul.f32 %v810, %v638
          %v813 = vmul.f32 %v810, %v639
          %v817 = vrot.slane %v811, 2
          %v818 = vrot.slane %v812, 2
          %v819 = vsel %vm525, %v817, %v818
          %v820 = vrot.slane %v813, 2
          %v821 = vsel %vm525, %v818, %v820
          %v824 = vadd.f32 %v716, %v819
          %v825 = vadd.f32 %v717, %v821
          %s826 = sadd.s32 %s640, 14
          %s827 = sld [smem:[#allocation6 + %s826]]
          %v828 = vstv %s827
          %v829 = vmul.f32 %v828, %v637
          %v830 = vmul.f32 %v828, %v638
          %v831 = vmul.f32 %v828, %v639
          %v835 = vrot.slane %v829, 2
          %v836 = vrot.slane %v830, 2
          %v837 = vsel %vm525, %v835, %v836
          %v838 = vrot.slane %v831, 2
          %v839 = vsel %vm525, %v836, %v838
          %v842 = vadd.f32 %v734, %v837
          %v843 = vadd.f32 %v735, %v839
          %s844 = sadd.s32 %s640, 15
          %s845 = sld [smem:[#allocation6 + %s844]]
          %v846 = vstv %s845
          %v847 = vmul.f32 %v846, %v637
          %v848 = vmul.f32 %v846, %v638
          %v849 = vmul.f32 %v846, %v639
          %v853 = vrot.slane %v847, 2
          %v854 = vrot.slane %v848, 2
          %v855 = vsel %vm525, %v853, %v854
          %v856 = vrot.slane %v849, 2
          %v857 = vsel %vm525, %v854, %v856
          %v860 = vadd.f32 %v752, %v855
          %v861 = vadd.f32 %v753, %v857
          %s862 = sadd.s32 %s640, 16
          %s863 = sld [smem:[#allocation6 + %s862]]
          %v864 = vstv %s863
          %v865 = vmul.f32 %v864, %v637
          %v866 = vmul.f32 %v864, %v638
          %v867 = vmul.f32 %v864, %v639
          %v871 = vrot.slane %v865, 2
          %v872 = vrot.slane %v866, 2
          %v873 = vsel %vm525, %v871, %v872
          %v874 = vrot.slane %v867, 2
          %v875 = vsel %vm525, %v872, %v874
          %v878 = vadd.f32 %v770, %v873
          %v879 = vadd.f32 %v771, %v875
          %s880 = sadd.s32 %s640, 17
          %s881 = sld [smem:[#allocation6 + %s880]]
          %v882 = vstv %s881
          %v883 = vmul.f32 %v882, %v637
          %v884 = vmul.f32 %v882, %v638
          %v885 = vmul.f32 %v882, %v639
          %v889 = vrot.slane %v883, 2
          %v890 = vrot.slane %v884, 2
          %v891 = vsel %vm525, %v889, %v890
          %v892 = vrot.slane %v885, 2
          %v893 = vsel %vm525, %v890, %v892
          %v896 = vadd.f32 %v788, %v891
          %v897 = vadd.f32 %v789, %v893
          %s898 = sadd.s32 %s322, 1
          %s899 = smul.u32 %s898, 9
          %s900 = sld [smem:[#allocation2 + %s899]]
          %v901 = vstv %s900
          %v902 = vmul.f32 %v901, %v298
          %v903 = vmul.f32 %v901, %v300
          %v904 = vmul.f32 %v901, %v302
          %s905 = sadd.s32 %s899, 1
          %s906 = sld [smem:[#allocation2 + %s905]]
          %v907 = vstv %s906
          %v908 = vmul.f32 %v907, %v298
          %v909 = vmul.f32 %v907, %v299
          %v910 = vmul.f32 %v907, %v300
          %v911 = vmul.f32 %v907, %v301
          %v912 = vmul.f32 %v907, %v302
          %v913 = vmul.f32 %v907, %v303
          %920 = vrot.lane.b32.xlu0 %v908, 120
          %v921 = vpop.permute.xlu0 %920
          %922 = vrot.lane.b32.xlu0 %v909, 120
          %v923 = vpop.permute.xlu0 %922
          %924 = vrot.lane.b32.xlu0 %v910, 120
          %v925 = vpop.permute.xlu0 %924
          %926 = vrot.lane.b32.xlu0 %v911, 120
          %v927 = vpop.permute.xlu0 %926
          %928 = vrot.lane.b32.xlu0 %v912, 120
          %v929 = vpop.permute.xlu0 %928
          %930 = vrot.lane.b32.xlu0 %v913, 120
          %v931 = vpop.permute.xlu0 %930
          %v932 = vsel %vm356, %v921, %v923
          %v933 = vsel %vm356, %v925, %v927
          %v934 = vsel %vm356, %v929, %v931
          %v938 = vadd.f32 %v902, %v932
          %v939 = vadd.f32 %v903, %v933
          %v940 = vadd.f32 %v904, %v934
          %s941 = sadd.s32 %s899, 2
          %s942 = sld [smem:[#allocation2 + %s941]]
          %v943 = vstv %s942
          %v944 = vmul.f32 %v943, %v298
          %v945 = vmul.f32 %v943, %v299
          %v946 = vmul.f32 %v943, %v300
          %v947 = vmul.f32 %v943, %v301
          %v948 = vmul.f32 %v943, %v302
          %v949 = vmul.f32 %v943, %v303
          %956 = vrot.lane.b32.xlu0 %v944, 112
          %v957 = vpop.permute.xlu0 %956
          %958 = vrot.lane.b32.xlu0 %v945, 112
          %v959 = vpop.permute.xlu0 %958
          %960 = vrot.lane.b32.xlu0 %v946, 112
          %v961 = vpop.permute.xlu0 %960
          %962 = vrot.lane.b32.xlu0 %v947, 112
          %v963 = vpop.permute.xlu0 %962
          %964 = vrot.lane.b32.xlu0 %v948, 112
          %v965 = vpop.permute.xlu0 %964
          %966 = vrot.lane.b32.xlu0 %v949, 112
          %v967 = vpop.permute.xlu0 %966
          %v968 = vsel %vm393, %v957, %v959
          %v969 = vsel %vm393, %v961, %v963
          %v970 = vsel %vm393, %v965, %v967
          %v974 = vadd.f32 %v938, %v968
          %v975 = vadd.f32 %v939, %v969
          %v976 = vadd.f32 %v940, %v970
          %s977 = sadd.s32 %s899, 3
          %s978 = sld [smem:[#allocation2 + %s977]]
          %v979 = vstv %s978
          %v980 = vmul.f32 %v979, %v298
          %v981 = vmul.f32 %v979, %v300
          %v982 = vmul.f32 %v979, %v302
          %v986 = vrot.slane %v980, 1
          %v987 = vrot.slane %v981, 1
          %v988 = vsel %vm412, %v986, %v987
          %v989 = vrot.slane %v982, 1
          %v990 = vsel %vm412, %v987, %v989
          %v994 = vadd.f32 %v974, %v988
          %v995 = vadd.f32 %v975, %v990
          %v996 = vadd.f32 %v976, %v989
          %s997 = sadd.s32 %s899, 4
          %s998 = sld [smem:[#allocation2 + %s997]]
          %v999 = vstv %s998
          %v1000 = vmul.f32 %v999, %v298
          %v1001 = vmul.f32 %v999, %v299
          %v1002 = vmul.f32 %v999, %v300
          %v1003 = vmul.f32 %v999, %v301
          %v1004 = vmul.f32 %v999, %v302
          %v1005 = vmul.f32 %v999, %v303
          %v1012 = vrot.slane %v1000, 1
          %v1013 = vrot.slane %v1002, 1
          %v1014 = vsel %vm412, %v1012, %v1013
          %v1015 = vrot.slane %v1001, 1
          %v1016 = vrot.slane %v1003, 1
          %v1017 = vsel %vm412, %v1015, %v1016
          %v1018 = vrot.slane %v1004, 1
          %v1019 = vsel %vm412, %v1013, %v1018
          %v1020 = vrot.slane %v1005, 1
          %v1021 = vsel %vm412, %v1016, %v1020
          %1022 = vrot.lane.b32.xlu0 %v1014, 120
          %v1023 = vpop.permute.xlu0 %1022
          %1024 = vrot.lane.b32.xlu0 %v1017, 120
          %v1025 = vpop.permute.xlu0 %1024
          %1026 = vrot.lane.b32.xlu0 %v1019, 120
          %v1027 = vpop.permute.xlu0 %1026
          %1028 = vrot.lane.b32.xlu0 %v1021, 120
          %v1029 = vpop.permute.xlu0 %1028
          %1030 = vrot.lane.b32.xlu0 %v1018, 120
          %v1031 = vpop.permute.xlu0 %1030
          %1032 = vrot.lane.b32.xlu0 %v1020, 120
          %v1033 = vpop.permute.xlu0 %1032
          %v1034 = vsel %vm356, %v1023, %v1025
          %v1035 = vsel %vm356, %v1027, %v1029
          %v1036 = vsel %vm356, %v1031, %v1033
          %v1040 = vadd.f32 %v994, %v1034
          %v1041 = vadd.f32 %v995, %v1035
          %v1042 = vadd.f32 %v996, %v1036
          %s1043 = sadd.s32 %s899, 5
          %s1044 = sld [smem:[#allocation2 + %s1043]]
          %v1045 = vstv %s1044
          %v1046 = vmul.f32 %v1045, %v298
          %v1047 = vmul.f32 %v1045, %v299
          %v1048 = vmul.f32 %v1045, %v300
          %v1049 = vmul.f32 %v1045, %v301
          %v1050 = vmul.f32 %v1045, %v302
          %v1051 = vmul.f32 %v1045, %v303
          %v1058 = vrot.slane %v1046, 1
          %v1059 = vrot.slane %v1048, 1
          %v1060 = vsel %vm412, %v1058, %v1059
          %v1061 = vrot.slane %v1047, 1
          %v1062 = vrot.slane %v1049, 1
          %v1063 = vsel %vm412, %v1061, %v1062
          %v1064 = vrot.slane %v1050, 1
          %v1065 = vsel %vm412, %v1059, %v1064
          %v1066 = vrot.slane %v1051, 1
          %v1067 = vsel %vm412, %v1062, %v1066
          %1068 = vrot.lane.b32.xlu0 %v1060, 112
          %v1069 = vpop.permute.xlu0 %1068
          %1070 = vrot.lane.b32.xlu0 %v1063, 112
          %v1071 = vpop.permute.xlu0 %1070
          %1072 = vrot.lane.b32.xlu0 %v1065, 112
          %v1073 = vpop.permute.xlu0 %1072
          %1074 = vrot.lane.b32.xlu0 %v1067, 112
          %v1075 = vpop.permute.xlu0 %1074
          %1076 = vrot.lane.b32.xlu0 %v1064, 112
          %v1077 = vpop.permute.xlu0 %1076
          %1078 = vrot.lane.b32.xlu0 %v1066, 112
          %v1079 = vpop.permute.xlu0 %1078
          %v1080 = vsel %vm393, %v1069, %v1071
          %v1081 = vsel %vm393, %v1073, %v1075
          %v1082 = vsel %vm393, %v1077, %v1079
          %v1086 = vadd.f32 %v1040, %v1080
          %v1087 = vadd.f32 %v1041, %v1081
          %v1088 = vadd.f32 %v1042, %v1082
          %s1089 = sadd.s32 %s899, 6
          %s1090 = sld [smem:[#allocation2 + %s1089]]
          %v1091 = vstv %s1090
          %v1092 = vmul.f32 %v1091, %v298
          %v1093 = vmul.f32 %v1091, %v300
          %v1094 = vmul.f32 %v1091, %v302
          %v1098 = vrot.slane %v1092, 2
          %v1099 = vrot.slane %v1093, 2
          %v1100 = vsel %vm525, %v1098, %v1099
          %v1101 = vrot.slane %v1094, 2
          %v1102 = vsel %vm525, %v1099, %v1101
          %v1106 = vadd.f32 %v1086, %v1100
          %v1107 = vadd.f32 %v1087, %v1102
          %v1108 = vadd.f32 %v1088, %v1101
          %s1109 = sadd.s32 %s899, 7
          %s1110 = sld [smem:[#allocation2 + %s1109]]
          %v1111 = vstv %s1110
          %v1112 = vmul.f32 %v1111, %v298
          %v1113 = vmul.f32 %v1111, %v299
          %v1114 = vmul.f32 %v1111, %v300
          %v1115 = vmul.f32 %v1111, %v301
          %v1116 = vmul.f32 %v1111, %v302
          %v1117 = vmul.f32 %v1111, %v303
          %v1124 = vrot.slane %v1112, 2
          %v1125 = vrot.slane %v1114, 2
          %v1126 = vsel %vm525, %v1124, %v1125
          %v1127 = vrot.slane %v1113, 2
          %v1128 = vrot.slane %v1115, 2
          %v1129 = vsel %vm525, %v1127, %v1128
          %v1130 = vrot.slane %v1116, 2
          %v1131 = vsel %vm525, %v1125, %v1130
          %v1132 = vrot.slane %v1117, 2
          %v1133 = vsel %vm525, %v1128, %v1132
          %1134 = vrot.lane.b32.xlu0 %v1126, 120
          %v1135 = vpop.permute.xlu0 %1134
          %1136 = vrot.lane.b32.xlu0 %v1129, 120
          %v1137 = vpop.permute.xlu0 %1136
          %1138 = vrot.lane.b32.xlu0 %v1131, 120
          %v1139 = vpop.permute.xlu0 %1138
          %1140 = vrot.lane.b32.xlu0 %v1133, 120
          %v1141 = vpop.permute.xlu0 %1140
          %1142 = vrot.lane.b32.xlu0 %v1130, 120
          %v1143 = vpop.permute.xlu0 %1142
          %1144 = vrot.lane.b32.xlu0 %v1132, 120
          %v1145 = vpop.permute.xlu0 %1144
          %v1146 = vsel %vm356, %v1135, %v1137
          %v1147 = vsel %vm356, %v1139, %v1141
          %v1148 = vsel %vm356, %v1143, %v1145
          %v1152 = vadd.f32 %v1106, %v1146
          %v1153 = vadd.f32 %v1107, %v1147
          %v1154 = vadd.f32 %v1108, %v1148
          %s1155 = sadd.s32 %s899, 8
          %s1156 = sld [smem:[#allocation2 + %s1155]]
          %v1157 = vstv %s1156
          %v1158 = vmul.f32 %v1157, %v298
          %v1159 = vmul.f32 %v1157, %v299
          %v1160 = vmul.f32 %v1157, %v300
          %v1161 = vmul.f32 %v1157, %v301
          %v1162 = vmul.f32 %v1157, %v302
          %v1163 = vmul.f32 %v1157, %v303
          %v1170 = vrot.slane %v1158, 2
          %v1171 = vrot.slane %v1160, 2
          %v1172 = vsel %vm525, %v1170, %v1171
          %v1173 = vrot.slane %v1159, 2
          %v1174 = vrot.slane %v1161, 2
          %v1175 = vsel %vm525, %v1173, %v1174
          %v1176 = vrot.slane %v1162, 2
          %v1177 = vsel %vm525, %v1171, %v1176
          %v1178 = vrot.slane %v1163, 2
          %v1179 = vsel %vm525, %v1174, %v1178
          %1180 = vrot.lane.b32.xlu0 %v1172, 112
          %v1181 = vpop.permute.xlu0 %1180
          %1182 = vrot.lane.b32.xlu0 %v1175, 112
          %v1183 = vpop.permute.xlu0 %1182
          %1184 = vrot.lane.b32.xlu0 %v1177, 112
          %v1185 = vpop.permute.xlu0 %1184
          %1186 = vrot.lane.b32.xlu0 %v1179, 112
          %v1187 = vpop.permute.xlu0 %1186
          %1188 = vrot.lane.b32.xlu0 %v1176, 112
          %v1189 = vpop.permute.xlu0 %1188
          %1190 = vrot.lane.b32.xlu0 %v1178, 112
          %v1191 = vpop.permute.xlu0 %1190
          %v1192 = vsel %vm393, %v1181, %v1183
          %v1193 = vsel %vm393, %v1185, %v1187
          %v1194 = vsel %vm393, %v1189, %v1191
          %v1198 = vadd.f32 %v1152, %v1192
          %v1199 = vadd.f32 %v1153, %v1193
          %v1200 = vadd.f32 %v1154, %v1194
          %s1201 = sld [smem:[#allocation4 + %s898]]
          %v1202 = vstv %s1201
          %v1203 = vadd.f32 %v1198, %v1202
          %v1204 = vadd.f32 %v1199, %v1202
          %v1205 = vadd.f32 %v1200, %v1202
          %v1206 = vmax.f32 %v1203, 0.0
          %v1207 = vmax.f32 %v1204, 0.0
          %v1208 = vmax.f32 %v1205, 0.0
          %v1209 = vsel %vm295, %v1206, 0.0
          %v1210 = vsel %vm296, %v1207, 0.0
          %v1211 = vsel %vm297, %v1208, 0.0
          %s1212 = smul.u32 %s898, 18
          %s1213 = sld [smem:[#allocation6 + %s1212]]
          %v1214 = vstv %s1213
          %v1215 = vmul.f32 %v1214, %v1209
          %v1216 = vmul.f32 %v1214, %v1210
          %v1217 = vadd.f32 %v806, %v1215
          %v1218 = vadd.f32 %v807, %v1216
          %s1219 = sadd.s32 %s1212, 1
          %s1220 = sld [smem:[#allocation6 + %s1219]]
          %v1221 = vstv %s1220
          %v1222 = vmul.f32 %v1221, %v1209
          %v1223 = vmul.f32 %v1221, %v1210
          %v1224 = vadd.f32 %v824, %v1222
          %v1225 = vadd.f32 %v825, %v1223
          %s1226 = sadd.s32 %s1212, 2
          %s1227 = sld [smem:[#allocation6 + %s1226]]
          %v1228 = vstv %s1227
          %v1229 = vmul.f32 %v1228, %v1209
          %v1230 = vmul.f32 %v1228, %v1210
          %v1231 = vadd.f32 %v842, %v1229
          %v1232 = vadd.f32 %v843, %v1230
          %s1233 = sadd.s32 %s1212, 3
          %s1234 = sld [smem:[#allocation6 + %s1233]]
          %v1235 = vstv %s1234
          %v1236 = vmul.f32 %v1235, %v1209
          %v1237 = vmul.f32 %v1235, %v1210
          %v1238 = vadd.f32 %v860, %v1236
          %v1239 = vadd.f32 %v861, %v1237
          %s1240 = sadd.s32 %s1212, 4
          %s1241 = sld [smem:[#allocation6 + %s1240]]
          %v1242 = vstv %s1241
          %v1243 = vmul.f32 %v1242, %v1209
          %v1244 = vmul.f32 %v1242, %v1210
          %v1245 = vadd.f32 %v878, %v1243
          %v1246 = vadd.f32 %v879, %v1244
          %s1247 = sadd.s32 %s1212, 5
          %s1248 = sld [smem:[#allocation6 + %s1247]]
          %v1249 = vstv %s1248
          %v1250 = vmul.f32 %v1249, %v1209
          %v1251 = vmul.f32 %v1249, %v1210
          %v1252 = vadd.f32 %v896, %v1250
          %v1253 = vadd.f32 %v897, %v1251
          %s1254 = sadd.s32 %s1212, 6
          %s1255 = sld [smem:[#allocation6 + %s1254]]
          %v1256 = vstv %s1255
          %v1257 = vmul.f32 %v1256, %v1209
          %v1258 = vmul.f32 %v1256, %v1210
          %v1259 = vmul.f32 %v1256, %v1211
          %v1263 = vrot.slane %v1257, 1
          %v1264 = vrot.slane %v1258, 1
          %v1265 = vsel %vm412, %v1263, %v1264
          %v1266 = vrot.slane %v1259, 1
          %v1267 = vsel %vm412, %v1264, %v1266
          %v1270 = vadd.f32 %v1217, %v1265
          %v1271 = vadd.f32 %v1218, %v1267
          %s1272 = sadd.s32 %s1212, 7
          %s1273 = sld [smem:[#allocation6 + %s1272]]
          %v1274 = vstv %s1273
          %v1275 = vmul.f32 %v1274, %v1209
          %v1276 = vmul.f32 %v1274, %v1210
          %v1277 = vmul.f32 %v1274, %v1211
          %v1281 = vrot.slane %v1275, 1
          %v1282 = vrot.slane %v1276, 1
          %v1283 = vsel %vm412, %v1281, %v1282
          %v1284 = vrot.slane %v1277, 1
          %v1285 = vsel %vm412, %v1282, %v1284
          %v1288 = vadd.f32 %v1224, %v1283
          %v1289 = vadd.f32 %v1225, %v1285
          %s1290 = sadd.s32 %s1212, 8
          %s1291 = sld [smem:[#allocation6 + %s1290]]
          %v1292 = vstv %s1291
          %v1293 = vmul.f32 %v1292, %v1209
          %v1294 = vmul.f32 %v1292, %v1210
          %v1295 = vmul.f32 %v1292, %v1211
          %v1299 = vrot.slane %v1293, 1
          %v1300 = vrot.slane %v1294, 1
          %v1301 = vsel %vm412, %v1299, %v1300
          %v1302 = vrot.slane %v1295, 1
          %v1303 = vsel %vm412, %v1300, %v1302
          %v1306 = vadd.f32 %v1231, %v1301
          %v1307 = vadd.f32 %v1232, %v1303
          %s1308 = sadd.s32 %s1212, 9
          %s1309 = sld [smem:[#allocation6 + %s1308]]
          %v1310 = vstv %s1309
          %v1311 = vmul.f32 %v1310, %v1209
          %v1312 = vmul.f32 %v1310, %v1210
          %v1313 = vmul.f32 %v1310, %v1211
          %v1317 = vrot.slane %v1311, 1
          %v1318 = vrot.slane %v1312, 1
          %v1319 = vsel %vm412, %v1317, %v1318
          %v1320 = vrot.slane %v1313, 1
          %v1321 = vsel %vm412, %v1318, %v1320
          %v1324 = vadd.f32 %v1238, %v1319
          %v1325 = vadd.f32 %v1239, %v1321
          %s1326 = sadd.s32 %s1212, 10
          %s1327 = sld [smem:[#allocation6 + %s1326]]
          %v1328 = vstv %s1327
          %v1329 = vmul.f32 %v1328, %v1209
          %v1330 = vmul.f32 %v1328, %v1210
          %v1331 = vmul.f32 %v1328, %v1211
          %v1335 = vrot.slane %v1329, 1
          %v1336 = vrot.slane %v1330, 1
          %v1337 = vsel %vm412, %v1335, %v1336
          %v1338 = vrot.slane %v1331, 1
          %v1339 = vsel %vm412, %v1336, %v1338
          %v1342 = vadd.f32 %v1245, %v1337
          %v1343 = vadd.f32 %v1246, %v1339
          %s1344 = sadd.s32 %s1212, 11
          %s1345 = sld [smem:[#allocation6 + %s1344]]
          %v1346 = vstv %s1345
          %v1347 = vmul.f32 %v1346, %v1209
          %v1348 = vmul.f32 %v1346, %v1210
          %v1349 = vmul.f32 %v1346, %v1211
          %v1353 = vrot.slane %v1347, 1
          %v1354 = vrot.slane %v1348, 1
          %v1355 = vsel %vm412, %v1353, %v1354
          %v1356 = vrot.slane %v1349, 1
          %v1357 = vsel %vm412, %v1354, %v1356
          %v1360 = vadd.f32 %v1252, %v1355
          %v1361 = vadd.f32 %v1253, %v1357
          %s1362 = sadd.s32 %s1212, 12
          %s1363 = sld [smem:[#allocation6 + %s1362]]
          %v1364 = vstv %s1363
          %v1365 = vmul.f32 %v1364, %v1209
          %v1366 = vmul.f32 %v1364, %v1210
          %v1367 = vmul.f32 %v1364, %v1211
          %v1371 = vrot.slane %v1365, 2
          %v1372 = vrot.slane %v1366, 2
          %v1373 = vsel %vm525, %v1371, %v1372
          %v1374 = vrot.slane %v1367, 2
          %v1375 = vsel %vm525, %v1372, %v1374
          %v1378 = vadd.f32 %v1270, %v1373
          %v1379 = vadd.f32 %v1271, %v1375
          %s1380 = sadd.s32 %s1212, 13
          %s1381 = sld [smem:[#allocation6 + %s1380]]
          %v1382 = vstv %s1381
          %v1383 = vmul.f32 %v1382, %v1209
          %v1384 = vmul.f32 %v1382, %v1210
          %v1385 = vmul.f32 %v1382, %v1211
          %v1389 = vrot.slane %v1383, 2
          %v1390 = vrot.slane %v1384, 2
          %v1391 = vsel %vm525, %v1389, %v1390
          %v1392 = vrot.slane %v1385, 2
          %v1393 = vsel %vm525, %v1390, %v1392
          %v1396 = vadd.f32 %v1288, %v1391
          %v1397 = vadd.f32 %v1289, %v1393
          %s1398 = sadd.s32 %s1212, 14
          %s1399 = sld [smem:[#allocation6 + %s1398]]
          %v1400 = vstv %s1399
          %v1401 = vmul.f32 %v1400, %v1209
          %v1402 = vmul.f32 %v1400, %v1210
          %v1403 = vmul.f32 %v1400, %v1211
          %v1407 = vrot.slane %v1401, 2
          %v1408 = vrot.slane %v1402, 2
          %v1409 = vsel %vm525, %v1407, %v1408
          %v1410 = vrot.slane %v1403, 2
          %v1411 = vsel %vm525, %v1408, %v1410
          %v1414 = vadd.f32 %v1306, %v1409
          %v1415 = vadd.f32 %v1307, %v1411
          %s1416 = sadd.s32 %s1212, 15
          %s1417 = sld [smem:[#allocation6 + %s1416]]
          %v1418 = vstv %s1417
          %v1419 = vmul.f32 %v1418, %v1209
          %v1420 = vmul.f32 %v1418, %v1210
          %v1421 = vmul.f32 %v1418, %v1211
          %v1425 = vrot.slane %v1419, 2
          %v1426 = vrot.slane %v1420, 2
          %v1427 = vsel %vm525, %v1425, %v1426
          %v1428 = vrot.slane %v1421, 2
          %v1429 = vsel %vm525, %v1426, %v1428
          %v1432 = vadd.f32 %v1324, %v1427
          %v1433 = vadd.f32 %v1325, %v1429
          %s1434 = sadd.s32 %s1212, 16
          %s1435 = sld [smem:[#allocation6 + %s1434]]
          %v1436 = vstv %s1435
          %v1437 = vmul.f32 %v1436, %v1209
          %v1438 = vmul.f32 %v1436, %v1210
          %v1439 = vmul.f32 %v1436, %v1211
          %v1443 = vrot.slane %v1437, 2
          %v1444 = vrot.slane %v1438, 2
          %v1445 = vsel %vm525, %v1443, %v1444
          %v1446 = vrot.slane %v1439, 2
          %v1447 = vsel %vm525, %v1444, %v1446
          %v1450 = vadd.f32 %v1342, %v1445
          %v1451 = vadd.f32 %v1343, %v1447
          %s1452 = sadd.s32 %s1212, 17
          %s1453 = sld [smem:[#allocation6 + %s1452]]
          %v1454 = vstv %s1453
          %v1455 = vmul.f32 %v1454, %v1209
          %v1456 = vmul.f32 %v1454, %v1210
          %v1457 = vmul.f32 %v1454, %v1211
          %v1461 = vrot.slane %v1455, 2
          %v1462 = vrot.slane %v1456, 2
          %v1463 = vsel %vm525, %v1461, %v1462
          %v1464 = vrot.slane %v1457, 2
          %v1465 = vsel %vm525, %v1462, %v1464
          %v1468 = vadd.f32 %v1360, %v1463
          %v1469 = vadd.f32 %v1361, %v1465
          %s1470 = sadd.s32 %s322, 2
          %s1471 = smul.u32 %s1470, 9
          %s1472 = sld [smem:[#allocation2 + %s1471]]
          %v1473 = vstv %s1472
          %v1474 = vmul.f32 %v1473, %v298
          %v1475 = vmul.f32 %v1473, %v300
          %v1476 = vmul.f32 %v1473, %v302
          %s1477 = sadd.s32 %s1471, 1
          %s1478 = sld [smem:[#allocation2 + %s1477]]
          %v1479 = vstv %s1478
          %v1480 = vmul.f32 %v1479, %v298
          %v1481 = vmul.f32 %v1479, %v299
          %v1482 = vmul.f32 %v1479, %v300
          %v1483 = vmul.f32 %v1479, %v301
          %v1484 = vmul.f32 %v1479, %v302
          %v1485 = vmul.f32 %v1479, %v303
          %1492 = vrot.lane.b32.xlu0 %v1480, 120
          %v1493 = vpop.permute.xlu0 %1492
          %1494 = vrot.lane.b32.xlu0 %v1481, 120
          %v1495 = vpop.permute.xlu0 %1494
          %1496 = vrot.lane.b32.xlu0 %v1482, 120
          %v1497 = vpop.permute.xlu0 %1496
          %1498 = vrot.lane.b32.xlu0 %v1483, 120
          %v1499 = vpop.permute.xlu0 %1498
          %1500 = vrot.lane.b32.xlu0 %v1484, 120
          %v1501 = vpop.permute.xlu0 %1500
          %1502 = vrot.lane.b32.xlu0 %v1485, 120
          %v1503 = vpop.permute.xlu0 %1502
          %v1504 = vsel %vm356, %v1493, %v1495
          %v1505 = vsel %vm356, %v1497, %v1499
          %v1506 = vsel %vm356, %v1501, %v1503
          %v1510 = vadd.f32 %v1474, %v1504
          %v1511 = vadd.f32 %v1475, %v1505
          %v1512 = vadd.f32 %v1476, %v1506
          %s1513 = sadd.s32 %s1471, 2
          %s1514 = sld [smem:[#allocation2 + %s1513]]
          %v1515 = vstv %s1514
          %v1516 = vmul.f32 %v1515, %v298
          %v1517 = vmul.f32 %v1515, %v299
          %v1518 = vmul.f32 %v1515, %v300
          %v1519 = vmul.f32 %v1515, %v301
          %v1520 = vmul.f32 %v1515, %v302
          %v1521 = vmul.f32 %v1515, %v303
          %1528 = vrot.lane.b32.xlu0 %v1516, 112
          %v1529 = vpop.permute.xlu0 %1528
          %1530 = vrot.lane.b32.xlu0 %v1517, 112
          %v1531 = vpop.permute.xlu0 %1530
          %1532 = vrot.lane.b32.xlu0 %v1518, 112
          %v1533 = vpop.permute.xlu0 %1532
          %1534 = vrot.lane.b32.xlu0 %v1519, 112
          %v1535 = vpop.permute.xlu0 %1534
          %1536 = vrot.lane.b32.xlu0 %v1520, 112
          %v1537 = vpop.permute.xlu0 %1536
          %1538 = vrot.lane.b32.xlu0 %v1521, 112
          %v1539 = vpop.permute.xlu0 %1538
          %v1540 = vsel %vm393, %v1529, %v1531
          %v1541 = vsel %vm393, %v1533, %v1535
          %v1542 = vsel %vm393, %v1537, %v1539
          %v1546 = vadd.f32 %v1510, %v1540
          %v1547 = vadd.f32 %v1511, %v1541
          %v1548 = vadd.f32 %v1512, %v1542
          %s1549 = sadd.s32 %s1471, 3
          %s1550 = sld [smem:[#allocation2 + %s1549]]
          %v1551 = vstv %s1550
          %v1552 = vmul.f32 %v1551, %v298
          %v1553 = vmul.f32 %v1551, %v300
          %v1554 = vmul.f32 %v1551, %v302
          %v1558 = vrot.slane %v1552, 1
          %v1559 = vrot.slane %v1553, 1
          %v1560 = vsel %vm412, %v1558, %v1559
          %v1561 = vrot.slane %v1554, 1
          %v1562 = vsel %vm412, %v1559, %v1561
          %v1566 = vadd.f32 %v1546, %v1560
          %v1567 = vadd.f32 %v1547, %v1562
          %v1568 = vadd.f32 %v1548, %v1561
          %s1569 = sadd.s32 %s1471, 4
          %s1570 = sld [smem:[#allocation2 + %s1569]]
          %v1571 = vstv %s1570
          %v1572 = vmul.f32 %v1571, %v298
          %v1573 = vmul.f32 %v1571, %v299
          %v1574 = vmul.f32 %v1571, %v300
          %v1575 = vmul.f32 %v1571, %v301
          %v1576 = vmul.f32 %v1571, %v302
          %v1577 = vmul.f32 %v1571, %v303
          %v1584 = vrot.slane %v1572, 1
          %v1585 = vrot.slane %v1574, 1
          %v1586 = vsel %vm412, %v1584, %v1585
          %v1587 = vrot.slane %v1573, 1
          %v1588 = vrot.slane %v1575, 1
          %v1589 = vsel %vm412, %v1587, %v1588
          %v1590 = vrot.slane %v1576, 1
          %v1591 = vsel %vm412, %v1585, %v1590
          %v1592 = vrot.slane %v1577, 1
          %v1593 = vsel %vm412, %v1588, %v1592
          %1594 = vrot.lane.b32.xlu0 %v1586, 120
          %v1595 = vpop.permute.xlu0 %1594
          %1596 = vrot.lane.b32.xlu0 %v1589, 120
          %v1597 = vpop.permute.xlu0 %1596
          %1598 = vrot.lane.b32.xlu0 %v1591, 120
          %v1599 = vpop.permute.xlu0 %1598
          %1600 = vrot.lane.b32.xlu0 %v1593, 120
          %v1601 = vpop.permute.xlu0 %1600
          %1602 = vrot.lane.b32.xlu0 %v1590, 120
          %v1603 = vpop.permute.xlu0 %1602
          %1604 = vrot.lane.b32.xlu0 %v1592, 120
          %v1605 = vpop.permute.xlu0 %1604
          %v1606 = vsel %vm356, %v1595, %v1597
          %v1607 = vsel %vm356, %v1599, %v1601
          %v1608 = vsel %vm356, %v1603, %v1605
          %v1612 = vadd.f32 %v1566, %v1606
          %v1613 = vadd.f32 %v1567, %v1607
          %v1614 = vadd.f32 %v1568, %v1608
          %s1615 = sadd.s32 %s1471, 5
          %s1616 = sld [smem:[#allocation2 + %s1615]]
          %v1617 = vstv %s1616
          %v1618 = vmul.f32 %v1617, %v298
          %v1619 = vmul.f32 %v1617, %v299
          %v1620 = vmul.f32 %v1617, %v300
          %v1621 = vmul.f32 %v1617, %v301
          %v1622 = vmul.f32 %v1617, %v302
          %v1623 = vmul.f32 %v1617, %v303
          %v1630 = vrot.slane %v1618, 1
          %v1631 = vrot.slane %v1620, 1
          %v1632 = vsel %vm412, %v1630, %v1631
          %v1633 = vrot.slane %v1619, 1
          %v1634 = vrot.slane %v1621, 1
          %v1635 = vsel %vm412, %v1633, %v1634
          %v1636 = vrot.slane %v1622, 1
          %v1637 = vsel %vm412, %v1631, %v1636
          %v1638 = vrot.slane %v1623, 1
          %v1639 = vsel %vm412, %v1634, %v1638
          %1640 = vrot.lane.b32.xlu0 %v1632, 112
          %v1641 = vpop.permute.xlu0 %1640
          %1642 = vrot.lane.b32.xlu0 %v1635, 112
          %v1643 = vpop.permute.xlu0 %1642
          %1644 = vrot.lane.b32.xlu0 %v1637, 112
          %v1645 = vpop.permute.xlu0 %1644
          %1646 = vrot.lane.b32.xlu0 %v1639, 112
          %v1647 = vpop.permute.xlu0 %1646
          %1648 = vrot.lane.b32.xlu0 %v1636, 112
          %v1649 = vpop.permute.xlu0 %1648
          %1650 = vrot.lane.b32.xlu0 %v1638, 112
          %v1651 = vpop.permute.xlu0 %1650
          %v1652 = vsel %vm393, %v1641, %v1643
          %v1653 = vsel %vm393, %v1645, %v1647
          %v1654 = vsel %vm393, %v1649, %v1651
          %v1658 = vadd.f32 %v1612, %v1652
          %v1659 = vadd.f32 %v1613, %v1653
          %v1660 = vadd.f32 %v1614, %v1654
          %s1661 = sadd.s32 %s1471, 6
          %s1662 = sld [smem:[#allocation2 + %s1661]]
          %v1663 = vstv %s1662
          %v1664 = vmul.f32 %v1663, %v298
          %v1665 = vmul.f32 %v1663, %v300
          %v1666 = vmul.f32 %v1663, %v302
          %v1670 = vrot.slane %v1664, 2
          %v1671 = vrot.slane %v1665, 2
          %v1672 = vsel %vm525, %v1670, %v1671
          %v1673 = vrot.slane %v1666, 2
          %v1674 = vsel %vm525, %v1671, %v1673
          %v1678 = vadd.f32 %v1658, %v1672
          %v1679 = vadd.f32 %v1659, %v1674
          %v1680 = vadd.f32 %v1660, %v1673
          %s1681 = sadd.s32 %s1471, 7
          %s1682 = sld [smem:[#allocation2 + %s1681]]
          %v1683 = vstv %s1682
          %v1684 = vmul.f32 %v1683, %v298
          %v1685 = vmul.f32 %v1683, %v299
          %v1686 = vmul.f32 %v1683, %v300
          %v1687 = vmul.f32 %v1683, %v301
          %v1688 = vmul.f32 %v1683, %v302
          %v1689 = vmul.f32 %v1683, %v303
          %v1696 = vrot.slane %v1684, 2
          %v1697 = vrot.slane %v1686, 2
          %v1698 = vsel %vm525, %v1696, %v1697
          %v1699 = vrot.slane %v1685, 2
          %v1700 = vrot.slane %v1687, 2
          %v1701 = vsel %vm525, %v1699, %v1700
          %v1702 = vrot.slane %v1688, 2
          %v1703 = vsel %vm525, %v1697, %v1702
          %v1704 = vrot.slane %v1689, 2
          %v1705 = vsel %vm525, %v1700, %v1704
          %1706 = vrot.lane.b32.xlu0 %v1698, 120
          %v1707 = vpop.permute.xlu0 %1706
          %1708 = vrot.lane.b32.xlu0 %v1701, 120
          %v1709 = vpop.permute.xlu0 %1708
          %1710 = vrot.lane.b32.xlu0 %v1703, 120
          %v1711 = vpop.permute.xlu0 %1710
          %1712 = vrot.lane.b32.xlu0 %v1705, 120
          %v1713 = vpop.permute.xlu0 %1712
          %1714 = vrot.lane.b32.xlu0 %v1702, 120
          %v1715 = vpop.permute.xlu0 %1714
          %1716 = vrot.lane.b32.xlu0 %v1704, 120
          %v1717 = vpop.permute.xlu0 %1716
          %v1718 = vsel %vm356, %v1707, %v1709
          %v1719 = vsel %vm356, %v1711, %v1713
          %v1720 = vsel %vm356, %v1715, %v1717
          %v1724 = vadd.f32 %v1678, %v1718
          %v1725 = vadd.f32 %v1679, %v1719
          %v1726 = vadd.f32 %v1680, %v1720
          %s1727 = sadd.s32 %s1471, 8
          %s1728 = sld [smem:[#allocation2 + %s1727]]
          %v1729 = vstv %s1728
          %v1730 = vmul.f32 %v1729, %v298
          %v1731 = vmul.f32 %v1729, %v299
          %v1732 = vmul.f32 %v1729, %v300
          %v1733 = vmul.f32 %v1729, %v301
          %v1734 = vmul.f32 %v1729, %v302
          %v1735 = vmul.f32 %v1729, %v303
          %v1742 = vrot.slane %v1730, 2
          %v1743 = vrot.slane %v1732, 2
          %v1744 = vsel %vm525, %v1742, %v1743
          %v1745 = vrot.slane %v1731, 2
          %v1746 = vrot.slane %v1733, 2
          %v1747 = vsel %vm525, %v1745, %v1746
          %v1748 = vrot.slane %v1734, 2
          %v1749 = vsel %vm525, %v1743, %v1748
          %v1750 = vrot.slane %v1735, 2
          %v1751 = vsel %vm525, %v1746, %v1750
          %1752 = vrot.lane.b32.xlu0 %v1744, 112
          %v1753 = vpop.permute.xlu0 %1752
          %1754 = vrot.lane.b32.xlu0 %v1747, 112
          %v1755 = vpop.permute.xlu0 %1754
          %1756 = vrot.lane.b32.xlu0 %v1749, 112
          %v1757 = vpop.permute.xlu0 %1756
          %1758 = vrot.lane.b32.xlu0 %v1751, 112
          %v1759 = vpop.permute.xlu0 %1758
          %1760 = vrot.lane.b32.xlu0 %v1748, 112
          %v1761 = vpop.permute.xlu0 %1760
          %1762 = vrot.lane.b32.xlu0 %v1750, 112
          %v1763 = vpop.permute.xlu0 %1762
          %v1764 = vsel %vm393, %v1753, %v1755
          %v1765 = vsel %vm393, %v1757, %v1759
          %v1766 = vsel %vm393, %v1761, %v1763
          %v1770 = vadd.f32 %v1724, %v1764
          %v1771 = vadd.f32 %v1725, %v1765
          %v1772 = vadd.f32 %v1726, %v1766
          %s1773 = sld [smem:[#allocation4 + %s1470]]
          %v1774 = vstv %s1773
          %v1775 = vadd.f32 %v1770, %v1774
          %v1776 = vadd.f32 %v1771, %v1774
          %v1777 = vadd.f32 %v1772, %v1774
          %v1778 = vmax.f32 %v1775, 0.0
          %v1779 = vmax.f32 %v1776, 0.0
          %v1780 = vmax.f32 %v1777, 0.0
          %v1781 = vsel %vm295, %v1778, 0.0
          %v1782 = vsel %vm296, %v1779, 0.0
          %v1783 = vsel %vm297, %v1780, 0.0
          %s1784 = smul.u32 %s1470, 18
          %s1785 = sld [smem:[#allocation6 + %s1784]]
          %v1786 = vstv %s1785
          %v1787 = vmul.f32 %v1786, %v1781
          %v1788 = vmul.f32 %v1786, %v1782
          %v1789 = vadd.f32 %v1378, %v1787
          %v1790 = vadd.f32 %v1379, %v1788
          %s1791 = sadd.s32 %s1784, 1
          %s1792 = sld [smem:[#allocation6 + %s1791]]
          %v1793 = vstv %s1792
          %v1794 = vmul.f32 %v1793, %v1781
          %v1795 = vmul.f32 %v1793, %v1782
          %v1796 = vadd.f32 %v1396, %v1794
          %v1797 = vadd.f32 %v1397, %v1795
          %s1798 = sadd.s32 %s1784, 2
          %s1799 = sld [smem:[#allocation6 + %s1798]]
          %v1800 = vstv %s1799
          %v1801 = vmul.f32 %v1800, %v1781
          %v1802 = vmul.f32 %v1800, %v1782
          %v1803 = vadd.f32 %v1414, %v1801
          %v1804 = vadd.f32 %v1415, %v1802
          %s1805 = sadd.s32 %s1784, 3
          %s1806 = sld [smem:[#allocation6 + %s1805]]
          %v1807 = vstv %s1806
          %v1808 = vmul.f32 %v1807, %v1781
          %v1809 = vmul.f32 %v1807, %v1782
          %v1810 = vadd.f32 %v1432, %v1808
          %v1811 = vadd.f32 %v1433, %v1809
          %s1812 = sadd.s32 %s1784, 4
          %s1813 = sld [smem:[#allocation6 + %s1812]]
          %v1814 = vstv %s1813
          %v1815 = vmul.f32 %v1814, %v1781
          %v1816 = vmul.f32 %v1814, %v1782
          %v1817 = vadd.f32 %v1450, %v1815
          %v1818 = vadd.f32 %v1451, %v1816
          %s1819 = sadd.s32 %s1784, 5
          %s1820 = sld [smem:[#allocation6 + %s1819]]
          %v1821 = vstv %s1820
          %v1822 = vmul.f32 %v1821, %v1781
          %v1823 = vmul.f32 %v1821, %v1782
          %v1824 = vadd.f32 %v1468, %v1822
          %v1825 = vadd.f32 %v1469, %v1823
          %s1826 = sadd.s32 %s1784, 6
          %s1827 = sld [smem:[#allocation6 + %s1826]]
          %v1828 = vstv %s1827
          %v1829 = vmul.f32 %v1828, %v1781
          %v1830 = vmul.f32 %v1828, %v1782
          %v1831 = vmul.f32 %v1828, %v1783
          %v1835 = vrot.slane %v1829, 1
          %v1836 = vrot.slane %v1830, 1
          %v1837 = vsel %vm412, %v1835, %v1836
          %v1838 = vrot.slane %v1831, 1
          %v1839 = vsel %vm412, %v1836, %v1838
          %v1842 = vadd.f32 %v1789, %v1837
          %v1843 = vadd.f32 %v1790, %v1839
          %s1844 = sadd.s32 %s1784, 7
          %s1845 = sld [smem:[#allocation6 + %s1844]]
          %v1846 = vstv %s1845
          %v1847 = vmul.f32 %v1846, %v1781
          %v1848 = vmul.f32 %v1846, %v1782
          %v1849 = vmul.f32 %v1846, %v1783
          %v1853 = vrot.slane %v1847, 1
          %v1854 = vrot.slane %v1848, 1
          %v1855 = vsel %vm412, %v1853, %v1854
          %v1856 = vrot.slane %v1849, 1
          %v1857 = vsel %vm412, %v1854, %v1856
          %v1860 = vadd.f32 %v1796, %v1855
          %v1861 = vadd.f32 %v1797, %v1857
          %s1862 = sadd.s32 %s1784, 8
          %s1863 = sld [smem:[#allocation6 + %s1862]]
          %v1864 = vstv %s1863
          %v1865 = vmul.f32 %v1864, %v1781
          %v1866 = vmul.f32 %v1864, %v1782
          %v1867 = vmul.f32 %v1864, %v1783
          %v1871 = vrot.slane %v1865, 1
          %v1872 = vrot.slane %v1866, 1
          %v1873 = vsel %vm412, %v1871, %v1872
          %v1874 = vrot.slane %v1867, 1
          %v1875 = vsel %vm412, %v1872, %v1874
          %v1878 = vadd.f32 %v1803, %v1873
          %v1879 = vadd.f32 %v1804, %v1875
          %s1880 = sadd.s32 %s1784, 9
          %s1881 = sld [smem:[#allocation6 + %s1880]]
          %v1882 = vstv %s1881
          %v1883 = vmul.f32 %v1882, %v1781
          %v1884 = vmul.f32 %v1882, %v1782
          %v1885 = vmul.f32 %v1882, %v1783
          %v1889 = vrot.slane %v1883, 1
          %v1890 = vrot.slane %v1884, 1
          %v1891 = vsel %vm412, %v1889, %v1890
          %v1892 = vrot.slane %v1885, 1
          %v1893 = vsel %vm412, %v1890, %v1892
          %v1896 = vadd.f32 %v1810, %v1891
          %v1897 = vadd.f32 %v1811, %v1893
          %s1898 = sadd.s32 %s1784, 10
          %s1899 = sld [smem:[#allocation6 + %s1898]]
          %v1900 = vstv %s1899
          %v1901 = vmul.f32 %v1900, %v1781
          %v1902 = vmul.f32 %v1900, %v1782
          %v1903 = vmul.f32 %v1900, %v1783
          %v1907 = vrot.slane %v1901, 1
          %v1908 = vrot.slane %v1902, 1
          %v1909 = vsel %vm412, %v1907, %v1908
          %v1910 = vrot.slane %v1903, 1
          %v1911 = vsel %vm412, %v1908, %v1910
          %v1914 = vadd.f32 %v1817, %v1909
          %v1915 = vadd.f32 %v1818, %v1911
          %s1916 = sadd.s32 %s1784, 11
          %s1917 = sld [smem:[#allocation6 + %s1916]]
          %v1918 = vstv %s1917
          %v1919 = vmul.f32 %v1918, %v1781
          %v1920 = vmul.f32 %v1918, %v1782
          %v1921 = vmul.f32 %v1918, %v1783
          %v1925 = vrot.slane %v1919, 1
          %v1926 = vrot.slane %v1920, 1
          %v1927 = vsel %vm412, %v1925, %v1926
          %v1928 = vrot.slane %v1921, 1
          %v1929 = vsel %vm412, %v1926, %v1928
          %v1932 = vadd.f32 %v1824, %v1927
          %v1933 = vadd.f32 %v1825, %v1929
          %s1934 = sadd.s32 %s1784, 12
          %s1935 = sld [smem:[#allocation6 + %s1934]]
          %v1936 = vstv %s1935
          %v1937 = vmul.f32 %v1936, %v1781
          %v1938 = vmul.f32 %v1936, %v1782
          %v1939 = vmul.f32 %v1936, %v1783
          %v1943 = vrot.slane %v1937, 2
          %v1944 = vrot.slane %v1938, 2
          %v1945 = vsel %vm525, %v1943, %v1944
          %v1946 = vrot.slane %v1939, 2
          %v1947 = vsel %vm525, %v1944, %v1946
          %v1950 = vadd.f32 %v1842, %v1945
          %v1951 = vadd.f32 %v1843, %v1947
          %s1952 = sadd.s32 %s1784, 13
          %s1953 = sld [smem:[#allocation6 + %s1952]]
          %v1954 = vstv %s1953
          %v1955 = vmul.f32 %v1954, %v1781
          %v1956 = vmul.f32 %v1954, %v1782
          %v1957 = vmul.f32 %v1954, %v1783
          %v1961 = vrot.slane %v1955, 2
          %v1962 = vrot.slane %v1956, 2
          %v1963 = vsel %vm525, %v1961, %v1962
          %v1964 = vrot.slane %v1957, 2
          %v1965 = vsel %vm525, %v1962, %v1964
          %v1968 = vadd.f32 %v1860, %v1963
          %v1969 = vadd.f32 %v1861, %v1965
          %s1970 = sadd.s32 %s1784, 14
          %s1971 = sld [smem:[#allocation6 + %s1970]]
          %v1972 = vstv %s1971
          %v1973 = vmul.f32 %v1972, %v1781
          %v1974 = vmul.f32 %v1972, %v1782
          %v1975 = vmul.f32 %v1972, %v1783
          %v1979 = vrot.slane %v1973, 2
          %v1980 = vrot.slane %v1974, 2
          %v1981 = vsel %vm525, %v1979, %v1980
          %v1982 = vrot.slane %v1975, 2
          %v1983 = vsel %vm525, %v1980, %v1982
          %v1986 = vadd.f32 %v1878, %v1981
          %v1987 = vadd.f32 %v1879, %v1983
          %s1988 = sadd.s32 %s1784, 15
          %s1989 = sld [smem:[#allocation6 + %s1988]]
          %v1990 = vstv %s1989
          %v1991 = vmul.f32 %v1990, %v1781
          %v1992 = vmul.f32 %v1990, %v1782
          %v1993 = vmul.f32 %v1990, %v1783
          %v1997 = vrot.slane %v1991, 2
          %v1998 = vrot.slane %v1992, 2
          %v1999 = vsel %vm525, %v1997, %v1998
          %v2000 = vrot.slane %v1993, 2
          %v2001 = vsel %vm525, %v1998, %v2000
          %v2004 = vadd.f32 %v1896, %v1999
          %v2005 = vadd.f32 %v1897, %v2001
          %s2006 = sadd.s32 %s1784, 16
          %s2007 = sld [smem:[#allocation6 + %s2006]]
          %v2008 = vstv %s2007
          %v2009 = vmul.f32 %v2008, %v1781
          %v2010 = vmul.f32 %v2008, %v1782
          %v2011 = vmul.f32 %v2008, %v1783
          %v2015 = vrot.slane %v2009, 2
          %v2016 = vrot.slane %v2010, 2
          %v2017 = vsel %vm525, %v2015, %v2016
          %v2018 = vrot.slane %v2011, 2
          %v2019 = vsel %vm525, %v2016, %v2018
          %v2022 = vadd.f32 %v1914, %v2017
          %v2023 = vadd.f32 %v1915, %v2019
          %s2024 = sadd.s32 %s1784, 17
          %s2025 = sld [smem:[#allocation6 + %s2024]]
          %v2026 = vstv %s2025
          %v2027 = vmul.f32 %v2026, %v1781
          %v2028 = vmul.f32 %v2026, %v1782
          %v2029 = vmul.f32 %v2026, %v1783
          %v2033 = vrot.slane %v2027, 2
          %v2034 = vrot.slane %v2028, 2
          %v2035 = vsel %vm525, %v2033, %v2034
          %v2036 = vrot.slane %v2029, 2
          %v2037 = vsel %vm525, %v2034, %v2036
          %v2040 = vadd.f32 %v1932, %v2035
          %v2041 = vadd.f32 %v1933, %v2037
          %s2042 = sadd.s32 %s322, 3
          %s2043 = smul.u32 %s2042, 9
          %s2044 = sld [smem:[#allocation2 + %s2043]]
          %v2045 = vstv %s2044
          %v2046 = vmul.f32 %v2045, %v298
          %v2047 = vmul.f32 %v2045, %v300
          %v2048 = vmul.f32 %v2045, %v302
          %s2049 = sadd.s32 %s2043, 1
          %s2050 = sld [smem:[#allocation2 + %s2049]]
          %v2051 = vstv %s2050
          %v2052 = vmul.f32 %v2051, %v298
          %v2053 = vmul.f32 %v2051, %v299
          %v2054 = vmul.f32 %v2051, %v300
          %v2055 = vmul.f32 %v2051, %v301
          %v2056 = vmul.f32 %v2051, %v302
          %v2057 = vmul.f32 %v2051, %v303
          %2064 = vrot.lane.b32.xlu0 %v2052, 120
          %v2065 = vpop.permute.xlu0 %2064
          %2066 = vrot.lane.b32.xlu0 %v2053, 120
          %v2067 = vpop.permute.xlu0 %2066
          %2068 = vrot.lane.b32.xlu0 %v2054, 120
          %v2069 = vpop.permute.xlu0 %2068
          %2070 = vrot.lane.b32.xlu0 %v2055, 120
          %v2071 = vpop.permute.xlu0 %2070
          %2072 = vrot.lane.b32.xlu0 %v2056, 120
          %v2073 = vpop.permute.xlu0 %2072
          %2074 = vrot.lane.b32.xlu0 %v2057, 120
          %v2075 = vpop.permute.xlu0 %2074
          %v2076 = vsel %vm356, %v2065, %v2067
          %v2077 = vsel %vm356, %v2069, %v2071
          %v2078 = vsel %vm356, %v2073, %v2075
          %v2082 = vadd.f32 %v2046, %v2076
          %v2083 = vadd.f32 %v2047, %v2077
          %v2084 = vadd.f32 %v2048, %v2078
          %s2085 = sadd.s32 %s2043, 2
          %s2086 = sld [smem:[#allocation2 + %s2085]]
          %v2087 = vstv %s2086
          %v2088 = vmul.f32 %v2087, %v298
          %v2089 = vmul.f32 %v2087, %v299
          %v2090 = vmul.f32 %v2087, %v300
          %v2091 = vmul.f32 %v2087, %v301
          %v2092 = vmul.f32 %v2087, %v302
          %v2093 = vmul.f32 %v2087, %v303
          %2100 = vrot.lane.b32.xlu0 %v2088, 112
          %v2101 = vpop.permute.xlu0 %2100
          %2102 = vrot.lane.b32.xlu0 %v2089, 112
          %v2103 = vpop.permute.xlu0 %2102
          %2104 = vrot.lane.b32.xlu0 %v2090, 112
          %v2105 = vpop.permute.xlu0 %2104
          %2106 = vrot.lane.b32.xlu0 %v2091, 112
          %v2107 = vpop.permute.xlu0 %2106
          %2108 = vrot.lane.b32.xlu0 %v2092, 112
          %v2109 = vpop.permute.xlu0 %2108
          %2110 = vrot.lane.b32.xlu0 %v2093, 112
          %v2111 = vpop.permute.xlu0 %2110
          %v2112 = vsel %vm393, %v2101, %v2103
          %v2113 = vsel %vm393, %v2105, %v2107
          %v2114 = vsel %vm393, %v2109, %v2111
          %v2118 = vadd.f32 %v2082, %v2112
          %v2119 = vadd.f32 %v2083, %v2113
          %v2120 = vadd.f32 %v2084, %v2114
          %s2121 = sadd.s32 %s2043, 3
          %s2122 = sld [smem:[#allocation2 + %s2121]]
          %v2123 = vstv %s2122
          %v2124 = vmul.f32 %v2123, %v298
          %v2125 = vmul.f32 %v2123, %v300
          %v2126 = vmul.f32 %v2123, %v302
          %v2130 = vrot.slane %v2124, 1
          %v2131 = vrot.slane %v2125, 1
          %v2132 = vsel %vm412, %v2130, %v2131
          %v2133 = vrot.slane %v2126, 1
          %v2134 = vsel %vm412, %v2131, %v2133
          %v2138 = vadd.f32 %v2118, %v2132
          %v2139 = vadd.f32 %v2119, %v2134
          %v2140 = vadd.f32 %v2120, %v2133
          %s2141 = sadd.s32 %s2043, 4
          %s2142 = sld [smem:[#allocation2 + %s2141]]
          %v2143 = vstv %s2142
          %v2144 = vmul.f32 %v2143, %v298
          %v2145 = vmul.f32 %v2143, %v299
          %v2146 = vmul.f32 %v2143, %v300
          %v2147 = vmul.f32 %v2143, %v301
          %v2148 = vmul.f32 %v2143, %v302
          %v2149 = vmul.f32 %v2143, %v303
          %v2156 = vrot.slane %v2144, 1
          %v2157 = vrot.slane %v2146, 1
          %v2158 = vsel %vm412, %v2156, %v2157
          %v2159 = vrot.slane %v2145, 1
          %v2160 = vrot.slane %v2147, 1
          %v2161 = vsel %vm412, %v2159, %v2160
          %v2162 = vrot.slane %v2148, 1
          %v2163 = vsel %vm412, %v2157, %v2162
          %v2164 = vrot.slane %v2149, 1
          %v2165 = vsel %vm412, %v2160, %v2164
          %2166 = vrot.lane.b32.xlu0 %v2158, 120
          %v2167 = vpop.permute.xlu0 %2166
          %2168 = vrot.lane.b32.xlu0 %v2161, 120
          %v2169 = vpop.permute.xlu0 %2168
          %2170 = vrot.lane.b32.xlu0 %v2163, 120
          %v2171 = vpop.permute.xlu0 %2170
          %2172 = vrot.lane.b32.xlu0 %v2165, 120
          %v2173 = vpop.permute.xlu0 %2172
          %2174 = vrot.lane.b32.xlu0 %v2162, 120
          %v2175 = vpop.permute.xlu0 %2174
          %2176 = vrot.lane.b32.xlu0 %v2164, 120
          %v2177 = vpop.permute.xlu0 %2176
          %v2178 = vsel %vm356, %v2167, %v2169
          %v2179 = vsel %vm356, %v2171, %v2173
          %v2180 = vsel %vm356, %v2175, %v2177
          %v2184 = vadd.f32 %v2138, %v2178
          %v2185 = vadd.f32 %v2139, %v2179
          %v2186 = vadd.f32 %v2140, %v2180
          %s2187 = sadd.s32 %s2043, 5
          %s2188 = sld [smem:[#allocation2 + %s2187]]
          %v2189 = vstv %s2188
          %v2190 = vmul.f32 %v2189, %v298
          %v2191 = vmul.f32 %v2189, %v299
          %v2192 = vmul.f32 %v2189, %v300
          %v2193 = vmul.f32 %v2189, %v301
          %v2194 = vmul.f32 %v2189, %v302
          %v2195 = vmul.f32 %v2189, %v303
          %v2202 = vrot.slane %v2190, 1
          %v2203 = vrot.slane %v2192, 1
          %v2204 = vsel %vm412, %v2202, %v2203
          %v2205 = vrot.slane %v2191, 1
          %v2206 = vrot.slane %v2193, 1
          %v2207 = vsel %vm412, %v2205, %v2206
          %v2208 = vrot.slane %v2194, 1
          %v2209 = vsel %vm412, %v2203, %v2208
          %v2210 = vrot.slane %v2195, 1
          %v2211 = vsel %vm412, %v2206, %v2210
          %2212 = vrot.lane.b32.xlu0 %v2204, 112
          %v2213 = vpop.permute.xlu0 %2212
          %2214 = vrot.lane.b32.xlu0 %v2207, 112
          %v2215 = vpop.permute.xlu0 %2214
          %2216 = vrot.lane.b32.xlu0 %v2209, 112
          %v2217 = vpop.permute.xlu0 %2216
          %2218 = vrot.lane.b32.xlu0 %v2211, 112
          %v2219 = vpop.permute.xlu0 %2218
          %2220 = vrot.lane.b32.xlu0 %v2208, 112
          %v2221 = vpop.permute.xlu0 %2220
          %2222 = vrot.lane.b32.xlu0 %v2210, 112
          %v2223 = vpop.permute.xlu0 %2222
          %v2224 = vsel %vm393, %v2213, %v2215
          %v2225 = vsel %vm393, %v2217, %v2219
          %v2226 = vsel %vm393, %v2221, %v2223
          %v2230 = vadd.f32 %v2184, %v2224
          %v2231 = vadd.f32 %v2185, %v2225
          %v2232 = vadd.f32 %v2186, %v2226
          %s2233 = sadd.s32 %s2043, 6
          %s2234 = sld [smem:[#allocation2 + %s2233]]
          %v2235 = vstv %s2234
          %v2236 = vmul.f32 %v2235, %v298
          %v2237 = vmul.f32 %v2235, %v300
          %v2238 = vmul.f32 %v2235, %v302
          %v2242 = vrot.slane %v2236, 2
          %v2243 = vrot.slane %v2237, 2
          %v2244 = vsel %vm525, %v2242, %v2243
          %v2245 = vrot.slane %v2238, 2
          %v2246 = vsel %vm525, %v2243, %v2245
          %v2250 = vadd.f32 %v2230, %v2244
          %v2251 = vadd.f32 %v2231, %v2246
          %v2252 = vadd.f32 %v2232, %v2245
          %s2253 = sadd.s32 %s2043, 7
          %s2254 = sld [smem:[#allocation2 + %s2253]]
          %v2255 = vstv %s2254
          %v2256 = vmul.f32 %v2255, %v298
          %v2257 = vmul.f32 %v2255, %v299
          %v2258 = vmul.f32 %v2255, %v300
          %v2259 = vmul.f32 %v2255, %v301
          %v2260 = vmul.f32 %v2255, %v302
          %v2261 = vmul.f32 %v2255, %v303
          %v2268 = vrot.slane %v2256, 2
          %v2269 = vrot.slane %v2258, 2
          %v2270 = vsel %vm525, %v2268, %v2269
          %v2271 = vrot.slane %v2257, 2
          %v2272 = vrot.slane %v2259, 2
          %v2273 = vsel %vm525, %v2271, %v2272
          %v2274 = vrot.slane %v2260, 2
          %v2275 = vsel %vm525, %v2269, %v2274
          %v2276 = vrot.slane %v2261, 2
          %v2277 = vsel %vm525, %v2272, %v2276
          %2278 = vrot.lane.b32.xlu0 %v2270, 120
          %v2279 = vpop.permute.xlu0 %2278
          %2280 = vrot.lane.b32.xlu0 %v2273, 120
          %v2281 = vpop.permute.xlu0 %2280
          %2282 = vrot.lane.b32.xlu0 %v2275, 120
          %v2283 = vpop.permute.xlu0 %2282
          %2284 = vrot.lane.b32.xlu0 %v2277, 120
          %v2285 = vpop.permute.xlu0 %2284
          %2286 = vrot.lane.b32.xlu0 %v2274, 120
          %v2287 = vpop.permute.xlu0 %2286
          %2288 = vrot.lane.b32.xlu0 %v2276, 120
          %v2289 = vpop.permute.xlu0 %2288
          %v2290 = vsel %vm356, %v2279, %v2281
          %v2291 = vsel %vm356, %v2283, %v2285
          %v2292 = vsel %vm356, %v2287, %v2289
          %v2296 = vadd.f32 %v2250, %v2290
          %v2297 = vadd.f32 %v2251, %v2291
          %v2298 = vadd.f32 %v2252, %v2292
          %s2299 = sadd.s32 %s2043, 8
          %s2300 = sld [smem:[#allocation2 + %s2299]]
          %v2301 = vstv %s2300
          %v2302 = vmul.f32 %v2301, %v298
          %v2303 = vmul.f32 %v2301, %v299
          %v2304 = vmul.f32 %v2301, %v300
          %v2305 = vmul.f32 %v2301, %v301
          %v2306 = vmul.f32 %v2301, %v302
          %v2307 = vmul.f32 %v2301, %v303
          %v2314 = vrot.slane %v2302, 2
          %v2315 = vrot.slane %v2304, 2
          %v2316 = vsel %vm525, %v2314, %v2315
          %v2317 = vrot.slane %v2303, 2
          %v2318 = vrot.slane %v2305, 2
          %v2319 = vsel %vm525, %v2317, %v2318
          %v2320 = vrot.slane %v2306, 2
          %v2321 = vsel %vm525, %v2315, %v2320
          %v2322 = vrot.slane %v2307, 2
          %v2323 = vsel %vm525, %v2318, %v2322
          %2324 = vrot.lane.b32.xlu0 %v2316, 112
          %v2325 = vpop.permute.xlu0 %2324
          %2326 = vrot.lane.b32.xlu0 %v2319, 112
          %v2327 = vpop.permute.xlu0 %2326
          %2328 = vrot.lane.b32.xlu0 %v2321, 112
          %v2329 = vpop.permute.xlu0 %2328
          %2330 = vrot.lane.b32.xlu0 %v2323, 112
          %v2331 = vpop.permute.xlu0 %2330
          %2332 = vrot.lane.b32.xlu0 %v2320, 112
          %v2333 = vpop.permute.xlu0 %2332
          %2334 = vrot.lane.b32.xlu0 %v2322, 112
          %v2335 = vpop.permute.xlu0 %2334
          %v2336 = vsel %vm393, %v2325, %v2327
          %v2337 = vsel %vm393, %v2329, %v2331
          %v2338 = vsel %vm393, %v2333, %v2335
          %v2342 = vadd.f32 %v2296, %v2336
          %v2343 = vadd.f32 %v2297, %v2337
          %v2344 = vadd.f32 %v2298, %v2338
          %s2345 = sld [smem:[#allocation4 + %s2042]]
          %v2346 = vstv %s2345
          %v2347 = vadd.f32 %v2342, %v2346
          %v2348 = vadd.f32 %v2343, %v2346
          %v2349 = vadd.f32 %v2344, %v2346
          %v2350 = vmax.f32 %v2347, 0.0
          %v2351 = vmax.f32 %v2348, 0.0
          %v2352 = vmax.f32 %v2349, 0.0
          %v2353 = vsel %vm295, %v2350, 0.0
          %v2354 = vsel %vm296, %v2351, 0.0
          %v2355 = vsel %vm297, %v2352, 0.0
          %s2356 = smul.u32 %s2042, 18
          %s2357 = sld [smem:[#allocation6 + %s2356]]
          %v2358 = vstv %s2357
          %v2359 = vmul.f32 %v2358, %v2353
          %v2360 = vmul.f32 %v2358, %v2354
          %v2361 = vadd.f32 %v1950, %v2359
          %v2362 = vadd.f32 %v1951, %v2360
          %s2363 = sadd.s32 %s2356, 1
          %s2364 = sld [smem:[#allocation6 + %s2363]]
          %v2365 = vstv %s2364
          %v2366 = vmul.f32 %v2365, %v2353
          %v2367 = vmul.f32 %v2365, %v2354
          %v2368 = vadd.f32 %v1968, %v2366
          %v2369 = vadd.f32 %v1969, %v2367
          %s2370 = sadd.s32 %s2356, 2
          %s2371 = sld [smem:[#allocation6 + %s2370]]
          %v2372 = vstv %s2371
          %v2373 = vmul.f32 %v2372, %v2353
          %v2374 = vmul.f32 %v2372, %v2354
          %v2375 = vadd.f32 %v1986, %v2373
          %v2376 = vadd.f32 %v1987, %v2374
          %s2377 = sadd.s32 %s2356, 3
          %s2378 = sld [smem:[#allocation6 + %s2377]]
          %v2379 = vstv %s2378
          %v2380 = vmul.f32 %v2379, %v2353
          %v2381 = vmul.f32 %v2379, %v2354
          %v2382 = vadd.f32 %v2004, %v2380
          %v2383 = vadd.f32 %v2005, %v2381
          %s2384 = sadd.s32 %s2356, 4
          %s2385 = sld [smem:[#allocation6 + %s2384]]
          %v2386 = vstv %s2385
          %v2387 = vmul.f32 %v2386, %v2353
          %v2388 = vmul.f32 %v2386, %v2354
          %v2389 = vadd.f32 %v2022, %v2387
          %v2390 = vadd.f32 %v2023, %v2388
          %s2391 = sadd.s32 %s2356, 5
          %s2392 = sld [smem:[#allocation6 + %s2391]]
          %v2393 = vstv %s2392
          %v2394 = vmul.f32 %v2393, %v2353
          %v2395 = vmul.f32 %v2393, %v2354
          %v2396 = vadd.f32 %v2040, %v2394
          %v2397 = vadd.f32 %v2041, %v2395
          %s2398 = sadd.s32 %s2356, 6
          %s2399 = sld [smem:[#allocation6 + %s2398]]
          %v2400 = vstv %s2399
          %v2401 = vmul.f32 %v2400, %v2353
          %v2402 = vmul.f32 %v2400, %v2354
          %v2403 = vmul.f32 %v2400, %v2355
          %v2407 = vrot.slane %v2401, 1
          %v2408 = vrot.slane %v2402, 1
          %v2409 = vsel %vm412, %v2407, %v2408
          %v2410 = vrot.slane %v2403, 1
          %v2411 = vsel %vm412, %v2408, %v2410
          %v2414 = vadd.f32 %v2361, %v2409
          %v2415 = vadd.f32 %v2362, %v2411
          %s2416 = sadd.s32 %s2356, 7
          %s2417 = sld [smem:[#allocation6 + %s2416]]
          %v2418 = vstv %s2417
          %v2419 = vmul.f32 %v2418, %v2353
          %v2420 = vmul.f32 %v2418, %v2354
          %v2421 = vmul.f32 %v2418, %v2355
          %v2425 = vrot.slane %v2419, 1
          %v2426 = vrot.slane %v2420, 1
          %v2427 = vsel %vm412, %v2425, %v2426
          %v2428 = vrot.slane %v2421, 1
          %v2429 = vsel %vm412, %v2426, %v2428
          %v2432 = vadd.f32 %v2368, %v2427
          %v2433 = vadd.f32 %v2369, %v2429
          %s2434 = sadd.s32 %s2356, 8
          %s2435 = sld [smem:[#allocation6 + %s2434]]
          %v2436 = vstv %s2435
          %v2437 = vmul.f32 %v2436, %v2353
          %v2438 = vmul.f32 %v2436, %v2354
          %v2439 = vmul.f32 %v2436, %v2355
          %v2443 = vrot.slane %v2437, 1
          %v2444 = vrot.slane %v2438, 1
          %v2445 = vsel %vm412, %v2443, %v2444
          %v2446 = vrot.slane %v2439, 1
          %v2447 = vsel %vm412, %v2444, %v2446
          %v2450 = vadd.f32 %v2375, %v2445
          %v2451 = vadd.f32 %v2376, %v2447
          %s2452 = sadd.s32 %s2356, 9
          %s2453 = sld [smem:[#allocation6 + %s2452]]
          %v2454 = vstv %s2453
          %v2455 = vmul.f32 %v2454, %v2353
          %v2456 = vmul.f32 %v2454, %v2354
          %v2457 = vmul.f32 %v2454, %v2355
          %v2461 = vrot.slane %v2455, 1
          %v2462 = vrot.slane %v2456, 1
          %v2463 = vsel %vm412, %v2461, %v2462
          %v2464 = vrot.slane %v2457, 1
          %v2465 = vsel %vm412, %v2462, %v2464
          %v2468 = vadd.f32 %v2382, %v2463
          %v2469 = vadd.f32 %v2383, %v2465
          %s2470 = sadd.s32 %s2356, 10
          %s2471 = sld [smem:[#allocation6 + %s2470]]
          %v2472 = vstv %s2471
          %v2473 = vmul.f32 %v2472, %v2353
          %v2474 = vmul.f32 %v2472, %v2354
          %v2475 = vmul.f32 %v2472, %v2355
          %v2479 = vrot.slane %v2473, 1
          %v2480 = vrot.slane %v2474, 1
          %v2481 = vsel %vm412, %v2479, %v2480
          %v2482 = vrot.slane %v2475, 1
          %v2483 = vsel %vm412, %v2480, %v2482
          %v2486 = vadd.f32 %v2389, %v2481
          %v2487 = vadd.f32 %v2390, %v2483
          %s2488 = sadd.s32 %s2356, 11
          %s2489 = sld [smem:[#allocation6 + %s2488]]
          %v2490 = vstv %s2489
          %v2491 = vmul.f32 %v2490, %v2353
          %v2492 = vmul.f32 %v2490, %v2354
          %v2493 = vmul.f32 %v2490, %v2355
          %v2497 = vrot.slane %v2491, 1
          %v2498 = vrot.slane %v2492, 1
          %v2499 = vsel %vm412, %v2497, %v2498
          %v2500 = vrot.slane %v2493, 1
          %v2501 = vsel %vm412, %v2498, %v2500
          %v2504 = vadd.f32 %v2396, %v2499
          %v2505 = vadd.f32 %v2397, %v2501
          %s2506 = sadd.s32 %s2356, 12
          %s2507 = sld [smem:[#allocation6 + %s2506]]
          %v2508 = vstv %s2507
          %v2509 = vmul.f32 %v2508, %v2353
          %v2510 = vmul.f32 %v2508, %v2354
          %v2511 = vmul.f32 %v2508, %v2355
          %v2515 = vrot.slane %v2509, 2
          %v2516 = vrot.slane %v2510, 2
          %v2517 = vsel %vm525, %v2515, %v2516
          %v2518 = vrot.slane %v2511, 2
          %v2519 = vsel %vm525, %v2516, %v2518
          %v2522 = vadd.f32 %v2414, %v2517
          %v2523 = vadd.f32 %v2415, %v2519
          %s2524 = sadd.s32 %s2356, 13
          %s2525 = sld [smem:[#allocation6 + %s2524]]
          %v2526 = vstv %s2525
          %v2527 = vmul.f32 %v2526, %v2353
          %v2528 = vmul.f32 %v2526, %v2354
          %v2529 = vmul.f32 %v2526, %v2355
          %v2533 = vrot.slane %v2527, 2
          %v2534 = vrot.slane %v2528, 2
          %v2535 = vsel %vm525, %v2533, %v2534
          %v2536 = vrot.slane %v2529, 2
          %v2537 = vsel %vm525, %v2534, %v2536
          %v2540 = vadd.f32 %v2432, %v2535
          %v2541 = vadd.f32 %v2433, %v2537
          %s2542 = sadd.s32 %s2356, 14
          %s2543 = sld [smem:[#allocation6 + %s2542]]
          %v2544 = vstv %s2543
          %v2545 = vmul.f32 %v2544, %v2353
          %v2546 = vmul.f32 %v2544, %v2354
          %v2547 = vmul.f32 %v2544, %v2355
          %v2551 = vrot.slane %v2545, 2
          %v2552 = vrot.slane %v2546, 2
          %v2553 = vsel %vm525, %v2551, %v2552
          %v2554 = vrot.slane %v2547, 2
          %v2555 = vsel %vm525, %v2552, %v2554
          %v2558 = vadd.f32 %v2450, %v2553
          %v2559 = vadd.f32 %v2451, %v2555
          %s2560 = sadd.s32 %s2356, 15
          %s2561 = sld [smem:[#allocation6 + %s2560]]
          %v2562 = vstv %s2561
          %v2563 = vmul.f32 %v2562, %v2353
          %v2564 = vmul.f32 %v2562, %v2354
          %v2565 = vmul.f32 %v2562, %v2355
          %v2569 = vrot.slane %v2563, 2
          %v2570 = vrot.slane %v2564, 2
          %v2571 = vsel %vm525, %v2569, %v2570
          %v2572 = vrot.slane %v2565, 2
          %v2573 = vsel %vm525, %v2570, %v2572
          %v2576 = vadd.f32 %v2468, %v2571
          %v2577 = vadd.f32 %v2469, %v2573
          %s2578 = sadd.s32 %s2356, 16
          %s2579 = sld [smem:[#allocation6 + %s2578]]
          %v2580 = vstv %s2579
          %v2581 = vmul.f32 %v2580, %v2353
          %v2582 = vmul.f32 %v2580, %v2354
          %v2583 = vmul.f32 %v2580, %v2355
          %v2587 = vrot.slane %v2581, 2
          %v2588 = vrot.slane %v2582, 2
          %v2589 = vsel %vm525, %v2587, %v2588
          %v2590 = vrot.slane %v2583, 2
          %v2591 = vsel %vm525, %v2588, %v2590
          %v2594 = vadd.f32 %v2486, %v2589
          %v2595 = vadd.f32 %v2487, %v2591
          %s2596 = sadd.s32 %s2356, 17
          %s2597 = sld [smem:[#allocation6 + %s2596]]
          %v2598 = vstv %s2597
          %v2599 = vmul.f32 %v2598, %v2353
          %v2600 = vmul.f32 %v2598, %v2354
          %v2601 = vmul.f32 %v2598, %v2355
          %v2605 = vrot.slane %v2599, 2
          %v2606 = vrot.slane %v2600, 2
          %v2607 = vsel %vm525, %v2605, %v2606
          %v2608 = vrot.slane %v2601, 2
          %v2609 = vsel %vm525, %v2606, %v2608
          %v2612 = vadd.f32 %v2504, %v2607
          %v2613 = vadd.f32 %v2505, %v2609
        $region61: #{parallel_model_forward.1} parent=39 // loop_footer
          %s309 = sadd.s32 1, %s305
        $region62: #{parallel_model_forward.1} parent=39 // loop_footer_branch
          %304 = sbr.rel target = $region58
        $region63: #{parallel_model_forward.1} parent=39 // loop_exit
          _
        %v2614 = vlaneseq
        %v2615 = vand.u32 %v2614, 127
        %vm2616 = vcmp.ge.s32.totalorder %v2615, 8
        %vm2617 = vcmp.lt.s32.totalorder %v2615, 120
        %2618 = vrot.lane.b32.xlu0 %v310, 8
        %v2619 = vpop.permute.xlu0 %2618
        %2620 = vrot.lane.b32.xlu0 %v311, 8
        %v2621 = vpop.permute.xlu0 %2620
        %v2622 = vsel %vm2616, %v2619, 0.0
        %v2623 = vsel %vm2616, %v2621, 0.0
        %2624 = vrot.lane.b32.xlu0 %v318, 120
        %v2625 = vpop.permute.xlu0 %2624
        %2626 = vrot.lane.b32.xlu0 %v319, 120
        %v2627 = vpop.permute.xlu0 %2626
        %v2628 = vsel %vm2617, %v2625, 0.0
        %v2629 = vsel %vm2617, %v2627, 0.0
        %v2630 = vadd.f32 %v314, %v2622
        %v2631 = vadd.f32 %v315, %v2623
        %v2632 = vadd.f32 %v2630, %v2628
        %v2633 = vadd.f32 %v2631, %v2629
        %s2634 = sld [smem:[#allocation7]]
        %v2635 = vstv %s2634
        %v2636 = vadd.f32 %v2632, %v2635
        %v2637 = vadd.f32 %v2633, %v2635
        %2638 = vst [vmem:[%s283] sm:$0xff] %v2636
        %2639 = vst [vmem:[%s283 + $0x8] sm:$0xff] %v2637
        %2640 = vrot.lane.b32.xlu0 %v312, 8
        %v2641 = vpop.permute.xlu0 %2640
        %2642 = vrot.lane.b32.xlu0 %v313, 8
        %v2643 = vpop.permute.xlu0 %2642
        %v2644 = vsel %vm2616, %v2641, 0.0
        %v2645 = vsel %vm2616, %v2643, 0.0
        %2646 = vrot.lane.b32.xlu0 %v320, 120
        %v2647 = vpop.permute.xlu0 %2646
        %2648 = vrot.lane.b32.xlu0 %v321, 120
        %v2649 = vpop.permute.xlu0 %2648
        %v2650 = vsel %vm2617, %v2647, 0.0
        %v2651 = vsel %vm2617, %v2649, 0.0
        %v2652 = vadd.f32 %v316, %v2644
        %v2653 = vadd.f32 %v317, %v2645
        %v2654 = vadd.f32 %v2652, %v2650
        %v2655 = vadd.f32 %v2653, %v2651
        %s2656 = sld [smem:[#allocation7 + $0x1]]
        %v2657 = vstv %s2656
        %v2658 = vadd.f32 %v2654, %v2657
        %v2659 = vadd.f32 %v2655, %v2657
        %s2660 = scalar_lea.vmem %s283, 16
        %2661 = vst [vmem:[%s2660] sm:$0xff] %v2658
        %2662 = vst [vmem:[%s2660 + $0x8] sm:$0xff] %v2659
        %s2663 = scalar_lea.vmem %s276, 48
        %v2664 = vld [vmem:[%s2663] sm:$0xff]
        %v2665 = vld [vmem:[%s2663 + $0x8] sm:$0xff]
        %v2666 = vld [vmem:[%s2663 + $0x10] sm:$0xff]
        %v2667 = vld [vmem:[%s2663 + $0x18] sm:$0xff]
        %v2668 = vld [vmem:[%s2663 + $0x20] sm:$0xf]
        %v2669 = vld [vmem:[%s2663 + $0x28] sm:$0xf]
        loop: start=0, step=1, limit=8
        $region64: #{parallel_model_forward.1} parent=39 // loop_pre_header
          _
        $region65: #{parallel_model_forward.1} parent=39 // loop_header
          %s2671 = sphi 0, %s2675
          %p2672 = scmp.ge.s32.totalorder %s2671, 8
          %v2676 = vphi 0.0, %v4888
          %v2677 = vphi 0.0, %v4889
          %v2678 = vphi 0.0, %v4906
          %v2679 = vphi 0.0, %v4907
          %v2680 = vphi 0.0, %v4924
          %v2681 = vphi 0.0, %v4925
          %v2682 = vphi 0.0, %v4942
          %v2683 = vphi 0.0, %v4943
          %v2684 = vphi 0.0, %v4960
          %v2685 = vphi 0.0, %v4961
          %v2686 = vphi 0.0, %v4978
          %v2687 = vphi 0.0, %v4979
        $region66: #{parallel_model_forward.1} parent=39 // loop_header_branch
          %2674 = sbr.rel (%p2672) target = $region70
        $region67: #{parallel_model_forward.1} parent=39 // loop_body
          %s2688 = smul.u32 %s2671, 4
          %s2689 = smul.u32 %s2671, 36
          %s2690 = sld [smem:[#allocation2 + %s2689]]
          %v2691 = vstv %s2690
          %v2692 = vmul.f32 %v2691, %v2664
          %v2693 = vmul.f32 %v2691, %v2666
          %v2694 = vmul.f32 %v2691, %v2668
          %s2695 = sadd.s32 %s2689, 1
          %s2696 = sld [smem:[#allocation2 + %s2695]]
          %v2697 = vstv %s2696
          %v2698 = vmul.f32 %v2697, %v2664
          %v2699 = vmul.f32 %v2697, %v2665
          %v2700 = vmul.f32 %v2697, %v2666
          %v2701 = vmul.f32 %v2697, %v2667
          %v2702 = vmul.f32 %v2697, %v2668
          %v2703 = vmul.f32 %v2697, %v2669
          %2710 = vrot.lane.b32.xlu0 %v2698, 120
          %v2711 = vpop.permute.xlu0 %2710
          %2712 = vrot.lane.b32.xlu0 %v2699, 120
          %v2713 = vpop.permute.xlu0 %2712
          %2714 = vrot.lane.b32.xlu0 %v2700, 120
          %v2715 = vpop.permute.xlu0 %2714
          %2716 = vrot.lane.b32.xlu0 %v2701, 120
          %v2717 = vpop.permute.xlu0 %2716
          %2718 = vrot.lane.b32.xlu0 %v2702, 120
          %v2719 = vpop.permute.xlu0 %2718
          %2720 = vrot.lane.b32.xlu0 %v2703, 120
          %v2721 = vpop.permute.xlu0 %2720
          %vm2722 = vcmask 982016
          %v2723 = vsel %vm2722, %v2711, %v2713
          %v2724 = vsel %vm2722, %v2715, %v2717
          %v2725 = vsel %vm2722, %v2719, %v2721
          %v2729 = vadd.f32 %v2692, %v2723
          %v2730 = vadd.f32 %v2693, %v2724
          %v2731 = vadd.f32 %v2694, %v2725
          %s2732 = sadd.s32 %s2689, 2
          %s2733 = sld [smem:[#allocation2 + %s2732]]
          %v2734 = vstv %s2733
          %v2735 = vmul.f32 %v2734, %v2664
          %v2736 = vmul.f32 %v2734, %v2665
          %v2737 = vmul.f32 %v2734, %v2666
          %v2738 = vmul.f32 %v2734, %v2667
          %v2739 = vmul.f32 %v2734, %v2668
          %v2740 = vmul.f32 %v2734, %v2669
          %2747 = vrot.lane.b32.xlu0 %v2735, 112
          %v2748 = vpop.permute.xlu0 %2747
          %2749 = vrot.lane.b32.xlu0 %v2736, 112
          %v2750 = vpop.permute.xlu0 %2749
          %2751 = vrot.lane.b32.xlu0 %v2737, 112
          %v2752 = vpop.permute.xlu0 %2751
          %2753 = vrot.lane.b32.xlu0 %v2738, 112
          %v2754 = vpop.permute.xlu0 %2753
          %2755 = vrot.lane.b32.xlu0 %v2739, 112
          %v2756 = vpop.permute.xlu0 %2755
          %2757 = vrot.lane.b32.xlu0 %v2740, 112
          %v2758 = vpop.permute.xlu0 %2757
          %vm2759 = vcmask 916480
          %v2760 = vsel %vm2759, %v2748, %v2750
          %v2761 = vsel %vm2759, %v2752, %v2754
          %v2762 = vsel %vm2759, %v2756, %v2758
          %v2766 = vadd.f32 %v2729, %v2760
          %v2767 = vadd.f32 %v2730, %v2761
          %v2768 = vadd.f32 %v2731, %v2762
          %s2769 = sadd.s32 %s2689, 3
          %s2770 = sld [smem:[#allocation2 + %s2769]]
          %v2771 = vstv %s2770
          %v2772 = vmul.f32 %v2771, %v2664
          %v2773 = vmul.f32 %v2771, %v2666
          %v2774 = vmul.f32 %v2771, %v2668
          %vm2778 = vcmask 1046528
          %v2779 = vrot.slane %v2772, 1
          %v2780 = vrot.slane %v2773, 1
          %v2781 = vsel %vm2778, %v2779, %v2780
          %v2782 = vrot.slane %v2774, 1
          %v2783 = vsel %vm2778, %v2780, %v2782
          %v2787 = vadd.f32 %v2766, %v2781
          %v2788 = vadd.f32 %v2767, %v2783
          %v2789 = vadd.f32 %v2768, %v2782
          %s2790 = sadd.s32 %s2689, 4
          %s2791 = sld [smem:[#allocation2 + %s2790]]
          %v2792 = vstv %s2791
          %v2793 = vmul.f32 %v2792, %v2664
          %v2794 = vmul.f32 %v2792, %v2665
          %v2795 = vmul.f32 %v2792, %v2666
          %v2796 = vmul.f32 %v2792, %v2667
          %v2797 = vmul.f32 %v2792, %v2668
          %v2798 = vmul.f32 %v2792, %v2669
          %v2805 = vrot.slane %v2793, 1
          %v2806 = vrot.slane %v2795, 1
          %v2807 = vsel %vm2778, %v2805, %v2806
          %v2808 = vrot.slane %v2794, 1
          %v2809 = vrot.slane %v2796, 1
          %v2810 = vsel %vm2778, %v2808, %v2809
          %v2811 = vrot.slane %v2797, 1
          %v2812 = vsel %vm2778, %v2806, %v2811
          %v2813 = vrot.slane %v2798, 1
          %v2814 = vsel %vm2778, %v2809, %v2813
          %2815 = vrot.lane.b32.xlu0 %v2807, 120
          %v2816 = vpop.permute.xlu0 %2815
          %2817 = vrot.lane.b32.xlu0 %v2810, 120
          %v2818 = vpop.permute.xlu0 %2817
          %2819 = vrot.lane.b32.xlu0 %v2812, 120
          %v2820 = vpop.permute.xlu0 %2819
          %2821 = vrot.lane.b32.xlu0 %v2814, 120
          %v2822 = vpop.permute.xlu0 %2821
          %2823 = vrot.lane.b32.xlu0 %v2811, 120
          %v2824 = vpop.permute.xlu0 %2823
          %2825 = vrot.lane.b32.xlu0 %v2813, 120
          %v2826 = vpop.permute.xlu0 %2825
          %v2827 = vsel %vm2722, %v2816, %v2818
          %v2828 = vsel %vm2722, %v2820, %v2822
          %v2829 = vsel %vm2722, %v2824, %v2826
          %v2833 = vadd.f32 %v2787, %v2827
          %v2834 = vadd.f32 %v2788, %v2828
          %v2835 = vadd.f32 %v2789, %v2829
          %s2836 = sadd.s32 %s2689, 5
          %s2837 = sld [smem:[#allocation2 + %s2836]]
          %v2838 = vstv %s2837
          %v2839 = vmul.f32 %v2838, %v2664
          %v2840 = vmul.f32 %v2838, %v2665
          %v2841 = vmul.f32 %v2838, %v2666
          %v2842 = vmul.f32 %v2838, %v2667
          %v2843 = vmul.f32 %v2838, %v2668
          %v2844 = vmul.f32 %v2838, %v2669
          %v2851 = vrot.slane %v2839, 1
          %v2852 = vrot.slane %v2841, 1
          %v2853 = vsel %vm2778, %v2851, %v2852
          %v2854 = vrot.slane %v2840, 1
          %v2855 = vrot.slane %v2842, 1
          %v2856 = vsel %vm2778, %v2854, %v2855
          %v2857 = vrot.slane %v2843, 1
          %v2858 = vsel %vm2778, %v2852, %v2857
          %v2859 = vrot.slane %v2844, 1
          %v2860 = vsel %vm2778, %v2855, %v2859
          %2861 = vrot.lane.b32.xlu0 %v2853, 112
          %v2862 = vpop.permute.xlu0 %2861
          %2863 = vrot.lane.b32.xlu0 %v2856, 112
          %v2864 = vpop.permute.xlu0 %2863
          %2865 = vrot.lane.b32.xlu0 %v2858, 112
          %v2866 = vpop.permute.xlu0 %2865
          %2867 = vrot.lane.b32.xlu0 %v2860, 112
          %v2868 = vpop.permute.xlu0 %2867
          %2869 = vrot.lane.b32.xlu0 %v2857, 112
          %v2870 = vpop.permute.xlu0 %2869
          %2871 = vrot.lane.b32.xlu0 %v2859, 112
          %v2872 = vpop.permute.xlu0 %2871
          %v2873 = vsel %vm2759, %v2862, %v2864
          %v2874 = vsel %vm2759, %v2866, %v2868
          %v2875 = vsel %vm2759, %v2870, %v2872
          %v2879 = vadd.f32 %v2833, %v2873
          %v2880 = vadd.f32 %v2834, %v2874
          %v2881 = vadd.f32 %v2835, %v2875
          %s2882 = sadd.s32 %s2689, 6
          %s2883 = sld [smem:[#allocation2 + %s2882]]
          %v2884 = vstv %s2883
          %v2885 = vmul.f32 %v2884, %v2664
          %v2886 = vmul.f32 %v2884, %v2666
          %v2887 = vmul.f32 %v2884, %v2668
          %vm2891 = vcmask 1045504
          %v2892 = vrot.slane %v2885, 2
          %v2893 = vrot.slane %v2886, 2
          %v2894 = vsel %vm2891, %v2892, %v2893
          %v2895 = vrot.slane %v2887, 2
          %v2896 = vsel %vm2891, %v2893, %v2895
          %v2900 = vadd.f32 %v2879, %v2894
          %v2901 = vadd.f32 %v2880, %v2896
          %v2902 = vadd.f32 %v2881, %v2895
          %s2903 = sadd.s32 %s2689, 7
          %s2904 = sld [smem:[#allocation2 + %s2903]]
          %v2905 = vstv %s2904
          %v2906 = vmul.f32 %v2905, %v2664
          %v2907 = vmul.f32 %v2905, %v2665
          %v2908 = vmul.f32 %v2905, %v2666
          %v2909 = vmul.f32 %v2905, %v2667
          %v2910 = vmul.f32 %v2905, %v2668
          %v2911 = vmul.f32 %v2905, %v2669
          %v2918 = vrot.slane %v2906, 2
          %v2919 = vrot.slane %v2908, 2
          %v2920 = vsel %vm2891, %v2918, %v2919
          %v2921 = vrot.slane %v2907, 2
          %v2922 = vrot.slane %v2909, 2
          %v2923 = vsel %vm2891, %v2921, %v2922
          %v2924 = vrot.slane %v2910, 2
          %v2925 = vsel %vm2891, %v2919, %v2924
          %v2926 = vrot.slane %v2911, 2
          %v2927 = vsel %vm2891, %v2922, %v2926
          %2928 = vrot.lane.b32.xlu0 %v2920, 120
          %v2929 = vpop.permute.xlu0 %2928
          %2930 = vrot.lane.b32.xlu0 %v2923, 120
          %v2931 = vpop.permute.xlu0 %2930
          %2932 = vrot.lane.b32.xlu0 %v2925, 120
          %v2933 = vpop.permute.xlu0 %2932
          %2934 = vrot.lane.b32.xlu0 %v2927, 120
          %v2935 = vpop.permute.xlu0 %2934
          %2936 = vrot.lane.b32.xlu0 %v2924, 120
          %v2937 = vpop.permute.xlu0 %2936
          %2938 = vrot.lane.b32.xlu0 %v2926, 120
          %v2939 = vpop.permute.xlu0 %2938
          %v2940 = vsel %vm2722, %v2929, %v2931
          %v2941 = vsel %vm2722, %v2933, %v2935
          %v2942 = vsel %vm2722, %v2937, %v2939
          %v2946 = vadd.f32 %v2900, %v2940
          %v2947 = vadd.f32 %v2901, %v2941
          %v2948 = vadd.f32 %v2902, %v2942
          %s2949 = sadd.s32 %s2689, 8
          %s2950 = sld [smem:[#allocation2 + %s2949]]
          %v2951 = vstv %s2950
          %v2952 = vmul.f32 %v2951, %v2664
          %v2953 = vmul.f32 %v2951, %v2665
          %v2954 = vmul.f32 %v2951, %v2666
          %v2955 = vmul.f32 %v2951, %v2667
          %v2956 = vmul.f32 %v2951, %v2668
          %v2957 = vmul.f32 %v2951, %v2669
          %v2964 = vrot.slane %v2952, 2
          %v2965 = vrot.slane %v2954, 2
          %v2966 = vsel %vm2891, %v2964, %v2965
          %v2967 = vrot.slane %v2953, 2
          %v2968 = vrot.slane %v2955, 2
          %v2969 = vsel %vm2891, %v2967, %v2968
          %v2970 = vrot.slane %v2956, 2
          %v2971 = vsel %vm2891, %v2965, %v2970
          %v2972 = vrot.slane %v2957, 2
          %v2973 = vsel %vm2891, %v2968, %v2972
          %2974 = vrot.lane.b32.xlu0 %v2966, 112
          %v2975 = vpop.permute.xlu0 %2974
          %2976 = vrot.lane.b32.xlu0 %v2969, 112
          %v2977 = vpop.permute.xlu0 %2976
          %2978 = vrot.lane.b32.xlu0 %v2971, 112
          %v2979 = vpop.permute.xlu0 %2978
          %2980 = vrot.lane.b32.xlu0 %v2973, 112
          %v2981 = vpop.permute.xlu0 %2980
          %2982 = vrot.lane.b32.xlu0 %v2970, 112
          %v2983 = vpop.permute.xlu0 %2982
          %2984 = vrot.lane.b32.xlu0 %v2972, 112
          %v2985 = vpop.permute.xlu0 %2984
          %v2986 = vsel %vm2759, %v2975, %v2977
          %v2987 = vsel %vm2759, %v2979, %v2981
          %v2988 = vsel %vm2759, %v2983, %v2985
          %v2992 = vadd.f32 %v2946, %v2986
          %v2993 = vadd.f32 %v2947, %v2987
          %v2994 = vadd.f32 %v2948, %v2988
          %s2995 = sld [smem:[#allocation4 + %s2688]]
          %v2996 = vstv %s2995
          %v2997 = vadd.f32 %v2992, %v2996
          %v2998 = vadd.f32 %v2993, %v2996
          %v2999 = vadd.f32 %v2994, %v2996
          %v3000 = vmax.f32 %v2997, 0.0
          %v3001 = vmax.f32 %v2998, 0.0
          %v3002 = vmax.f32 %v2999, 0.0
          %v3003 = vsel %vm295, %v3000, 0.0
          %v3004 = vsel %vm296, %v3001, 0.0
          %v3005 = vsel %vm297, %v3002, 0.0
          %s3006 = smul.u32 %s2671, 72
          %s3007 = sld [smem:[#allocation6 + %s3006]]
          %v3008 = vstv %s3007
          %v3009 = vmul.f32 %v3008, %v3003
          %v3010 = vmul.f32 %v3008, %v3004
          %v3011 = vadd.f32 %v2676, %v3009
          %v3012 = vadd.f32 %v2677, %v3010
          %s3013 = sadd.s32 %s3006, 1
          %s3014 = sld [smem:[#allocation6 + %s3013]]
          %v3015 = vstv %s3014
          %v3016 = vmul.f32 %v3015, %v3003
          %v3017 = vmul.f32 %v3015, %v3004
          %v3018 = vadd.f32 %v2678, %v3016
          %v3019 = vadd.f32 %v2679, %v3017
          %s3020 = sadd.s32 %s3006, 2
          %s3021 = sld [smem:[#allocation6 + %s3020]]
          %v3022 = vstv %s3021
          %v3023 = vmul.f32 %v3022, %v3003
          %v3024 = vmul.f32 %v3022, %v3004
          %v3025 = vadd.f32 %v2680, %v3023
          %v3026 = vadd.f32 %v2681, %v3024
          %s3027 = sadd.s32 %s3006, 3
          %s3028 = sld [smem:[#allocation6 + %s3027]]
          %v3029 = vstv %s3028
          %v3030 = vmul.f32 %v3029, %v3003
          %v3031 = vmul.f32 %v3029, %v3004
          %v3032 = vadd.f32 %v2682, %v3030
          %v3033 = vadd.f32 %v2683, %v3031
          %s3034 = sadd.s32 %s3006, 4
          %s3035 = sld [smem:[#allocation6 + %s3034]]
          %v3036 = vstv %s3035
          %v3037 = vmul.f32 %v3036, %v3003
          %v3038 = vmul.f32 %v3036, %v3004
          %v3039 = vadd.f32 %v2684, %v3037
          %v3040 = vadd.f32 %v2685, %v3038
          %s3041 = sadd.s32 %s3006, 5
          %s3042 = sld [smem:[#allocation6 + %s3041]]
          %v3043 = vstv %s3042
          %v3044 = vmul.f32 %v3043, %v3003
          %v3045 = vmul.f32 %v3043, %v3004
          %v3046 = vadd.f32 %v2686, %v3044
          %v3047 = vadd.f32 %v2687, %v3045
          %s3048 = sadd.s32 %s3006, 6
          %s3049 = sld [smem:[#allocation6 + %s3048]]
          %v3050 = vstv %s3049
          %v3051 = vmul.f32 %v3050, %v3003
          %v3052 = vmul.f32 %v3050, %v3004
          %v3053 = vmul.f32 %v3050, %v3005
          %v3057 = vrot.slane %v3051, 1
          %v3058 = vrot.slane %v3052, 1
          %v3059 = vsel %vm2778, %v3057, %v3058
          %v3060 = vrot.slane %v3053, 1
          %v3061 = vsel %vm2778, %v3058, %v3060
          %v3064 = vadd.f32 %v3011, %v3059
          %v3065 = vadd.f32 %v3012, %v3061
          %s3066 = sadd.s32 %s3006, 7
          %s3067 = sld [smem:[#allocation6 + %s3066]]
          %v3068 = vstv %s3067
          %v3069 = vmul.f32 %v3068, %v3003
          %v3070 = vmul.f32 %v3068, %v3004
          %v3071 = vmul.f32 %v3068, %v3005
          %v3075 = vrot.slane %v3069, 1
          %v3076 = vrot.slane %v3070, 1
          %v3077 = vsel %vm2778, %v3075, %v3076
          %v3078 = vrot.slane %v3071, 1
          %v3079 = vsel %vm2778, %v3076, %v3078
          %v3082 = vadd.f32 %v3018, %v3077
          %v3083 = vadd.f32 %v3019, %v3079
          %s3084 = sadd.s32 %s3006, 8
          %s3085 = sld [smem:[#allocation6 + %s3084]]
          %v3086 = vstv %s3085
          %v3087 = vmul.f32 %v3086, %v3003
          %v3088 = vmul.f32 %v3086, %v3004
          %v3089 = vmul.f32 %v3086, %v3005
          %v3093 = vrot.slane %v3087, 1
          %v3094 = vrot.slane %v3088, 1
          %v3095 = vsel %vm2778, %v3093, %v3094
          %v3096 = vrot.slane %v3089, 1
          %v3097 = vsel %vm2778, %v3094, %v3096
          %v3100 = vadd.f32 %v3025, %v3095
          %v3101 = vadd.f32 %v3026, %v3097
          %s3102 = sadd.s32 %s3006, 9
          %s3103 = sld [smem:[#allocation6 + %s3102]]
          %v3104 = vstv %s3103
          %v3105 = vmul.f32 %v3104, %v3003
          %v3106 = vmul.f32 %v3104, %v3004
          %v3107 = vmul.f32 %v3104, %v3005
          %v3111 = vrot.slane %v3105, 1
          %v3112 = vrot.slane %v3106, 1
          %v3113 = vsel %vm2778, %v3111, %v3112
          %v3114 = vrot.slane %v3107, 1
          %v3115 = vsel %vm2778, %v3112, %v3114
          %v3118 = vadd.f32 %v3032, %v3113
          %v3119 = vadd.f32 %v3033, %v3115
          %s3120 = sadd.s32 %s3006, 10
          %s3121 = sld [smem:[#allocation6 + %s3120]]
          %v3122 = vstv %s3121
          %v3123 = vmul.f32 %v3122, %v3003
          %v3124 = vmul.f32 %v3122, %v3004
          %v3125 = vmul.f32 %v3122, %v3005
          %v3129 = vrot.slane %v3123, 1
          %v3130 = vrot.slane %v3124, 1
          %v3131 = vsel %vm2778, %v3129, %v3130
          %v3132 = vrot.slane %v3125, 1
          %v3133 = vsel %vm2778, %v3130, %v3132
          %v3136 = vadd.f32 %v3039, %v3131
          %v3137 = vadd.f32 %v3040, %v3133
          %s3138 = sadd.s32 %s3006, 11
          %s3139 = sld [smem:[#allocation6 + %s3138]]
          %v3140 = vstv %s3139
          %v3141 = vmul.f32 %v3140, %v3003
          %v3142 = vmul.f32 %v3140, %v3004
          %v3143 = vmul.f32 %v3140, %v3005
          %v3147 = vrot.slane %v3141, 1
          %v3148 = vrot.slane %v3142, 1
          %v3149 = vsel %vm2778, %v3147, %v3148
          %v3150 = vrot.slane %v3143, 1
          %v3151 = vsel %vm2778, %v3148, %v3150
          %v3154 = vadd.f32 %v3046, %v3149
          %v3155 = vadd.f32 %v3047, %v3151
          %s3156 = sadd.s32 %s3006, 12
          %s3157 = sld [smem:[#allocation6 + %s3156]]
          %v3158 = vstv %s3157
          %v3159 = vmul.f32 %v3158, %v3003
          %v3160 = vmul.f32 %v3158, %v3004
          %v3161 = vmul.f32 %v3158, %v3005
          %v3165 = vrot.slane %v3159, 2
          %v3166 = vrot.slane %v3160, 2
          %v3167 = vsel %vm2891, %v3165, %v3166
          %v3168 = vrot.slane %v3161, 2
          %v3169 = vsel %vm2891, %v3166, %v3168
          %v3172 = vadd.f32 %v3064, %v3167
          %v3173 = vadd.f32 %v3065, %v3169
          %s3174 = sadd.s32 %s3006, 13
          %s3175 = sld [smem:[#allocation6 + %s3174]]
          %v3176 = vstv %s3175
          %v3177 = vmul.f32 %v3176, %v3003
          %v3178 = vmul.f32 %v3176, %v3004
          %v3179 = vmul.f32 %v3176, %v3005
          %v3183 = vrot.slane %v3177, 2
          %v3184 = vrot.slane %v3178, 2
          %v3185 = vsel %vm2891, %v3183, %v3184
          %v3186 = vrot.slane %v3179, 2
          %v3187 = vsel %vm2891, %v3184, %v3186
          %v3190 = vadd.f32 %v3082, %v3185
          %v3191 = vadd.f32 %v3083, %v3187
          %s3192 = sadd.s32 %s3006, 14
          %s3193 = sld [smem:[#allocation6 + %s3192]]
          %v3194 = vstv %s3193
          %v3195 = vmul.f32 %v3194, %v3003
          %v3196 = vmul.f32 %v3194, %v3004
          %v3197 = vmul.f32 %v3194, %v3005
          %v3201 = vrot.slane %v3195, 2
          %v3202 = vrot.slane %v3196, 2
          %v3203 = vsel %vm2891, %v3201, %v3202
          %v3204 = vrot.slane %v3197, 2
          %v3205 = vsel %vm2891, %v3202, %v3204
          %v3208 = vadd.f32 %v3100, %v3203
          %v3209 = vadd.f32 %v3101, %v3205
          %s3210 = sadd.s32 %s3006, 15
          %s3211 = sld [smem:[#allocation6 + %s3210]]
          %v3212 = vstv %s3211
          %v3213 = vmul.f32 %v3212, %v3003
          %v3214 = vmul.f32 %v3212, %v3004
          %v3215 = vmul.f32 %v3212, %v3005
          %v3219 = vrot.slane %v3213, 2
          %v3220 = vrot.slane %v3214, 2
          %v3221 = vsel %vm2891, %v3219, %v3220
          %v3222 = vrot.slane %v3215, 2
          %v3223 = vsel %vm2891, %v3220, %v3222
          %v3226 = vadd.f32 %v3118, %v3221
          %v3227 = vadd.f32 %v3119, %v3223
          %s3228 = sadd.s32 %s3006, 16
          %s3229 = sld [smem:[#allocation6 + %s3228]]
          %v3230 = vstv %s3229
          %v3231 = vmul.f32 %v3230, %v3003
          %v3232 = vmul.f32 %v3230, %v3004
          %v3233 = vmul.f32 %v3230, %v3005
          %v3237 = vrot.slane %v3231, 2
          %v3238 = vrot.slane %v3232, 2
          %v3239 = vsel %vm2891, %v3237, %v3238
          %v3240 = vrot.slane %v3233, 2
          %v3241 = vsel %vm2891, %v3238, %v3240
          %v3244 = vadd.f32 %v3136, %v3239
          %v3245 = vadd.f32 %v3137, %v3241
          %s3246 = sadd.s32 %s3006, 17
          %s3247 = sld [smem:[#allocation6 + %s3246]]
          %v3248 = vstv %s3247
          %v3249 = vmul.f32 %v3248, %v3003
          %v3250 = vmul.f32 %v3248, %v3004
          %v3251 = vmul.f32 %v3248, %v3005
          %v3255 = vrot.slane %v3249, 2
          %v3256 = vrot.slane %v3250, 2
          %v3257 = vsel %vm2891, %v3255, %v3256
          %v3258 = vrot.slane %v3251, 2
          %v3259 = vsel %vm2891, %v3256, %v3258
          %v3262 = vadd.f32 %v3154, %v3257
          %v3263 = vadd.f32 %v3155, %v3259
          %s3264 = sadd.s32 %s2688, 1
          %s3265 = smul.u32 %s3264, 9
          %s3266 = sld [smem:[#allocation2 + %s3265]]
          %v3267 = vstv %s3266
          %v3268 = vmul.f32 %v3267, %v2664
          %v3269 = vmul.f32 %v3267, %v2666
          %v3270 = vmul.f32 %v3267, %v2668
          %s3271 = sadd.s32 %s3265, 1
          %s3272 = sld [smem:[#allocation2 + %s3271]]
          %v3273 = vstv %s3272
          %v3274 = vmul.f32 %v3273, %v2664
          %v3275 = vmul.f32 %v3273, %v2665
          %v3276 = vmul.f32 %v3273, %v2666
          %v3277 = vmul.f32 %v3273, %v2667
          %v3278 = vmul.f32 %v3273, %v2668
          %v3279 = vmul.f32 %v3273, %v2669
          %3286 = vrot.lane.b32.xlu0 %v3274, 120
          %v3287 = vpop.permute.xlu0 %3286
          %3288 = vrot.lane.b32.xlu0 %v3275, 120
          %v3289 = vpop.permute.xlu0 %3288
          %3290 = vrot.lane.b32.xlu0 %v3276, 120
          %v3291 = vpop.permute.xlu0 %3290
          %3292 = vrot.lane.b32.xlu0 %v3277, 120
          %v3293 = vpop.permute.xlu0 %3292
          %3294 = vrot.lane.b32.xlu0 %v3278, 120
          %v3295 = vpop.permute.xlu0 %3294
          %3296 = vrot.lane.b32.xlu0 %v3279, 120
          %v3297 = vpop.permute.xlu0 %3296
          %v3298 = vsel %vm2722, %v3287, %v3289
          %v3299 = vsel %vm2722, %v3291, %v3293
          %v3300 = vsel %vm2722, %v3295, %v3297
          %v3304 = vadd.f32 %v3268, %v3298
          %v3305 = vadd.f32 %v3269, %v3299
          %v3306 = vadd.f32 %v3270, %v3300
          %s3307 = sadd.s32 %s3265, 2
          %s3308 = sld [smem:[#allocation2 + %s3307]]
          %v3309 = vstv %s3308
          %v3310 = vmul.f32 %v3309, %v2664
          %v3311 = vmul.f32 %v3309, %v2665
          %v3312 = vmul.f32 %v3309, %v2666
          %v3313 = vmul.f32 %v3309, %v2667
          %v3314 = vmul.f32 %v3309, %v2668
          %v3315 = vmul.f32 %v3309, %v2669
          %3322 = vrot.lane.b32.xlu0 %v3310, 112
          %v3323 = vpop.permute.xlu0 %3322
          %3324 = vrot.lane.b32.xlu0 %v3311, 112
          %v3325 = vpop.permute.xlu0 %3324
          %3326 = vrot.lane.b32.xlu0 %v3312, 112
          %v3327 = vpop.permute.xlu0 %3326
          %3328 = vrot.lane.b32.xlu0 %v3313, 112
          %v3329 = vpop.permute.xlu0 %3328
          %3330 = vrot.lane.b32.xlu0 %v3314, 112
          %v3331 = vpop.permute.xlu0 %3330
          %3332 = vrot.lane.b32.xlu0 %v3315, 112
          %v3333 = vpop.permute.xlu0 %3332
          %v3334 = vsel %vm2759, %v3323, %v3325
          %v3335 = vsel %vm2759, %v3327, %v3329
          %v3336 = vsel %vm2759, %v3331, %v3333
          %v3340 = vadd.f32 %v3304, %v3334
          %v3341 = vadd.f32 %v3305, %v3335
          %v3342 = vadd.f32 %v3306, %v3336
          %s3343 = sadd.s32 %s3265, 3
          %s3344 = sld [smem:[#allocation2 + %s3343]]
          %v3345 = vstv %s3344
          %v3346 = vmul.f32 %v3345, %v2664
          %v3347 = vmul.f32 %v3345, %v2666
          %v3348 = vmul.f32 %v3345, %v2668
          %v3352 = vrot.slane %v3346, 1
          %v3353 = vrot.slane %v3347, 1
          %v3354 = vsel %vm2778, %v3352, %v3353
          %v3355 = vrot.slane %v3348, 1
          %v3356 = vsel %vm2778, %v3353, %v3355
          %v3360 = vadd.f32 %v3340, %v3354
          %v3361 = vadd.f32 %v3341, %v3356
          %v3362 = vadd.f32 %v3342, %v3355
          %s3363 = sadd.s32 %s3265, 4
          %s3364 = sld [smem:[#allocation2 + %s3363]]
          %v3365 = vstv %s3364
          %v3366 = vmul.f32 %v3365, %v2664
          %v3367 = vmul.f32 %v3365, %v2665
          %v3368 = vmul.f32 %v3365, %v2666
          %v3369 = vmul.f32 %v3365, %v2667
          %v3370 = vmul.f32 %v3365, %v2668
          %v3371 = vmul.f32 %v3365, %v2669
          %v3378 = vrot.slane %v3366, 1
          %v3379 = vrot.slane %v3368, 1
          %v3380 = vsel %vm2778, %v3378, %v3379
          %v3381 = vrot.slane %v3367, 1
          %v3382 = vrot.slane %v3369, 1
          %v3383 = vsel %vm2778, %v3381, %v3382
          %v3384 = vrot.slane %v3370, 1
          %v3385 = vsel %vm2778, %v3379, %v3384
          %v3386 = vrot.slane %v3371, 1
          %v3387 = vsel %vm2778, %v3382, %v3386
          %3388 = vrot.lane.b32.xlu0 %v3380, 120
          %v3389 = vpop.permute.xlu0 %3388
          %3390 = vrot.lane.b32.xlu0 %v3383, 120
          %v3391 = vpop.permute.xlu0 %3390
          %3392 = vrot.lane.b32.xlu0 %v3385, 120
          %v3393 = vpop.permute.xlu0 %3392
          %3394 = vrot.lane.b32.xlu0 %v3387, 120
          %v3395 = vpop.permute.xlu0 %3394
          %3396 = vrot.lane.b32.xlu0 %v3384, 120
          %v3397 = vpop.permute.xlu0 %3396
          %3398 = vrot.lane.b32.xlu0 %v3386, 120
          %v3399 = vpop.permute.xlu0 %3398
          %v3400 = vsel %vm2722, %v3389, %v3391
          %v3401 = vsel %vm2722, %v3393, %v3395
          %v3402 = vsel %vm2722, %v3397, %v3399
          %v3406 = vadd.f32 %v3360, %v3400
          %v3407 = vadd.f32 %v3361, %v3401
          %v3408 = vadd.f32 %v3362, %v3402
          %s3409 = sadd.s32 %s3265, 5
          %s3410 = sld [smem:[#allocation2 + %s3409]]
          %v3411 = vstv %s3410
          %v3412 = vmul.f32 %v3411, %v2664
          %v3413 = vmul.f32 %v3411, %v2665
          %v3414 = vmul.f32 %v3411, %v2666
          %v3415 = vmul.f32 %v3411, %v2667
          %v3416 = vmul.f32 %v3411, %v2668
          %v3417 = vmul.f32 %v3411, %v2669
          %v3424 = vrot.slane %v3412, 1
          %v3425 = vrot.slane %v3414, 1
          %v3426 = vsel %vm2778, %v3424, %v3425
          %v3427 = vrot.slane %v3413, 1
          %v3428 = vrot.slane %v3415, 1
          %v3429 = vsel %vm2778, %v3427, %v3428
          %v3430 = vrot.slane %v3416, 1
          %v3431 = vsel %vm2778, %v3425, %v3430
          %v3432 = vrot.slane %v3417, 1
          %v3433 = vsel %vm2778, %v3428, %v3432
          %3434 = vrot.lane.b32.xlu0 %v3426, 112
          %v3435 = vpop.permute.xlu0 %3434
          %3436 = vrot.lane.b32.xlu0 %v3429, 112
          %v3437 = vpop.permute.xlu0 %3436
          %3438 = vrot.lane.b32.xlu0 %v3431, 112
          %v3439 = vpop.permute.xlu0 %3438
          %3440 = vrot.lane.b32.xlu0 %v3433, 112
          %v3441 = vpop.permute.xlu0 %3440
          %3442 = vrot.lane.b32.xlu0 %v3430, 112
          %v3443 = vpop.permute.xlu0 %3442
          %3444 = vrot.lane.b32.xlu0 %v3432, 112
          %v3445 = vpop.permute.xlu0 %3444
          %v3446 = vsel %vm2759, %v3435, %v3437
          %v3447 = vsel %vm2759, %v3439, %v3441
          %v3448 = vsel %vm2759, %v3443, %v3445
          %v3452 = vadd.f32 %v3406, %v3446
          %v3453 = vadd.f32 %v3407, %v3447
          %v3454 = vadd.f32 %v3408, %v3448
          %s3455 = sadd.s32 %s3265, 6
          %s3456 = sld [smem:[#allocation2 + %s3455]]
          %v3457 = vstv %s3456
          %v3458 = vmul.f32 %v3457, %v2664
          %v3459 = vmul.f32 %v3457, %v2666
          %v3460 = vmul.f32 %v3457, %v2668
          %v3464 = vrot.slane %v3458, 2
          %v3465 = vrot.slane %v3459, 2
          %v3466 = vsel %vm2891, %v3464, %v3465
          %v3467 = vrot.slane %v3460, 2
          %v3468 = vsel %vm2891, %v3465, %v3467
          %v3472 = vadd.f32 %v3452, %v3466
          %v3473 = vadd.f32 %v3453, %v3468
          %v3474 = vadd.f32 %v3454, %v3467
          %s3475 = sadd.s32 %s3265, 7
          %s3476 = sld [smem:[#allocation2 + %s3475]]
          %v3477 = vstv %s3476
          %v3478 = vmul.f32 %v3477, %v2664
          %v3479 = vmul.f32 %v3477, %v2665
          %v3480 = vmul.f32 %v3477, %v2666
          %v3481 = vmul.f32 %v3477, %v2667
          %v3482 = vmul.f32 %v3477, %v2668
          %v3483 = vmul.f32 %v3477, %v2669
          %v3490 = vrot.slane %v3478, 2
          %v3491 = vrot.slane %v3480, 2
          %v3492 = vsel %vm2891, %v3490, %v3491
          %v3493 = vrot.slane %v3479, 2
          %v3494 = vrot.slane %v3481, 2
          %v3495 = vsel %vm2891, %v3493, %v3494
          %v3496 = vrot.slane %v3482, 2
          %v3497 = vsel %vm2891, %v3491, %v3496
          %v3498 = vrot.slane %v3483, 2
          %v3499 = vsel %vm2891, %v3494, %v3498
          %3500 = vrot.lane.b32.xlu0 %v3492, 120
          %v3501 = vpop.permute.xlu0 %3500
          %3502 = vrot.lane.b32.xlu0 %v3495, 120
          %v3503 = vpop.permute.xlu0 %3502
          %3504 = vrot.lane.b32.xlu0 %v3497, 120
          %v3505 = vpop.permute.xlu0 %3504
          %3506 = vrot.lane.b32.xlu0 %v3499, 120
          %v3507 = vpop.permute.xlu0 %3506
          %3508 = vrot.lane.b32.xlu0 %v3496, 120
          %v3509 = vpop.permute.xlu0 %3508
          %3510 = vrot.lane.b32.xlu0 %v3498, 120
          %v3511 = vpop.permute.xlu0 %3510
          %v3512 = vsel %vm2722, %v3501, %v3503
          %v3513 = vsel %vm2722, %v3505, %v3507
          %v3514 = vsel %vm2722, %v3509, %v3511
          %v3518 = vadd.f32 %v3472, %v3512
          %v3519 = vadd.f32 %v3473, %v3513
          %v3520 = vadd.f32 %v3474, %v3514
          %s3521 = sadd.s32 %s3265, 8
          %s3522 = sld [smem:[#allocation2 + %s3521]]
          %v3523 = vstv %s3522
          %v3524 = vmul.f32 %v3523, %v2664
          %v3525 = vmul.f32 %v3523, %v2665
          %v3526 = vmul.f32 %v3523, %v2666
          %v3527 = vmul.f32 %v3523, %v2667
          %v3528 = vmul.f32 %v3523, %v2668
          %v3529 = vmul.f32 %v3523, %v2669
          %v3536 = vrot.slane %v3524, 2
          %v3537 = vrot.slane %v3526, 2
          %v3538 = vsel %vm2891, %v3536, %v3537
          %v3539 = vrot.slane %v3525, 2
          %v3540 = vrot.slane %v3527, 2
          %v3541 = vsel %vm2891, %v3539, %v3540
          %v3542 = vrot.slane %v3528, 2
          %v3543 = vsel %vm2891, %v3537, %v3542
          %v3544 = vrot.slane %v3529, 2
          %v3545 = vsel %vm2891, %v3540, %v3544
          %3546 = vrot.lane.b32.xlu0 %v3538, 112
          %v3547 = vpop.permute.xlu0 %3546
          %3548 = vrot.lane.b32.xlu0 %v3541, 112
          %v3549 = vpop.permute.xlu0 %3548
          %3550 = vrot.lane.b32.xlu0 %v3543, 112
          %v3551 = vpop.permute.xlu0 %3550
          %3552 = vrot.lane.b32.xlu0 %v3545, 112
          %v3553 = vpop.permute.xlu0 %3552
          %3554 = vrot.lane.b32.xlu0 %v3542, 112
          %v3555 = vpop.permute.xlu0 %3554
          %3556 = vrot.lane.b32.xlu0 %v3544, 112
          %v3557 = vpop.permute.xlu0 %3556
          %v3558 = vsel %vm2759, %v3547, %v3549
          %v3559 = vsel %vm2759, %v3551, %v3553
          %v3560 = vsel %vm2759, %v3555, %v3557
          %v3564 = vadd.f32 %v3518, %v3558
          %v3565 = vadd.f32 %v3519, %v3559
          %v3566 = vadd.f32 %v3520, %v3560
          %s3567 = sld [smem:[#allocation4 + %s3264]]
          %v3568 = vstv %s3567
          %v3569 = vadd.f32 %v3564, %v3568
          %v3570 = vadd.f32 %v3565, %v3568
          %v3571 = vadd.f32 %v3566, %v3568
          %v3572 = vmax.f32 %v3569, 0.0
          %v3573 = vmax.f32 %v3570, 0.0
          %v3574 = vmax.f32 %v3571, 0.0
          %v3575 = vsel %vm295, %v3572, 0.0
          %v3576 = vsel %vm296, %v3573, 0.0
          %v3577 = vsel %vm297, %v3574, 0.0
          %s3578 = smul.u32 %s3264, 18
          %s3579 = sld [smem:[#allocation6 + %s3578]]
          %v3580 = vstv %s3579
          %v3581 = vmul.f32 %v3580, %v3575
          %v3582 = vmul.f32 %v3580, %v3576
          %v3583 = vadd.f32 %v3172, %v3581
          %v3584 = vadd.f32 %v3173, %v3582
          %s3585 = sadd.s32 %s3578, 1
          %s3586 = sld [smem:[#allocation6 + %s3585]]
          %v3587 = vstv %s3586
          %v3588 = vmul.f32 %v3587, %v3575
          %v3589 = vmul.f32 %v3587, %v3576
          %v3590 = vadd.f32 %v3190, %v3588
          %v3591 = vadd.f32 %v3191, %v3589
          %s3592 = sadd.s32 %s3578, 2
          %s3593 = sld [smem:[#allocation6 + %s3592]]
          %v3594 = vstv %s3593
          %v3595 = vmul.f32 %v3594, %v3575
          %v3596 = vmul.f32 %v3594, %v3576
          %v3597 = vadd.f32 %v3208, %v3595
          %v3598 = vadd.f32 %v3209, %v3596
          %s3599 = sadd.s32 %s3578, 3
          %s3600 = sld [smem:[#allocation6 + %s3599]]
          %v3601 = vstv %s3600
          %v3602 = vmul.f32 %v3601, %v3575
          %v3603 = vmul.f32 %v3601, %v3576
          %v3604 = vadd.f32 %v3226, %v3602
          %v3605 = vadd.f32 %v3227, %v3603
          %s3606 = sadd.s32 %s3578, 4
          %s3607 = sld [smem:[#allocation6 + %s3606]]
          %v3608 = vstv %s3607
          %v3609 = vmul.f32 %v3608, %v3575
          %v3610 = vmul.f32 %v3608, %v3576
          %v3611 = vadd.f32 %v3244, %v3609
          %v3612 = vadd.f32 %v3245, %v3610
          %s3613 = sadd.s32 %s3578, 5
          %s3614 = sld [smem:[#allocation6 + %s3613]]
          %v3615 = vstv %s3614
          %v3616 = vmul.f32 %v3615, %v3575
          %v3617 = vmul.f32 %v3615, %v3576
          %v3618 = vadd.f32 %v3262, %v3616
          %v3619 = vadd.f32 %v3263, %v3617
          %s3620 = sadd.s32 %s3578, 6
          %s3621 = sld [smem:[#allocation6 + %s3620]]
          %v3622 = vstv %s3621
          %v3623 = vmul.f32 %v3622, %v3575
          %v3624 = vmul.f32 %v3622, %v3576
          %v3625 = vmul.f32 %v3622, %v3577
          %v3629 = vrot.slane %v3623, 1
          %v3630 = vrot.slane %v3624, 1
          %v3631 = vsel %vm2778, %v3629, %v3630
          %v3632 = vrot.slane %v3625, 1
          %v3633 = vsel %vm2778, %v3630, %v3632
          %v3636 = vadd.f32 %v3583, %v3631
          %v3637 = vadd.f32 %v3584, %v3633
          %s3638 = sadd.s32 %s3578, 7
          %s3639 = sld [smem:[#allocation6 + %s3638]]
          %v3640 = vstv %s3639
          %v3641 = vmul.f32 %v3640, %v3575
          %v3642 = vmul.f32 %v3640, %v3576
          %v3643 = vmul.f32 %v3640, %v3577
          %v3647 = vrot.slane %v3641, 1
          %v3648 = vrot.slane %v3642, 1
          %v3649 = vsel %vm2778, %v3647, %v3648
          %v3650 = vrot.slane %v3643, 1
          %v3651 = vsel %vm2778, %v3648, %v3650
          %v3654 = vadd.f32 %v3590, %v3649
          %v3655 = vadd.f32 %v3591, %v3651
          %s3656 = sadd.s32 %s3578, 8
          %s3657 = sld [smem:[#allocation6 + %s3656]]
          %v3658 = vstv %s3657
          %v3659 = vmul.f32 %v3658, %v3575
          %v3660 = vmul.f32 %v3658, %v3576
          %v3661 = vmul.f32 %v3658, %v3577
          %v3665 = vrot.slane %v3659, 1
          %v3666 = vrot.slane %v3660, 1
          %v3667 = vsel %vm2778, %v3665, %v3666
          %v3668 = vrot.slane %v3661, 1
          %v3669 = vsel %vm2778, %v3666, %v3668
          %v3672 = vadd.f32 %v3597, %v3667
          %v3673 = vadd.f32 %v3598, %v3669
          %s3674 = sadd.s32 %s3578, 9
          %s3675 = sld [smem:[#allocation6 + %s3674]]
          %v3676 = vstv %s3675
          %v3677 = vmul.f32 %v3676, %v3575
          %v3678 = vmul.f32 %v3676, %v3576
          %v3679 = vmul.f32 %v3676, %v3577
          %v3683 = vrot.slane %v3677, 1
          %v3684 = vrot.slane %v3678, 1
          %v3685 = vsel %vm2778, %v3683, %v3684
          %v3686 = vrot.slane %v3679, 1
          %v3687 = vsel %vm2778, %v3684, %v3686
          %v3690 = vadd.f32 %v3604, %v3685
          %v3691 = vadd.f32 %v3605, %v3687
          %s3692 = sadd.s32 %s3578, 10
          %s3693 = sld [smem:[#allocation6 + %s3692]]
          %v3694 = vstv %s3693
          %v3695 = vmul.f32 %v3694, %v3575
          %v3696 = vmul.f32 %v3694, %v3576
          %v3697 = vmul.f32 %v3694, %v3577
          %v3701 = vrot.slane %v3695, 1
          %v3702 = vrot.slane %v3696, 1
          %v3703 = vsel %vm2778, %v3701, %v3702
          %v3704 = vrot.slane %v3697, 1
          %v3705 = vsel %vm2778, %v3702, %v3704
          %v3708 = vadd.f32 %v3611, %v3703
          %v3709 = vadd.f32 %v3612, %v3705
          %s3710 = sadd.s32 %s3578, 11
          %s3711 = sld [smem:[#allocation6 + %s3710]]
          %v3712 = vstv %s3711
          %v3713 = vmul.f32 %v3712, %v3575
          %v3714 = vmul.f32 %v3712, %v3576
          %v3715 = vmul.f32 %v3712, %v3577
          %v3719 = vrot.slane %v3713, 1
          %v3720 = vrot.slane %v3714, 1
          %v3721 = vsel %vm2778, %v3719, %v3720
          %v3722 = vrot.slane %v3715, 1
          %v3723 = vsel %vm2778, %v3720, %v3722
          %v3726 = vadd.f32 %v3618, %v3721
          %v3727 = vadd.f32 %v3619, %v3723
          %s3728 = sadd.s32 %s3578, 12
          %s3729 = sld [smem:[#allocation6 + %s3728]]
          %v3730 = vstv %s3729
          %v3731 = vmul.f32 %v3730, %v3575
          %v3732 = vmul.f32 %v3730, %v3576
          %v3733 = vmul.f32 %v3730, %v3577
          %v3737 = vrot.slane %v3731, 2
          %v3738 = vrot.slane %v3732, 2
          %v3739 = vsel %vm2891, %v3737, %v3738
          %v3740 = vrot.slane %v3733, 2
          %v3741 = vsel %vm2891, %v3738, %v3740
          %v3744 = vadd.f32 %v3636, %v3739
          %v3745 = vadd.f32 %v3637, %v3741
          %s3746 = sadd.s32 %s3578, 13
          %s3747 = sld [smem:[#allocation6 + %s3746]]
          %v3748 = vstv %s3747
          %v3749 = vmul.f32 %v3748, %v3575
          %v3750 = vmul.f32 %v3748, %v3576
          %v3751 = vmul.f32 %v3748, %v3577
          %v3755 = vrot.slane %v3749, 2
          %v3756 = vrot.slane %v3750, 2
          %v3757 = vsel %vm2891, %v3755, %v3756
          %v3758 = vrot.slane %v3751, 2
          %v3759 = vsel %vm2891, %v3756, %v3758
          %v3762 = vadd.f32 %v3654, %v3757
          %v3763 = vadd.f32 %v3655, %v3759
          %s3764 = sadd.s32 %s3578, 14
          %s3765 = sld [smem:[#allocation6 + %s3764]]
          %v3766 = vstv %s3765
          %v3767 = vmul.f32 %v3766, %v3575
          %v3768 = vmul.f32 %v3766, %v3576
          %v3769 = vmul.f32 %v3766, %v3577
          %v3773 = vrot.slane %v3767, 2
          %v3774 = vrot.slane %v3768, 2
          %v3775 = vsel %vm2891, %v3773, %v3774
          %v3776 = vrot.slane %v3769, 2
          %v3777 = vsel %vm2891, %v3774, %v3776
          %v3780 = vadd.f32 %v3672, %v3775
          %v3781 = vadd.f32 %v3673, %v3777
          %s3782 = sadd.s32 %s3578, 15
          %s3783 = sld [smem:[#allocation6 + %s3782]]
          %v3784 = vstv %s3783
          %v3785 = vmul.f32 %v3784, %v3575
          %v3786 = vmul.f32 %v3784, %v3576
          %v3787 = vmul.f32 %v3784, %v3577
          %v3791 = vrot.slane %v3785, 2
          %v3792 = vrot.slane %v3786, 2
          %v3793 = vsel %vm2891, %v3791, %v3792
          %v3794 = vrot.slane %v3787, 2
          %v3795 = vsel %vm2891, %v3792, %v3794
          %v3798 = vadd.f32 %v3690, %v3793
          %v3799 = vadd.f32 %v3691, %v3795
          %s3800 = sadd.s32 %s3578, 16
          %s3801 = sld [smem:[#allocation6 + %s3800]]
          %v3802 = vstv %s3801
          %v3803 = vmul.f32 %v3802, %v3575
          %v3804 = vmul.f32 %v3802, %v3576
          %v3805 = vmul.f32 %v3802, %v3577
          %v3809 = vrot.slane %v3803, 2
          %v3810 = vrot.slane %v3804, 2
          %v3811 = vsel %vm2891, %v3809, %v3810
          %v3812 = vrot.slane %v3805, 2
          %v3813 = vsel %vm2891, %v3810, %v3812
          %v3816 = vadd.f32 %v3708, %v3811
          %v3817 = vadd.f32 %v3709, %v3813
          %s3818 = sadd.s32 %s3578, 17
          %s3819 = sld [smem:[#allocation6 + %s3818]]
          %v3820 = vstv %s3819
          %v3821 = vmul.f32 %v3820, %v3575
          %v3822 = vmul.f32 %v3820, %v3576
          %v3823 = vmul.f32 %v3820, %v3577
          %v3827 = vrot.slane %v3821, 2
          %v3828 = vrot.slane %v3822, 2
          %v3829 = vsel %vm2891, %v3827, %v3828
          %v3830 = vrot.slane %v3823, 2
          %v3831 = vsel %vm2891, %v3828, %v3830
          %v3834 = vadd.f32 %v3726, %v3829
          %v3835 = vadd.f32 %v3727, %v3831
          %s3836 = sadd.s32 %s2688, 2
          %s3837 = smul.u32 %s3836, 9
          %s3838 = sld [smem:[#allocation2 + %s3837]]
          %v3839 = vstv %s3838
          %v3840 = vmul.f32 %v3839, %v2664
          %v3841 = vmul.f32 %v3839, %v2666
          %v3842 = vmul.f32 %v3839, %v2668
          %s3843 = sadd.s32 %s3837, 1
          %s3844 = sld [smem:[#allocation2 + %s3843]]
          %v3845 = vstv %s3844
          %v3846 = vmul.f32 %v3845, %v2664
          %v3847 = vmul.f32 %v3845, %v2665
          %v3848 = vmul.f32 %v3845, %v2666
          %v3849 = vmul.f32 %v3845, %v2667
          %v3850 = vmul.f32 %v3845, %v2668
          %v3851 = vmul.f32 %v3845, %v2669
          %3858 = vrot.lane.b32.xlu0 %v3846, 120
          %v3859 = vpop.permute.xlu0 %3858
          %3860 = vrot.lane.b32.xlu0 %v3847, 120
          %v3861 = vpop.permute.xlu0 %3860
          %3862 = vrot.lane.b32.xlu0 %v3848, 120
          %v3863 = vpop.permute.xlu0 %3862
          %3864 = vrot.lane.b32.xlu0 %v3849, 120
          %v3865 = vpop.permute.xlu0 %3864
          %3866 = vrot.lane.b32.xlu0 %v3850, 120
          %v3867 = vpop.permute.xlu0 %3866
          %3868 = vrot.lane.b32.xlu0 %v3851, 120
          %v3869 = vpop.permute.xlu0 %3868
          %v3870 = vsel %vm2722, %v3859, %v3861
          %v3871 = vsel %vm2722, %v3863, %v3865
          %v3872 = vsel %vm2722, %v3867, %v3869
          %v3876 = vadd.f32 %v3840, %v3870
          %v3877 = vadd.f32 %v3841, %v3871
          %v3878 = vadd.f32 %v3842, %v3872
          %s3879 = sadd.s32 %s3837, 2
          %s3880 = sld [smem:[#allocation2 + %s3879]]
          %v3881 = vstv %s3880
          %v3882 = vmul.f32 %v3881, %v2664
          %v3883 = vmul.f32 %v3881, %v2665
          %v3884 = vmul.f32 %v3881, %v2666
          %v3885 = vmul.f32 %v3881, %v2667
          %v3886 = vmul.f32 %v3881, %v2668
          %v3887 = vmul.f32 %v3881, %v2669
          %3894 = vrot.lane.b32.xlu0 %v3882, 112
          %v3895 = vpop.permute.xlu0 %3894
          %3896 = vrot.lane.b32.xlu0 %v3883, 112
          %v3897 = vpop.permute.xlu0 %3896
          %3898 = vrot.lane.b32.xlu0 %v3884, 112
          %v3899 = vpop.permute.xlu0 %3898
          %3900 = vrot.lane.b32.xlu0 %v3885, 112
          %v3901 = vpop.permute.xlu0 %3900
          %3902 = vrot.lane.b32.xlu0 %v3886, 112
          %v3903 = vpop.permute.xlu0 %3902
          %3904 = vrot.lane.b32.xlu0 %v3887, 112
          %v3905 = vpop.permute.xlu0 %3904
          %v3906 = vsel %vm2759, %v3895, %v3897
          %v3907 = vsel %vm2759, %v3899, %v3901
          %v3908 = vsel %vm2759, %v3903, %v3905
          %v3912 = vadd.f32 %v3876, %v3906
          %v3913 = vadd.f32 %v3877, %v3907
          %v3914 = vadd.f32 %v3878, %v3908
          %s3915 = sadd.s32 %s3837, 3
          %s3916 = sld [smem:[#allocation2 + %s3915]]
          %v3917 = vstv %s3916
          %v3918 = vmul.f32 %v3917, %v2664
          %v3919 = vmul.f32 %v3917, %v2666
          %v3920 = vmul.f32 %v3917, %v2668
          %v3924 = vrot.slane %v3918, 1
          %v3925 = vrot.slane %v3919, 1
          %v3926 = vsel %vm2778, %v3924, %v3925
          %v3927 = vrot.slane %v3920, 1
          %v3928 = vsel %vm2778, %v3925, %v3927
          %v3932 = vadd.f32 %v3912, %v3926
          %v3933 = vadd.f32 %v3913, %v3928
          %v3934 = vadd.f32 %v3914, %v3927
          %s3935 = sadd.s32 %s3837, 4
          %s3936 = sld [smem:[#allocation2 + %s3935]]
          %v3937 = vstv %s3936
          %v3938 = vmul.f32 %v3937, %v2664
          %v3939 = vmul.f32 %v3937, %v2665
          %v3940 = vmul.f32 %v3937, %v2666
          %v3941 = vmul.f32 %v3937, %v2667
          %v3942 = vmul.f32 %v3937, %v2668
          %v3943 = vmul.f32 %v3937, %v2669
          %v3950 = vrot.slane %v3938, 1
          %v3951 = vrot.slane %v3940, 1
          %v3952 = vsel %vm2778, %v3950, %v3951
          %v3953 = vrot.slane %v3939, 1
          %v3954 = vrot.slane %v3941, 1
          %v3955 = vsel %vm2778, %v3953, %v3954
          %v3956 = vrot.slane %v3942, 1
          %v3957 = vsel %vm2778, %v3951, %v3956
          %v3958 = vrot.slane %v3943, 1
          %v3959 = vsel %vm2778, %v3954, %v3958
          %3960 = vrot.lane.b32.xlu0 %v3952, 120
          %v3961 = vpop.permute.xlu0 %3960
          %3962 = vrot.lane.b32.xlu0 %v3955, 120
          %v3963 = vpop.permute.xlu0 %3962
          %3964 = vrot.lane.b32.xlu0 %v3957, 120
          %v3965 = vpop.permute.xlu0 %3964
          %3966 = vrot.lane.b32.xlu0 %v3959, 120
          %v3967 = vpop.permute.xlu0 %3966
          %3968 = vrot.lane.b32.xlu0 %v3956, 120
          %v3969 = vpop.permute.xlu0 %3968
          %3970 = vrot.lane.b32.xlu0 %v3958, 120
          %v3971 = vpop.permute.xlu0 %3970
          %v3972 = vsel %vm2722, %v3961, %v3963
          %v3973 = vsel %vm2722, %v3965, %v3967
          %v3974 = vsel %vm2722, %v3969, %v3971
          %v3978 = vadd.f32 %v3932, %v3972
          %v3979 = vadd.f32 %v3933, %v3973
          %v3980 = vadd.f32 %v3934, %v3974
          %s3981 = sadd.s32 %s3837, 5
          %s3982 = sld [smem:[#allocation2 + %s3981]]
          %v3983 = vstv %s3982
          %v3984 = vmul.f32 %v3983, %v2664
          %v3985 = vmul.f32 %v3983, %v2665
          %v3986 = vmul.f32 %v3983, %v2666
          %v3987 = vmul.f32 %v3983, %v2667
          %v3988 = vmul.f32 %v3983, %v2668
          %v3989 = vmul.f32 %v3983, %v2669
          %v3996 = vrot.slane %v3984, 1
          %v3997 = vrot.slane %v3986, 1
          %v3998 = vsel %vm2778, %v3996, %v3997
          %v3999 = vrot.slane %v3985, 1
          %v4000 = vrot.slane %v3987, 1
          %v4001 = vsel %vm2778, %v3999, %v4000
          %v4002 = vrot.slane %v3988, 1
          %v4003 = vsel %vm2778, %v3997, %v4002
          %v4004 = vrot.slane %v3989, 1
          %v4005 = vsel %vm2778, %v4000, %v4004
          %4006 = vrot.lane.b32.xlu0 %v3998, 112
          %v4007 = vpop.permute.xlu0 %4006
          %4008 = vrot.lane.b32.xlu0 %v4001, 112
          %v4009 = vpop.permute.xlu0 %4008
          %4010 = vrot.lane.b32.xlu0 %v4003, 112
          %v4011 = vpop.permute.xlu0 %4010
          %4012 = vrot.lane.b32.xlu0 %v4005, 112
          %v4013 = vpop.permute.xlu0 %4012
          %4014 = vrot.lane.b32.xlu0 %v4002, 112
          %v4015 = vpop.permute.xlu0 %4014
          %4016 = vrot.lane.b32.xlu0 %v4004, 112
          %v4017 = vpop.permute.xlu0 %4016
          %v4018 = vsel %vm2759, %v4007, %v4009
          %v4019 = vsel %vm2759, %v4011, %v4013
          %v4020 = vsel %vm2759, %v4015, %v4017
          %v4024 = vadd.f32 %v3978, %v4018
          %v4025 = vadd.f32 %v3979, %v4019
          %v4026 = vadd.f32 %v3980, %v4020
          %s4027 = sadd.s32 %s3837, 6
          %s4028 = sld [smem:[#allocation2 + %s4027]]
          %v4029 = vstv %s4028
          %v4030 = vmul.f32 %v4029, %v2664
          %v4031 = vmul.f32 %v4029, %v2666
          %v4032 = vmul.f32 %v4029, %v2668
          %v4036 = vrot.slane %v4030, 2
          %v4037 = vrot.slane %v4031, 2
          %v4038 = vsel %vm2891, %v4036, %v4037
          %v4039 = vrot.slane %v4032, 2
          %v4040 = vsel %vm2891, %v4037, %v4039
          %v4044 = vadd.f32 %v4024, %v4038
          %v4045 = vadd.f32 %v4025, %v4040
          %v4046 = vadd.f32 %v4026, %v4039
          %s4047 = sadd.s32 %s3837, 7
          %s4048 = sld [smem:[#allocation2 + %s4047]]
          %v4049 = vstv %s4048
          %v4050 = vmul.f32 %v4049, %v2664
          %v4051 = vmul.f32 %v4049, %v2665
          %v4052 = vmul.f32 %v4049, %v2666
          %v4053 = vmul.f32 %v4049, %v2667
          %v4054 = vmul.f32 %v4049, %v2668
          %v4055 = vmul.f32 %v4049, %v2669
          %v4062 = vrot.slane %v4050, 2
          %v4063 = vrot.slane %v4052, 2
          %v4064 = vsel %vm2891, %v4062, %v4063
          %v4065 = vrot.slane %v4051, 2
          %v4066 = vrot.slane %v4053, 2
          %v4067 = vsel %vm2891, %v4065, %v4066
          %v4068 = vrot.slane %v4054, 2
          %v4069 = vsel %vm2891, %v4063, %v4068
          %v4070 = vrot.slane %v4055, 2
          %v4071 = vsel %vm2891, %v4066, %v4070
          %4072 = vrot.lane.b32.xlu0 %v4064, 120
          %v4073 = vpop.permute.xlu0 %4072
          %4074 = vrot.lane.b32.xlu0 %v4067, 120
          %v4075 = vpop.permute.xlu0 %4074
          %4076 = vrot.lane.b32.xlu0 %v4069, 120
          %v4077 = vpop.permute.xlu0 %4076
          %4078 = vrot.lane.b32.xlu0 %v4071, 120
          %v4079 = vpop.permute.xlu0 %4078
          %4080 = vrot.lane.b32.xlu0 %v4068, 120
          %v4081 = vpop.permute.xlu0 %4080
          %4082 = vrot.lane.b32.xlu0 %v4070, 120
          %v4083 = vpop.permute.xlu0 %4082
          %v4084 = vsel %vm2722, %v4073, %v4075
          %v4085 = vsel %vm2722, %v4077, %v4079
          %v4086 = vsel %vm2722, %v4081, %v4083
          %v4090 = vadd.f32 %v4044, %v4084
          %v4091 = vadd.f32 %v4045, %v4085
          %v4092 = vadd.f32 %v4046, %v4086
          %s4093 = sadd.s32 %s3837, 8
          %s4094 = sld [smem:[#allocation2 + %s4093]]
          %v4095 = vstv %s4094
          %v4096 = vmul.f32 %v4095, %v2664
          %v4097 = vmul.f32 %v4095, %v2665
          %v4098 = vmul.f32 %v4095, %v2666
          %v4099 = vmul.f32 %v4095, %v2667
          %v4100 = vmul.f32 %v4095, %v2668
          %v4101 = vmul.f32 %v4095, %v2669
          %v4108 = vrot.slane %v4096, 2
          %v4109 = vrot.slane %v4098, 2
          %v4110 = vsel %vm2891, %v4108, %v4109
          %v4111 = vrot.slane %v4097, 2
          %v4112 = vrot.slane %v4099, 2
          %v4113 = vsel %vm2891, %v4111, %v4112
          %v4114 = vrot.slane %v4100, 2
          %v4115 = vsel %vm2891, %v4109, %v4114
          %v4116 = vrot.slane %v4101, 2
          %v4117 = vsel %vm2891, %v4112, %v4116
          %4118 = vrot.lane.b32.xlu0 %v4110, 112
          %v4119 = vpop.permute.xlu0 %4118
          %4120 = vrot.lane.b32.xlu0 %v4113, 112
          %v4121 = vpop.permute.xlu0 %4120
          %4122 = vrot.lane.b32.xlu0 %v4115, 112
          %v4123 = vpop.permute.xlu0 %4122
          %4124 = vrot.lane.b32.xlu0 %v4117, 112
          %v4125 = vpop.permute.xlu0 %4124
          %4126 = vrot.lane.b32.xlu0 %v4114, 112
          %v4127 = vpop.permute.xlu0 %4126
          %4128 = vrot.lane.b32.xlu0 %v4116, 112
          %v4129 = vpop.permute.xlu0 %4128
          %v4130 = vsel %vm2759, %v4119, %v4121
          %v4131 = vsel %vm2759, %v4123, %v4125
          %v4132 = vsel %vm2759, %v4127, %v4129
          %v4136 = vadd.f32 %v4090, %v4130
          %v4137 = vadd.f32 %v4091, %v4131
          %v4138 = vadd.f32 %v4092, %v4132
          %s4139 = sld [smem:[#allocation4 + %s3836]]
          %v4140 = vstv %s4139
          %v4141 = vadd.f32 %v4136, %v4140
          %v4142 = vadd.f32 %v4137, %v4140
          %v4143 = vadd.f32 %v4138, %v4140
          %v4144 = vmax.f32 %v4141, 0.0
          %v4145 = vmax.f32 %v4142, 0.0
          %v4146 = vmax.f32 %v4143, 0.0
          %v4147 = vsel %vm295, %v4144, 0.0
          %v4148 = vsel %vm296, %v4145, 0.0
          %v4149 = vsel %vm297, %v4146, 0.0
          %s4150 = smul.u32 %s3836, 18
          %s4151 = sld [smem:[#allocation6 + %s4150]]
          %v4152 = vstv %s4151
          %v4153 = vmul.f32 %v4152, %v4147
          %v4154 = vmul.f32 %v4152, %v4148
          %v4155 = vadd.f32 %v3744, %v4153
          %v4156 = vadd.f32 %v3745, %v4154
          %s4157 = sadd.s32 %s4150, 1
          %s4158 = sld [smem:[#allocation6 + %s4157]]
          %v4159 = vstv %s4158
          %v4160 = vmul.f32 %v4159, %v4147
          %v4161 = vmul.f32 %v4159, %v4148
          %v4162 = vadd.f32 %v3762, %v4160
          %v4163 = vadd.f32 %v3763, %v4161
          %s4164 = sadd.s32 %s4150, 2
          %s4165 = sld [smem:[#allocation6 + %s4164]]
          %v4166 = vstv %s4165
          %v4167 = vmul.f32 %v4166, %v4147
          %v4168 = vmul.f32 %v4166, %v4148
          %v4169 = vadd.f32 %v3780, %v4167
          %v4170 = vadd.f32 %v3781, %v4168
          %s4171 = sadd.s32 %s4150, 3
          %s4172 = sld [smem:[#allocation6 + %s4171]]
          %v4173 = vstv %s4172
          %v4174 = vmul.f32 %v4173, %v4147
          %v4175 = vmul.f32 %v4173, %v4148
          %v4176 = vadd.f32 %v3798, %v4174
          %v4177 = vadd.f32 %v3799, %v4175
          %s4178 = sadd.s32 %s4150, 4
          %s4179 = sld [smem:[#allocation6 + %s4178]]
          %v4180 = vstv %s4179
          %v4181 = vmul.f32 %v4180, %v4147
          %v4182 = vmul.f32 %v4180, %v4148
          %v4183 = vadd.f32 %v3816, %v4181
          %v4184 = vadd.f32 %v3817, %v4182
          %s4185 = sadd.s32 %s4150, 5
          %s4186 = sld [smem:[#allocation6 + %s4185]]
          %v4187 = vstv %s4186
          %v4188 = vmul.f32 %v4187, %v4147
          %v4189 = vmul.f32 %v4187, %v4148
          %v4190 = vadd.f32 %v3834, %v4188
          %v4191 = vadd.f32 %v3835, %v4189
          %s4192 = sadd.s32 %s4150, 6
          %s4193 = sld [smem:[#allocation6 + %s4192]]
          %v4194 = vstv %s4193
          %v4195 = vmul.f32 %v4194, %v4147
          %v4196 = vmul.f32 %v4194, %v4148
          %v4197 = vmul.f32 %v4194, %v4149
          %v4201 = vrot.slane %v4195, 1
          %v4202 = vrot.slane %v4196, 1
          %v4203 = vsel %vm2778, %v4201, %v4202
          %v4204 = vrot.slane %v4197, 1
          %v4205 = vsel %vm2778, %v4202, %v4204
          %v4208 = vadd.f32 %v4155, %v4203
          %v4209 = vadd.f32 %v4156, %v4205
          %s4210 = sadd.s32 %s4150, 7
          %s4211 = sld [smem:[#allocation6 + %s4210]]
          %v4212 = vstv %s4211
          %v4213 = vmul.f32 %v4212, %v4147
          %v4214 = vmul.f32 %v4212, %v4148
          %v4215 = vmul.f32 %v4212, %v4149
          %v4219 = vrot.slane %v4213, 1
          %v4220 = vrot.slane %v4214, 1
          %v4221 = vsel %vm2778, %v4219, %v4220
          %v4222 = vrot.slane %v4215, 1
          %v4223 = vsel %vm2778, %v4220, %v4222
          %v4226 = vadd.f32 %v4162, %v4221
          %v4227 = vadd.f32 %v4163, %v4223
          %s4228 = sadd.s32 %s4150, 8
          %s4229 = sld [smem:[#allocation6 + %s4228]]
          %v4230 = vstv %s4229
          %v4231 = vmul.f32 %v4230, %v4147
          %v4232 = vmul.f32 %v4230, %v4148
          %v4233 = vmul.f32 %v4230, %v4149
          %v4237 = vrot.slane %v4231, 1
          %v4238 = vrot.slane %v4232, 1
          %v4239 = vsel %vm2778, %v4237, %v4238
          %v4240 = vrot.slane %v4233, 1
          %v4241 = vsel %vm2778, %v4238, %v4240
          %v4244 = vadd.f32 %v4169, %v4239
          %v4245 = vadd.f32 %v4170, %v4241
          %s4246 = sadd.s32 %s4150, 9
          %s4247 = sld [smem:[#allocation6 + %s4246]]
          %v4248 = vstv %s4247
          %v4249 = vmul.f32 %v4248, %v4147
          %v4250 = vmul.f32 %v4248, %v4148
          %v4251 = vmul.f32 %v4248, %v4149
          %v4255 = vrot.slane %v4249, 1
          %v4256 = vrot.slane %v4250, 1
          %v4257 = vsel %vm2778, %v4255, %v4256
          %v4258 = vrot.slane %v4251, 1
          %v4259 = vsel %vm2778, %v4256, %v4258
          %v4262 = vadd.f32 %v4176, %v4257
          %v4263 = vadd.f32 %v4177, %v4259
          %s4264 = sadd.s32 %s4150, 10
          %s4265 = sld [smem:[#allocation6 + %s4264]]
          %v4266 = vstv %s4265
          %v4267 = vmul.f32 %v4266, %v4147
          %v4268 = vmul.f32 %v4266, %v4148
          %v4269 = vmul.f32 %v4266, %v4149
          %v4273 = vrot.slane %v4267, 1
          %v4274 = vrot.slane %v4268, 1
          %v4275 = vsel %vm2778, %v4273, %v4274
          %v4276 = vrot.slane %v4269, 1
          %v4277 = vsel %vm2778, %v4274, %v4276
          %v4280 = vadd.f32 %v4183, %v4275
          %v4281 = vadd.f32 %v4184, %v4277
          %s4282 = sadd.s32 %s4150, 11
          %s4283 = sld [smem:[#allocation6 + %s4282]]
          %v4284 = vstv %s4283
          %v4285 = vmul.f32 %v4284, %v4147
          %v4286 = vmul.f32 %v4284, %v4148
          %v4287 = vmul.f32 %v4284, %v4149
          %v4291 = vrot.slane %v4285, 1
          %v4292 = vrot.slane %v4286, 1
          %v4293 = vsel %vm2778, %v4291, %v4292
          %v4294 = vrot.slane %v4287, 1
          %v4295 = vsel %vm2778, %v4292, %v4294
          %v4298 = vadd.f32 %v4190, %v4293
          %v4299 = vadd.f32 %v4191, %v4295
          %s4300 = sadd.s32 %s4150, 12
          %s4301 = sld [smem:[#allocation6 + %s4300]]
          %v4302 = vstv %s4301
          %v4303 = vmul.f32 %v4302, %v4147
          %v4304 = vmul.f32 %v4302, %v4148
          %v4305 = vmul.f32 %v4302, %v4149
          %v4309 = vrot.slane %v4303, 2
          %v4310 = vrot.slane %v4304, 2
          %v4311 = vsel %vm2891, %v4309, %v4310
          %v4312 = vrot.slane %v4305, 2
          %v4313 = vsel %vm2891, %v4310, %v4312
          %v4316 = vadd.f32 %v4208, %v4311
          %v4317 = vadd.f32 %v4209, %v4313
          %s4318 = sadd.s32 %s4150, 13
          %s4319 = sld [smem:[#allocation6 + %s4318]]
          %v4320 = vstv %s4319
          %v4321 = vmul.f32 %v4320, %v4147
          %v4322 = vmul.f32 %v4320, %v4148
          %v4323 = vmul.f32 %v4320, %v4149
          %v4327 = vrot.slane %v4321, 2
          %v4328 = vrot.slane %v4322, 2
          %v4329 = vsel %vm2891, %v4327, %v4328
          %v4330 = vrot.slane %v4323, 2
          %v4331 = vsel %vm2891, %v4328, %v4330
          %v4334 = vadd.f32 %v4226, %v4329
          %v4335 = vadd.f32 %v4227, %v4331
          %s4336 = sadd.s32 %s4150, 14
          %s4337 = sld [smem:[#allocation6 + %s4336]]
          %v4338 = vstv %s4337
          %v4339 = vmul.f32 %v4338, %v4147
          %v4340 = vmul.f32 %v4338, %v4148
          %v4341 = vmul.f32 %v4338, %v4149
          %v4345 = vrot.slane %v4339, 2
          %v4346 = vrot.slane %v4340, 2
          %v4347 = vsel %vm2891, %v4345, %v4346
          %v4348 = vrot.slane %v4341, 2
          %v4349 = vsel %vm2891, %v4346, %v4348
          %v4352 = vadd.f32 %v4244, %v4347
          %v4353 = vadd.f32 %v4245, %v4349
          %s4354 = sadd.s32 %s4150, 15
          %s4355 = sld [smem:[#allocation6 + %s4354]]
          %v4356 = vstv %s4355
          %v4357 = vmul.f32 %v4356, %v4147
          %v4358 = vmul.f32 %v4356, %v4148
          %v4359 = vmul.f32 %v4356, %v4149
          %v4363 = vrot.slane %v4357, 2
          %v4364 = vrot.slane %v4358, 2
          %v4365 = vsel %vm2891, %v4363, %v4364
          %v4366 = vrot.slane %v4359, 2
          %v4367 = vsel %vm2891, %v4364, %v4366
          %v4370 = vadd.f32 %v4262, %v4365
          %v4371 = vadd.f32 %v4263, %v4367
          %s4372 = sadd.s32 %s4150, 16
          %s4373 = sld [smem:[#allocation6 + %s4372]]
          %v4374 = vstv %s4373
          %v4375 = vmul.f32 %v4374, %v4147
          %v4376 = vmul.f32 %v4374, %v4148
          %v4377 = vmul.f32 %v4374, %v4149
          %v4381 = vrot.slane %v4375, 2
          %v4382 = vrot.slane %v4376, 2
          %v4383 = vsel %vm2891, %v4381, %v4382
          %v4384 = vrot.slane %v4377, 2
          %v4385 = vsel %vm2891, %v4382, %v4384
          %v4388 = vadd.f32 %v4280, %v4383
          %v4389 = vadd.f32 %v4281, %v4385
          %s4390 = sadd.s32 %s4150, 17
          %s4391 = sld [smem:[#allocation6 + %s4390]]
          %v4392 = vstv %s4391
          %v4393 = vmul.f32 %v4392, %v4147
          %v4394 = vmul.f32 %v4392, %v4148
          %v4395 = vmul.f32 %v4392, %v4149
          %v4399 = vrot.slane %v4393, 2
          %v4400 = vrot.slane %v4394, 2
          %v4401 = vsel %vm2891, %v4399, %v4400
          %v4402 = vrot.slane %v4395, 2
          %v4403 = vsel %vm2891, %v4400, %v4402
          %v4406 = vadd.f32 %v4298, %v4401
          %v4407 = vadd.f32 %v4299, %v4403
          %s4408 = sadd.s32 %s2688, 3
          %s4409 = smul.u32 %s4408, 9
          %s4410 = sld [smem:[#allocation2 + %s4409]]
          %v4411 = vstv %s4410
          %v4412 = vmul.f32 %v4411, %v2664
          %v4413 = vmul.f32 %v4411, %v2666
          %v4414 = vmul.f32 %v4411, %v2668
          %s4415 = sadd.s32 %s4409, 1
          %s4416 = sld [smem:[#allocation2 + %s4415]]
          %v4417 = vstv %s4416
          %v4418 = vmul.f32 %v4417, %v2664
          %v4419 = vmul.f32 %v4417, %v2665
          %v4420 = vmul.f32 %v4417, %v2666
          %v4421 = vmul.f32 %v4417, %v2667
          %v4422 = vmul.f32 %v4417, %v2668
          %v4423 = vmul.f32 %v4417, %v2669
          %4430 = vrot.lane.b32.xlu0 %v4418, 120
          %v4431 = vpop.permute.xlu0 %4430
          %4432 = vrot.lane.b32.xlu0 %v4419, 120
          %v4433 = vpop.permute.xlu0 %4432
          %4434 = vrot.lane.b32.xlu0 %v4420, 120
          %v4435 = vpop.permute.xlu0 %4434
          %4436 = vrot.lane.b32.xlu0 %v4421, 120
          %v4437 = vpop.permute.xlu0 %4436
          %4438 = vrot.lane.b32.xlu0 %v4422, 120
          %v4439 = vpop.permute.xlu0 %4438
          %4440 = vrot.lane.b32.xlu0 %v4423, 120
          %v4441 = vpop.permute.xlu0 %4440
          %v4442 = vsel %vm2722, %v4431, %v4433
          %v4443 = vsel %vm2722, %v4435, %v4437
          %v4444 = vsel %vm2722, %v4439, %v4441
          %v4448 = vadd.f32 %v4412, %v4442
          %v4449 = vadd.f32 %v4413, %v4443
          %v4450 = vadd.f32 %v4414, %v4444
          %s4451 = sadd.s32 %s4409, 2
          %s4452 = sld [smem:[#allocation2 + %s4451]]
          %v4453 = vstv %s4452
          %v4454 = vmul.f32 %v4453, %v2664
          %v4455 = vmul.f32 %v4453, %v2665
          %v4456 = vmul.f32 %v4453, %v2666
          %v4457 = vmul.f32 %v4453, %v2667
          %v4458 = vmul.f32 %v4453, %v2668
          %v4459 = vmul.f32 %v4453, %v2669
          %4466 = vrot.lane.b32.xlu0 %v4454, 112
          %v4467 = vpop.permute.xlu0 %4466
          %4468 = vrot.lane.b32.xlu0 %v4455, 112
          %v4469 = vpop.permute.xlu0 %4468
          %4470 = vrot.lane.b32.xlu0 %v4456, 112
          %v4471 = vpop.permute.xlu0 %4470
          %4472 = vrot.lane.b32.xlu0 %v4457, 112
          %v4473 = vpop.permute.xlu0 %4472
          %4474 = vrot.lane.b32.xlu0 %v4458, 112
          %v4475 = vpop.permute.xlu0 %4474
          %4476 = vrot.lane.b32.xlu0 %v4459, 112
          %v4477 = vpop.permute.xlu0 %4476
          %v4478 = vsel %vm2759, %v4467, %v4469
          %v4479 = vsel %vm2759, %v4471, %v4473
          %v4480 = vsel %vm2759, %v4475, %v4477
          %v4484 = vadd.f32 %v4448, %v4478
          %v4485 = vadd.f32 %v4449, %v4479
          %v4486 = vadd.f32 %v4450, %v4480
          %s4487 = sadd.s32 %s4409, 3
          %s4488 = sld [smem:[#allocation2 + %s4487]]
          %v4489 = vstv %s4488
          %v4490 = vmul.f32 %v4489, %v2664
          %v4491 = vmul.f32 %v4489, %v2666
          %v4492 = vmul.f32 %v4489, %v2668
          %v4496 = vrot.slane %v4490, 1
          %v4497 = vrot.slane %v4491, 1
          %v4498 = vsel %vm2778, %v4496, %v4497
          %v4499 = vrot.slane %v4492, 1
          %v4500 = vsel %vm2778, %v4497, %v4499
          %v4504 = vadd.f32 %v4484, %v4498
          %v4505 = vadd.f32 %v4485, %v4500
          %v4506 = vadd.f32 %v4486, %v4499
          %s4507 = sadd.s32 %s4409, 4
          %s4508 = sld [smem:[#allocation2 + %s4507]]
          %v4509 = vstv %s4508
          %v4510 = vmul.f32 %v4509, %v2664
          %v4511 = vmul.f32 %v4509, %v2665
          %v4512 = vmul.f32 %v4509, %v2666
          %v4513 = vmul.f32 %v4509, %v2667
          %v4514 = vmul.f32 %v4509, %v2668
          %v4515 = vmul.f32 %v4509, %v2669
          %v4522 = vrot.slane %v4510, 1
          %v4523 = vrot.slane %v4512, 1
          %v4524 = vsel %vm2778, %v4522, %v4523
          %v4525 = vrot.slane %v4511, 1
          %v4526 = vrot.slane %v4513, 1
          %v4527 = vsel %vm2778, %v4525, %v4526
          %v4528 = vrot.slane %v4514, 1
          %v4529 = vsel %vm2778, %v4523, %v4528
          %v4530 = vrot.slane %v4515, 1
          %v4531 = vsel %vm2778, %v4526, %v4530
          %4532 = vrot.lane.b32.xlu0 %v4524, 120
          %v4533 = vpop.permute.xlu0 %4532
          %4534 = vrot.lane.b32.xlu0 %v4527, 120
          %v4535 = vpop.permute.xlu0 %4534
          %4536 = vrot.lane.b32.xlu0 %v4529, 120
          %v4537 = vpop.permute.xlu0 %4536
          %4538 = vrot.lane.b32.xlu0 %v4531, 120
          %v4539 = vpop.permute.xlu0 %4538
          %4540 = vrot.lane.b32.xlu0 %v4528, 120
          %v4541 = vpop.permute.xlu0 %4540
          %4542 = vrot.lane.b32.xlu0 %v4530, 120
          %v4543 = vpop.permute.xlu0 %4542
          %v4544 = vsel %vm2722, %v4533, %v4535
          %v4545 = vsel %vm2722, %v4537, %v4539
          %v4546 = vsel %vm2722, %v4541, %v4543
          %v4550 = vadd.f32 %v4504, %v4544
          %v4551 = vadd.f32 %v4505, %v4545
          %v4552 = vadd.f32 %v4506, %v4546
          %s4553 = sadd.s32 %s4409, 5
          %s4554 = sld [smem:[#allocation2 + %s4553]]
          %v4555 = vstv %s4554
          %v4556 = vmul.f32 %v4555, %v2664
          %v4557 = vmul.f32 %v4555, %v2665
          %v4558 = vmul.f32 %v4555, %v2666
          %v4559 = vmul.f32 %v4555, %v2667
          %v4560 = vmul.f32 %v4555, %v2668
          %v4561 = vmul.f32 %v4555, %v2669
          %v4568 = vrot.slane %v4556, 1
          %v4569 = vrot.slane %v4558, 1
          %v4570 = vsel %vm2778, %v4568, %v4569
          %v4571 = vrot.slane %v4557, 1
          %v4572 = vrot.slane %v4559, 1
          %v4573 = vsel %vm2778, %v4571, %v4572
          %v4574 = vrot.slane %v4560, 1
          %v4575 = vsel %vm2778, %v4569, %v4574
          %v4576 = vrot.slane %v4561, 1
          %v4577 = vsel %vm2778, %v4572, %v4576
          %4578 = vrot.lane.b32.xlu0 %v4570, 112
          %v4579 = vpop.permute.xlu0 %4578
          %4580 = vrot.lane.b32.xlu0 %v4573, 112
          %v4581 = vpop.permute.xlu0 %4580
          %4582 = vrot.lane.b32.xlu0 %v4575, 112
          %v4583 = vpop.permute.xlu0 %4582
          %4584 = vrot.lane.b32.xlu0 %v4577, 112
          %v4585 = vpop.permute.xlu0 %4584
          %4586 = vrot.lane.b32.xlu0 %v4574, 112
          %v4587 = vpop.permute.xlu0 %4586
          %4588 = vrot.lane.b32.xlu0 %v4576, 112
          %v4589 = vpop.permute.xlu0 %4588
          %v4590 = vsel %vm2759, %v4579, %v4581
          %v4591 = vsel %vm2759, %v4583, %v4585
          %v4592 = vsel %vm2759, %v4587, %v4589
          %v4596 = vadd.f32 %v4550, %v4590
          %v4597 = vadd.f32 %v4551, %v4591
          %v4598 = vadd.f32 %v4552, %v4592
          %s4599 = sadd.s32 %s4409, 6
          %s4600 = sld [smem:[#allocation2 + %s4599]]
          %v4601 = vstv %s4600
          %v4602 = vmul.f32 %v4601, %v2664
          %v4603 = vmul.f32 %v4601, %v2666
          %v4604 = vmul.f32 %v4601, %v2668
          %v4608 = vrot.slane %v4602, 2
          %v4609 = vrot.slane %v4603, 2
          %v4610 = vsel %vm2891, %v4608, %v4609
          %v4611 = vrot.slane %v4604, 2
          %v4612 = vsel %vm2891, %v4609, %v4611
          %v4616 = vadd.f32 %v4596, %v4610
          %v4617 = vadd.f32 %v4597, %v4612
          %v4618 = vadd.f32 %v4598, %v4611
          %s4619 = sadd.s32 %s4409, 7
          %s4620 = sld [smem:[#allocation2 + %s4619]]
          %v4621 = vstv %s4620
          %v4622 = vmul.f32 %v4621, %v2664
          %v4623 = vmul.f32 %v4621, %v2665
          %v4624 = vmul.f32 %v4621, %v2666
          %v4625 = vmul.f32 %v4621, %v2667
          %v4626 = vmul.f32 %v4621, %v2668
          %v4627 = vmul.f32 %v4621, %v2669
          %v4634 = vrot.slane %v4622, 2
          %v4635 = vrot.slane %v4624, 2
          %v4636 = vsel %vm2891, %v4634, %v4635
          %v4637 = vrot.slane %v4623, 2
          %v4638 = vrot.slane %v4625, 2
          %v4639 = vsel %vm2891, %v4637, %v4638
          %v4640 = vrot.slane %v4626, 2
          %v4641 = vsel %vm2891, %v4635, %v4640
          %v4642 = vrot.slane %v4627, 2
          %v4643 = vsel %vm2891, %v4638, %v4642
          %4644 = vrot.lane.b32.xlu0 %v4636, 120
          %v4645 = vpop.permute.xlu0 %4644
          %4646 = vrot.lane.b32.xlu0 %v4639, 120
          %v4647 = vpop.permute.xlu0 %4646
          %4648 = vrot.lane.b32.xlu0 %v4641, 120
          %v4649 = vpop.permute.xlu0 %4648
          %4650 = vrot.lane.b32.xlu0 %v4643, 120
          %v4651 = vpop.permute.xlu0 %4650
          %4652 = vrot.lane.b32.xlu0 %v4640, 120
          %v4653 = vpop.permute.xlu0 %4652
          %4654 = vrot.lane.b32.xlu0 %v4642, 120
          %v4655 = vpop.permute.xlu0 %4654
          %v4656 = vsel %vm2722, %v4645, %v4647
          %v4657 = vsel %vm2722, %v4649, %v4651
          %v4658 = vsel %vm2722, %v4653, %v4655
          %v4662 = vadd.f32 %v4616, %v4656
          %v4663 = vadd.f32 %v4617, %v4657
          %v4664 = vadd.f32 %v4618, %v4658
          %s4665 = sadd.s32 %s4409, 8
          %s4666 = sld [smem:[#allocation2 + %s4665]]
          %v4667 = vstv %s4666
          %v4668 = vmul.f32 %v4667, %v2664
          %v4669 = vmul.f32 %v4667, %v2665
          %v4670 = vmul.f32 %v4667, %v2666
          %v4671 = vmul.f32 %v4667, %v2667
          %v4672 = vmul.f32 %v4667, %v2668
          %v4673 = vmul.f32 %v4667, %v2669
          %v4680 = vrot.slane %v4668, 2
          %v4681 = vrot.slane %v4670, 2
          %v4682 = vsel %vm2891, %v4680, %v4681
          %v4683 = vrot.slane %v4669, 2
          %v4684 = vrot.slane %v4671, 2
          %v4685 = vsel %vm2891, %v4683, %v4684
          %v4686 = vrot.slane %v4672, 2
          %v4687 = vsel %vm2891, %v4681, %v4686
          %v4688 = vrot.slane %v4673, 2
          %v4689 = vsel %vm2891, %v4684, %v4688
          %4690 = vrot.lane.b32.xlu0 %v4682, 112
          %v4691 = vpop.permute.xlu0 %4690
          %4692 = vrot.lane.b32.xlu0 %v4685, 112
          %v4693 = vpop.permute.xlu0 %4692
          %4694 = vrot.lane.b32.xlu0 %v4687, 112
          %v4695 = vpop.permute.xlu0 %4694
          %4696 = vrot.lane.b32.xlu0 %v4689, 112
          %v4697 = vpop.permute.xlu0 %4696
          %4698 = vrot.lane.b32.xlu0 %v4686, 112
          %v4699 = vpop.permute.xlu0 %4698
          %4700 = vrot.lane.b32.xlu0 %v4688, 112
          %v4701 = vpop.permute.xlu0 %4700
          %v4702 = vsel %vm2759, %v4691, %v4693
          %v4703 = vsel %vm2759, %v4695, %v4697
          %v4704 = vsel %vm2759, %v4699, %v4701
          %v4708 = vadd.f32 %v4662, %v4702
          %v4709 = vadd.f32 %v4663, %v4703
          %v4710 = vadd.f32 %v4664, %v4704
          %s4711 = sld [smem:[#allocation4 + %s4408]]
          %v4712 = vstv %s4711
          %v4713 = vadd.f32 %v4708, %v4712
          %v4714 = vadd.f32 %v4709, %v4712
          %v4715 = vadd.f32 %v4710, %v4712
          %v4716 = vmax.f32 %v4713, 0.0
          %v4717 = vmax.f32 %v4714, 0.0
          %v4718 = vmax.f32 %v4715, 0.0
          %v4719 = vsel %vm295, %v4716, 0.0
          %v4720 = vsel %vm296, %v4717, 0.0
          %v4721 = vsel %vm297, %v4718, 0.0
          %s4722 = smul.u32 %s4408, 18
          %s4723 = sld [smem:[#allocation6 + %s4722]]
          %v4724 = vstv %s4723
          %v4725 = vmul.f32 %v4724, %v4719
          %v4726 = vmul.f32 %v4724, %v4720
          %v4727 = vadd.f32 %v4316, %v4725
          %v4728 = vadd.f32 %v4317, %v4726
          %s4729 = sadd.s32 %s4722, 1
          %s4730 = sld [smem:[#allocation6 + %s4729]]
          %v4731 = vstv %s4730
          %v4732 = vmul.f32 %v4731, %v4719
          %v4733 = vmul.f32 %v4731, %v4720
          %v4734 = vadd.f32 %v4334, %v4732
          %v4735 = vadd.f32 %v4335, %v4733
          %s4736 = sadd.s32 %s4722, 2
          %s4737 = sld [smem:[#allocation6 + %s4736]]
          %v4738 = vstv %s4737
          %v4739 = vmul.f32 %v4738, %v4719
          %v4740 = vmul.f32 %v4738, %v4720
          %v4741 = vadd.f32 %v4352, %v4739
          %v4742 = vadd.f32 %v4353, %v4740
          %s4743 = sadd.s32 %s4722, 3
          %s4744 = sld [smem:[#allocation6 + %s4743]]
          %v4745 = vstv %s4744
          %v4746 = vmul.f32 %v4745, %v4719
          %v4747 = vmul.f32 %v4745, %v4720
          %v4748 = vadd.f32 %v4370, %v4746
          %v4749 = vadd.f32 %v4371, %v4747
          %s4750 = sadd.s32 %s4722, 4
          %s4751 = sld [smem:[#allocation6 + %s4750]]
          %v4752 = vstv %s4751
          %v4753 = vmul.f32 %v4752, %v4719
          %v4754 = vmul.f32 %v4752, %v4720
          %v4755 = vadd.f32 %v4388, %v4753
          %v4756 = vadd.f32 %v4389, %v4754
          %s4757 = sadd.s32 %s4722, 5
          %s4758 = sld [smem:[#allocation6 + %s4757]]
          %v4759 = vstv %s4758
          %v4760 = vmul.f32 %v4759, %v4719
          %v4761 = vmul.f32 %v4759, %v4720
          %v4762 = vadd.f32 %v4406, %v4760
          %v4763 = vadd.f32 %v4407, %v4761
          %s4764 = sadd.s32 %s4722, 6
          %s4765 = sld [smem:[#allocation6 + %s4764]]
          %v4766 = vstv %s4765
          %v4767 = vmul.f32 %v4766, %v4719
          %v4768 = vmul.f32 %v4766, %v4720
          %v4769 = vmul.f32 %v4766, %v4721
          %v4773 = vrot.slane %v4767, 1
          %v4774 = vrot.slane %v4768, 1
          %v4775 = vsel %vm2778, %v4773, %v4774
          %v4776 = vrot.slane %v4769, 1
          %v4777 = vsel %vm2778, %v4774, %v4776
          %v4780 = vadd.f32 %v4727, %v4775
          %v4781 = vadd.f32 %v4728, %v4777
          %s4782 = sadd.s32 %s4722, 7
          %s4783 = sld [smem:[#allocation6 + %s4782]]
          %v4784 = vstv %s4783
          %v4785 = vmul.f32 %v4784, %v4719
          %v4786 = vmul.f32 %v4784, %v4720
          %v4787 = vmul.f32 %v4784, %v4721
          %v4791 = vrot.slane %v4785, 1
          %v4792 = vrot.slane %v4786, 1
          %v4793 = vsel %vm2778, %v4791, %v4792
          %v4794 = vrot.slane %v4787, 1
          %v4795 = vsel %vm2778, %v4792, %v4794
          %v4798 = vadd.f32 %v4734, %v4793
          %v4799 = vadd.f32 %v4735, %v4795
          %s4800 = sadd.s32 %s4722, 8
          %s4801 = sld [smem:[#allocation6 + %s4800]]
          %v4802 = vstv %s4801
          %v4803 = vmul.f32 %v4802, %v4719
          %v4804 = vmul.f32 %v4802, %v4720
          %v4805 = vmul.f32 %v4802, %v4721
          %v4809 = vrot.slane %v4803, 1
          %v4810 = vrot.slane %v4804, 1
          %v4811 = vsel %vm2778, %v4809, %v4810
          %v4812 = vrot.slane %v4805, 1
          %v4813 = vsel %vm2778, %v4810, %v4812
          %v4816 = vadd.f32 %v4741, %v4811
          %v4817 = vadd.f32 %v4742, %v4813
          %s4818 = sadd.s32 %s4722, 9
          %s4819 = sld [smem:[#allocation6 + %s4818]]
          %v4820 = vstv %s4819
          %v4821 = vmul.f32 %v4820, %v4719
          %v4822 = vmul.f32 %v4820, %v4720
          %v4823 = vmul.f32 %v4820, %v4721
          %v4827 = vrot.slane %v4821, 1
          %v4828 = vrot.slane %v4822, 1
          %v4829 = vsel %vm2778, %v4827, %v4828
          %v4830 = vrot.slane %v4823, 1
          %v4831 = vsel %vm2778, %v4828, %v4830
          %v4834 = vadd.f32 %v4748, %v4829
          %v4835 = vadd.f32 %v4749, %v4831
          %s4836 = sadd.s32 %s4722, 10
          %s4837 = sld [smem:[#allocation6 + %s4836]]
          %v4838 = vstv %s4837
          %v4839 = vmul.f32 %v4838, %v4719
          %v4840 = vmul.f32 %v4838, %v4720
          %v4841 = vmul.f32 %v4838, %v4721
          %v4845 = vrot.slane %v4839, 1
          %v4846 = vrot.slane %v4840, 1
          %v4847 = vsel %vm2778, %v4845, %v4846
          %v4848 = vrot.slane %v4841, 1
          %v4849 = vsel %vm2778, %v4846, %v4848
          %v4852 = vadd.f32 %v4755, %v4847
          %v4853 = vadd.f32 %v4756, %v4849
          %s4854 = sadd.s32 %s4722, 11
          %s4855 = sld [smem:[#allocation6 + %s4854]]
          %v4856 = vstv %s4855
          %v4857 = vmul.f32 %v4856, %v4719
          %v4858 = vmul.f32 %v4856, %v4720
          %v4859 = vmul.f32 %v4856, %v4721
          %v4863 = vrot.slane %v4857, 1
          %v4864 = vrot.slane %v4858, 1
          %v4865 = vsel %vm2778, %v4863, %v4864
          %v4866 = vrot.slane %v4859, 1
          %v4867 = vsel %vm2778, %v4864, %v4866
          %v4870 = vadd.f32 %v4762, %v4865
          %v4871 = vadd.f32 %v4763, %v4867
          %s4872 = sadd.s32 %s4722, 12
          %s4873 = sld [smem:[#allocation6 + %s4872]]
          %v4874 = vstv %s4873
          %v4875 = vmul.f32 %v4874, %v4719
          %v4876 = vmul.f32 %v4874, %v4720
          %v4877 = vmul.f32 %v4874, %v4721
          %v4881 = vrot.slane %v4875, 2
          %v4882 = vrot.slane %v4876, 2
          %v4883 = vsel %vm2891, %v4881, %v4882
          %v4884 = vrot.slane %v4877, 2
          %v4885 = vsel %vm2891, %v4882, %v4884
          %v4888 = vadd.f32 %v4780, %v4883
          %v4889 = vadd.f32 %v4781, %v4885
          %s4890 = sadd.s32 %s4722, 13
          %s4891 = sld [smem:[#allocation6 + %s4890]]
          %v4892 = vstv %s4891
          %v4893 = vmul.f32 %v4892, %v4719
          %v4894 = vmul.f32 %v4892, %v4720
          %v4895 = vmul.f32 %v4892, %v4721
          %v4899 = vrot.slane %v4893, 2
          %v4900 = vrot.slane %v4894, 2
          %v4901 = vsel %vm2891, %v4899, %v4900
          %v4902 = vrot.slane %v4895, 2
          %v4903 = vsel %vm2891, %v4900, %v4902
          %v4906 = vadd.f32 %v4798, %v4901
          %v4907 = vadd.f32 %v4799, %v4903
          %s4908 = sadd.s32 %s4722, 14
          %s4909 = sld [smem:[#allocation6 + %s4908]]
          %v4910 = vstv %s4909
          %v4911 = vmul.f32 %v4910, %v4719
          %v4912 = vmul.f32 %v4910, %v4720
          %v4913 = vmul.f32 %v4910, %v4721
          %v4917 = vrot.slane %v4911, 2
          %v4918 = vrot.slane %v4912, 2
          %v4919 = vsel %vm2891, %v4917, %v4918
          %v4920 = vrot.slane %v4913, 2
          %v4921 = vsel %vm2891, %v4918, %v4920
          %v4924 = vadd.f32 %v4816, %v4919
          %v4925 = vadd.f32 %v4817, %v4921
          %s4926 = sadd.s32 %s4722, 15
          %s4927 = sld [smem:[#allocation6 + %s4926]]
          %v4928 = vstv %s4927
          %v4929 = vmul.f32 %v4928, %v4719
          %v4930 = vmul.f32 %v4928, %v4720
          %v4931 = vmul.f32 %v4928, %v4721
          %v4935 = vrot.slane %v4929, 2
          %v4936 = vrot.slane %v4930, 2
          %v4937 = vsel %vm2891, %v4935, %v4936
          %v4938 = vrot.slane %v4931, 2
          %v4939 = vsel %vm2891, %v4936, %v4938
          %v4942 = vadd.f32 %v4834, %v4937
          %v4943 = vadd.f32 %v4835, %v4939
          %s4944 = sadd.s32 %s4722, 16
          %s4945 = sld [smem:[#allocation6 + %s4944]]
          %v4946 = vstv %s4945
          %v4947 = vmul.f32 %v4946, %v4719
          %v4948 = vmul.f32 %v4946, %v4720
          %v4949 = vmul.f32 %v4946, %v4721
          %v4953 = vrot.slane %v4947, 2
          %v4954 = vrot.slane %v4948, 2
          %v4955 = vsel %vm2891, %v4953, %v4954
          %v4956 = vrot.slane %v4949, 2
          %v4957 = vsel %vm2891, %v4954, %v4956
          %v4960 = vadd.f32 %v4852, %v4955
          %v4961 = vadd.f32 %v4853, %v4957
          %s4962 = sadd.s32 %s4722, 17
          %s4963 = sld [smem:[#allocation6 + %s4962]]
          %v4964 = vstv %s4963
          %v4965 = vmul.f32 %v4964, %v4719
          %v4966 = vmul.f32 %v4964, %v4720
          %v4967 = vmul.f32 %v4964, %v4721
          %v4971 = vrot.slane %v4965, 2
          %v4972 = vrot.slane %v4966, 2
          %v4973 = vsel %vm2891, %v4971, %v4972
          %v4974 = vrot.slane %v4967, 2
          %v4975 = vsel %vm2891, %v4972, %v4974
          %v4978 = vadd.f32 %v4870, %v4973
          %v4979 = vadd.f32 %v4871, %v4975
        $region68: #{parallel_model_forward.1} parent=39 // loop_footer
          %s2675 = sadd.s32 1, %s2671
        $region69: #{parallel_model_forward.1} parent=39 // loop_footer_branch
          %2670 = sbr.rel target = $region65
        $region70: #{parallel_model_forward.1} parent=39 // loop_exit
          _
        %4980 = vrot.lane.b32.xlu0 %v2676, 8
        %v4981 = vpop.permute.xlu0 %4980
        %4982 = vrot.lane.b32.xlu0 %v2677, 8
        %v4983 = vpop.permute.xlu0 %4982
        %v4984 = vsel %vm2616, %v4981, 0.0
        %v4985 = vsel %vm2616, %v4983, 0.0
        %4986 = vrot.lane.b32.xlu0 %v2684, 120
        %v4987 = vpop.permute.xlu0 %4986
        %4988 = vrot.lane.b32.xlu0 %v2685, 120
        %v4989 = vpop.permute.xlu0 %4988
        %v4990 = vsel %vm2617, %v4987, 0.0
        %v4991 = vsel %vm2617, %v4989, 0.0
        %v4992 = vadd.f32 %v2680, %v4984
        %v4993 = vadd.f32 %v2681, %v4985
        %v4994 = vadd.f32 %v4992, %v4990
        %v4995 = vadd.f32 %v4993, %v4991
        %s4996 = sld [smem:[#allocation7]]
        %v4997 = vstv %s4996
        %v4998 = vadd.f32 %v4994, %v4997
        %v4999 = vadd.f32 %v4995, %v4997
        %s5000 = scalar_lea.vmem %s283, 32
        %5001 = vst [vmem:[%s5000] sm:$0xff] %v4998
        %5002 = vst [vmem:[%s5000 + $0x8] sm:$0xff] %v4999
        %5003 = vrot.lane.b32.xlu0 %v2678, 8
        %v5004 = vpop.permute.xlu0 %5003
        %5005 = vrot.lane.b32.xlu0 %v2679, 8
        %v5006 = vpop.permute.xlu0 %5005
        %v5007 = vsel %vm2616, %v5004, 0.0
        %v5008 = vsel %vm2616, %v5006, 0.0
        %5009 = vrot.lane.b32.xlu0 %v2686, 120
        %v5010 = vpop.permute.xlu0 %5009
        %5011 = vrot.lane.b32.xlu0 %v2687, 120
        %v5012 = vpop.permute.xlu0 %5011
        %v5013 = vsel %vm2617, %v5010, 0.0
        %v5014 = vsel %vm2617, %v5012, 0.0
        %v5015 = vadd.f32 %v2682, %v5007
        %v5016 = vadd.f32 %v2683, %v5008
        %v5017 = vadd.f32 %v5015, %v5013
        %v5018 = vadd.f32 %v5016, %v5014
        %s5019 = sld [smem:[#allocation7 + $0x1]]
        %v5020 = vstv %s5019
        %v5021 = vadd.f32 %v5017, %v5020
        %v5022 = vadd.f32 %v5018, %v5020
        %s5023 = scalar_lea.vmem %s283, 48
        %5024 = vst [vmem:[%s5023] sm:$0xff] %v5021
        %5025 = vst [vmem:[%s5023 + $0x8] sm:$0xff] %v5022
        %s5026 = smul.u32 2, %s19
        %p5027 = scmp.lt.s32.totalorder %s5026, 3
        %s5028 = scalar_select %p5027, %s5026, 3
        %s5029 = smul.addr %s5028, 4
        %s5030 = smul.addr %s5029, 8
        %s5031 = scalar_lea.vmem %s5, %s5030
        // Predicated region
        $region71: #{parallel_model_forward.1} parent=39 // pred_check
          %p5032 = pneg %p147
        $region72: #{parallel_model_forward.1} parent=39 // pred_check_branch
          %5034 = sbr.rel (%p5032) target = $region74
        $region73: #{parallel_model_forward.1} parent=39 // pred_region
          %s5035 = smul.u32 2, %s19
        $region74: #{parallel_model_forward.1} parent=39 // pred_fallthru
          _
      $region40: #{parallel_model_forward.1} parent=5 // pred_fallthru
        _
      %p5036 = scmp.le.s32.totalorder 2, %s14
      // Predicated region
      $region75: #{parallel_model_forward.1} parent=5 // pred_check
        %p5037 = pneg %p5036
      $region76: #{parallel_model_forward.1} parent=5 // pred_check_branch
        %5039 = sbr.rel (%p5037) target = $region78
      $region77: #{parallel_model_forward.1} parent=5 // pred_region
        %s5040 = ssub.s32 %s14, 2
        // Predicated region
        $region79: #{parallel_model_forward.1} parent=77 // pred_check
          %p5041 = pneg %p153
        $region80: #{parallel_model_forward.1} parent=77 // pred_check_branch
          %5043 = sbr.rel (%p5041) target = $region82
        $region81: #{parallel_model_forward.1} parent=77 // pred_region
          %s5044 = smul.u32 2, %s20
          %p5045 = scmp.lt.s32.totalorder %s5044, 3
          %s5046 = scalar_select %p5045, %s5044, 3
          %s5047 = smul.addr %s5046, 4
          %s5048 = smul.addr %s5047, 8
          %s5049 = scalar_lea.vmem %s5, %s5048
        $region82: #{parallel_model_forward.1} parent=77 // pred_fallthru
          _
      $region78: #{parallel_model_forward.1} parent=5 // pred_fallthru
        _
    $region6: #{parallel_model_forward.1} parent=1 // loop_footer
      %s18 = sadd.s32 1, %s14
    $region7: #{parallel_model_forward.1} parent=1 // loop_footer_branch
      %13 = sbr.rel target = $region3
    $region8: #{parallel_model_forward.1} parent=1 // loop_exit
      _
    %5050 = vsyncpa [#allocation3], 1
    %s5051 = scalar_lea.sflag [#allocation3], 1
    %5052 = vsyncpa %s5051, 1
    %5053 = vsyncpa [#allocation5], 1
    %5054 = vsyncpa [#allocation8], 1

</llo_original>
